<compile_context>
chip_gen: v6e
topology: v6e:2x2x1
jax: 0.10.0
libtpu: 0.0.40
codegen_flags: <defaults>
</compile_context>

<pallas_src>
import functools

import jax
import jax.numpy as jnp
from jax import lax
from jax.experimental import pallas as pl
from jax.experimental.pallas import tpu as pltpu


def mixed_op_kernel(xpad_ref, w_ref, invc_ref, o_ref, *, H, W, C):
    """Fused MixedOp for one batch element (NCHW, tiny-C VPU path).

    xpad_ref : (1, C, H+2, W+2) bf16   zero-padded input tile
    w_ref    : (9*C*C,) f32 in SMEM    folded conv weights, w[dy,dx,ci,co] flat
    invc_ref : (H, W) f32              1 / (#valid taps) per output pixel
    o_ref    : (1, C, H, W) f32        output tile
    """
    invc = invc_ref[...]                                        # (H, W)
    acc = [jnp.zeros((H, W), jnp.float32) for _ in range(C)]    # per-out-channel

    for ci in range(C):
        for dy in range(3):
            # One row strip per (ci, dy); the 3 dx shifts are lane slices of it.
            strip = xpad_ref[0, ci, dy:dy + H, :].astype(jnp.float32)  # (H, W+2)
            for dx in range(3):
                tap = strip[:, dx:dx + W]                        # (H, W)
                base = ((dy * 3 + dx) * C + ci) * C
                for co in range(C):                              # conv taps (VPU FMA,
                    acc[co] = acc[co] + w_ref[base + co] * tap   #  scalar weight splat)
                # avg-pool tap (count_include_pad=False), same accumulator
                acc[ci] = acc[ci] + tap * invc

    for co in range(C):
        o_ref[0, co, :, :] = acc[co]


def mixed_op(x_nchw, w1_oihw, w3_oihw):
    """NCHW in / NCHW out (matches PyTorch). Whole mixture in one Pallas call."""
    N, C, H, W = x_nchw.shape

    # bf16 activations (halves HBM read traffic); compute/accumulate in f32.
    xpad = jnp.pad(x_nchw.astype(jnp.bfloat16),
                   ((0, 0), (0, 0), (1, 1), (1, 1)))             # (N, C, H+2, W+2)

    # Fold skip_connect (identity) and the 1x1 conv into the 3x3 center tap.
    w1 = jnp.transpose(w1_oihw[:, :, 0, 0], (1, 0))              # (Cin, Cout)
    wk = jnp.transpose(w3_oihw, (2, 3, 1, 0))                    # (kh, kw, Cin, Cout)
    wk = wk.at[1, 1].add(w1 + jnp.eye(C, dtype=wk.dtype))
    wk_flat = wk.astype(jnp.float32).reshape(-1)                 # SMEM scalar table

    # Per-pixel 1/count for avg_pool with count_include_pad=False.
    onesp = jnp.pad(jnp.ones((H, W), jnp.float32), 1)
    cnt = sum(onesp[dy:dy + H, dx:dx + W]
              for dy in range(3) for dx in range(3))
    inv_cnt = 1.0 / cnt                                          # (H, W)

    kern = functools.partial(mixed_op_kernel, H=H, W=W, C=C)
    flops = 2 * N * H * W * (9 * C * C + 9 * C)                  # conv + pool FMAs
    bytes_accessed = (xpad.size * xpad.dtype.itemsize
                      + wk_flat.size * 4 + inv_cnt.size * 4
                      + N * C * H * W * 4)

    out = pl.pallas_call(
        kern,
        out_shape=jax.ShapeDtypeStruct((N, C, H, W), jnp.float32),
        grid=(N,),
        in_specs=[
            pl.BlockSpec((1, C, H + 2, W + 2), lambda n: (n, 0, 0, 0)),
            pl.BlockSpec(memory_space=pltpu.MemorySpace.SMEM),   # scalar weights
            pl.BlockSpec((H, W), lambda n: (0, 0)),
        ],
        out_specs=pl.BlockSpec((1, C, H, W), lambda n: (n, 0, 0, 0)),
        compiler_params=pltpu.CompilerParams(
            dimension_semantics=("parallel",),                   # megacore on v7x
            vmem_limit_bytes=32 * 1024 * 1024),
        cost_estimate=pl.CostEstimate(flops=flops, transcendentals=0,
                                      bytes_accessed=bytes_accessed),
    )(xpad, wk_flat, inv_cnt)
    return out


def reference(x, w1, w3):
    """Pure-JAX f32 reference of the same MixedOp (NCHW, matches PyTorch ops)."""
    dn = lax.conv_dimension_numbers(x.shape, w3.shape, ("NCHW", "OIHW", "NCHW"))
    y_skip = x
    y_c1 = lax.conv_general_dilated(x, w1, (1, 1), "SAME", dimension_numbers=dn)
    y_c3 = lax.conv_general_dilated(x, w3, (1, 1), "SAME", dimension_numbers=dn)
    s = lax.reduce_window(x, 0.0, lax.add, (1, 1, 3, 3), (1, 1, 1, 1), "SAME")
    cnt = lax.reduce_window(jnp.ones_like(x), 0.0, lax.add,
                            (1, 1, 3, 3), (1, 1, 1, 1), "SAME")
    y_pool = s / cnt
    return y_skip + y_c1 + y_c3 + y_pool


if __name__ == "__main__":
    key = jax.random.PRNGKey(0)
    kx, k1, k3 = jax.random.split(key, 3)

    N, C, H, W = 2, 4, 16, 16
    x = jax.random.normal(kx, (N, C, H, W), jnp.float32)
    # Deterministic synthetic conv weights (PyTorch OIHW layout).
    w1 = 0.1 * jax.random.normal(k1, (C, C, 1, 1), jnp.float32)
    w3 = 0.1 * jax.random.normal(k3, (C, C, 3, 3), jnp.float32)

    out = mixed_op(x, w1, w3)
    out = jax.block_until_ready(out)

    ref = reference(x, w1, w3)
    err = float(jnp.max(jnp.abs(out - ref)))
    assert out.shape == (N, C, H, W)
    # bf16 activations + folded weights -> tolerance loosened vs f32 reference.
    assert jnp.allclose(out, ref, atol=5e-2, rtol=5e-2), err

    print("KERNEL_OK")
</pallas_src>

<mosaic_0001>
module attributes {stable_mosaic.version = 11 : i64} {
  func.func @mixed_op_kernel(%arg0: i32, %arg1: memref<1x4x18x18xbf16, #tpu.memory_space<vmem>>, %arg2: memref<144xf32, #tpu.memory_space<smem>>, %arg3: memref<16x16xf32, #tpu.memory_space<vmem>>, %arg4: memref<1x4x16x16xf32, #tpu.memory_space<vmem>>) attributes {dimension_semantics = [#tpu.dimension_semantics<parallel>], iteration_bounds = array<i64: 2>, scalar_prefetch = 0 : i64, scratch_operands = 0 : i64, tpu.core_type = #tpu.core_type<tc>, window_params = [{transform_indices = @transform_0, window_bounds = array<i64: 1, 4, 18, 18>}, {transform_indices = @transform_1, window_bounds = array<i64: 144>}, {pipeline_mode = #tpu.pipeline_mode<synchronous>, transform_indices = @transform_2, window_bounds = array<i64: 16, 16>}, {transform_indices = @transform_3, window_bounds = array<i64: 1, 4, 16, 16>}]} {
    %c0 = arith.constant 0 : index
    %c0_0 = arith.constant 0 : index
    %0 = vector.load %arg3[%c0, %c0_0] : memref<16x16xf32, #tpu.memory_space<vmem>>, vector<16x16xf32>
    %cst = arith.constant 0.000000e+00 : f32
    %1 = vector.broadcast %cst : f32 to vector<16x16xf32>
    %cst_1 = arith.constant 0.000000e+00 : f32
    %2 = vector.broadcast %cst_1 : f32 to vector<16x16xf32>
    %cst_2 = arith.constant 0.000000e+00 : f32
    %3 = vector.broadcast %cst_2 : f32 to vector<16x16xf32>
    %cst_3 = arith.constant 0.000000e+00 : f32
    %4 = vector.broadcast %cst_3 : f32 to vector<16x16xf32>
    %c0_4 = arith.constant 0 : index
    %c0_5 = arith.constant 0 : index
    %c0_6 = arith.constant 0 : index
    %c0_7 = arith.constant 0 : index
    %5 = vector.load %arg1[%c0_4, %c0_5, %c0_6, %c0_7] : memref<1x4x18x18xbf16, #tpu.memory_space<vmem>>, vector<1x1x16x18xbf16>
    %6 = vector.shape_cast %5 : vector<1x1x16x18xbf16> to vector<16x18xbf16>
    %7 = arith.extf %6 : vector<16x18xbf16> to vector<16x18xf32>
    %8 = vector.extract_strided_slice %7 {offsets = [0, 0], sizes = [16, 16], strides = [1, 1]} : vector<16x18xf32> to vector<16x16xf32>
    %c0_8 = arith.constant 0 : index
    %9 = memref.load %arg2[%c0_8] : memref<144xf32, #tpu.memory_space<smem>>
    %10 = vector.broadcast %9 : f32 to vector<16x16xf32>
    %11 = arith.mulf %10, %8 : vector<16x16xf32>
    %12 = arith.addf %1, %11 : vector<16x16xf32>
    %c1 = arith.constant 1 : index
    %13 = memref.load %arg2[%c1] : memref<144xf32, #tpu.memory_space<smem>>
    %14 = vector.broadcast %13 : f32 to vector<16x16xf32>
    %15 = arith.mulf %14, %8 : vector<16x16xf32>
    %16 = arith.addf %2, %15 : vector<16x16xf32>
    %c2 = arith.constant 2 : index
    %17 = memref.load %arg2[%c2] : memref<144xf32, #tpu.memory_space<smem>>
    %18 = vector.broadcast %17 : f32 to vector<16x16xf32>
    %19 = arith.mulf %18, %8 : vector<16x16xf32>
    %20 = arith.addf %3, %19 : vector<16x16xf32>
    %c3 = arith.constant 3 : index
    %21 = memref.load %arg2[%c3] : memref<144xf32, #tpu.memory_space<smem>>
    %22 = vector.broadcast %21 : f32 to vector<16x16xf32>
    %23 = arith.mulf %22, %8 : vector<16x16xf32>
    %24 = arith.addf %4, %23 : vector<16x16xf32>
    %25 = arith.mulf %8, %0 : vector<16x16xf32>
    %26 = arith.addf %12, %25 : vector<16x16xf32>
    %27 = vector.extract_strided_slice %7 {offsets = [0, 1], sizes = [16, 16], strides = [1, 1]} : vector<16x18xf32> to vector<16x16xf32>
    %c16 = arith.constant 16 : index
    %28 = memref.load %arg2[%c16] : memref<144xf32, #tpu.memory_space<smem>>
    %29 = vector.broadcast %28 : f32 to vector<16x16xf32>
    %30 = arith.mulf %29, %27 : vector<16x16xf32>
    %31 = arith.addf %26, %30 : vector<16x16xf32>
    %c17 = arith.constant 17 : index
    %32 = memref.load %arg2[%c17] : memref<144xf32, #tpu.memory_space<smem>>
    %33 = vector.broadcast %32 : f32 to vector<16x16xf32>
    %34 = arith.mulf %33, %27 : vector<16x16xf32>
    %35 = arith.addf %16, %34 : vector<16x16xf32>
    %c18 = arith.constant 18 : index
    %36 = memref.load %arg2[%c18] : memref<144xf32, #tpu.memory_space<smem>>
    %37 = vector.broadcast %36 : f32 to vector<16x16xf32>
    %38 = arith.mulf %37, %27 : vector<16x16xf32>
    %39 = arith.addf %20, %38 : vector<16x16xf32>
    %c19 = arith.constant 19 : index
    %40 = memref.load %arg2[%c19] : memref<144xf32, #tpu.memory_space<smem>>
    %41 = vector.broadcast %40 : f32 to vector<16x16xf32>
    %42 = arith.mulf %41, %27 : vector<16x16xf32>
    %43 = arith.addf %24, %42 : vector<16x16xf32>
    %44 = arith.mulf %27, %0 : vector<16x16xf32>
    %45 = arith.addf %31, %44 : vector<16x16xf32>
    %46 = vector.extract_strided_slice %7 {offsets = [0, 2], sizes = [16, 16], strides = [1, 1]} : vector<16x18xf32> to vector<16x16xf32>
    %c32 = arith.constant 32 : index
    %47 = memref.load %arg2[%c32] : memref<144xf32, #tpu.memory_space<smem>>
    %48 = vector.broadcast %47 : f32 to vector<16x16xf32>
    %49 = arith.mulf %48, %46 : vector<16x16xf32>
    %50 = arith.addf %45, %49 : vector<16x16xf32>
    %c33 = arith.constant 33 : index
    %51 = memref.load %arg2[%c33] : memref<144xf32, #tpu.memory_space<smem>>
    %52 = vector.broadcast %51 : f32 to vector<16x16xf32>
    %53 = arith.mulf %52, %46 : vector<16x16xf32>
    %54 = arith.addf %35, %53 : vector<16x16xf32>
    %c34 = arith.constant 34 : index
    %55 = memref.load %arg2[%c34] : memref<144xf32, #tpu.memory_space<smem>>
    %56 = vector.broadcast %55 : f32 to vector<16x16xf32>
    %57 = arith.mulf %56, %46 : vector<16x16xf32>
    %58 = arith.addf %39, %57 : vector<16x16xf32>
    %c35 = arith.constant 35 : index
    %59 = memref.load %arg2[%c35] : memref<144xf32, #tpu.memory_space<smem>>
    %60 = vector.broadcast %59 : f32 to vector<16x16xf32>
    %61 = arith.mulf %60, %46 : vector<16x16xf32>
    %62 = arith.addf %43, %61 : vector<16x16xf32>
    %63 = arith.mulf %46, %0 : vector<16x16xf32>
    %64 = arith.addf %50, %63 : vector<16x16xf32>
    %c0_9 = arith.constant 0 : index
    %c0_10 = arith.constant 0 : index
    %c1_11 = arith.constant 1 : index
    %c0_12 = arith.constant 0 : index
    %65 = vector.load %arg1[%c0_9, %c0_10, %c1_11, %c0_12] : memref<1x4x18x18xbf16, #tpu.memory_space<vmem>>, vector<1x1x16x18xbf16>
    %66 = vector.shape_cast %65 : vector<1x1x16x18xbf16> to vector<16x18xbf16>
    %67 = arith.extf %66 : vector<16x18xbf16> to vector<16x18xf32>
    %68 = vector.extract_strided_slice %67 {offsets = [0, 0], sizes = [16, 16], strides = [1, 1]} : vector<16x18xf32> to vector<16x16xf32>
    %c48 = arith.constant 48 : index
    %69 = memref.load %arg2[%c48] : memref<144xf32, #tpu.memory_space<smem>>
    %70 = vector.broadcast %69 : f32 to vector<16x16xf32>
    %71 = arith.mulf %70, %68 : vector<16x16xf32>
    %72 = arith.addf %64, %71 : vector<16x16xf32>
    %c49 = arith.constant 49 : index
    %73 = memref.load %arg2[%c49] : memref<144xf32, #tpu.memory_space<smem>>
    %74 = vector.broadcast %73 : f32 to vector<16x16xf32>
    %75 = arith.mulf %74, %68 : vector<16x16xf32>
    %76 = arith.addf %54, %75 : vector<16x16xf32>
    %c50 = arith.constant 50 : index
    %77 = memref.load %arg2[%c50] : memref<144xf32, #tpu.memory_space<smem>>
    %78 = vector.broadcast %77 : f32 to vector<16x16xf32>
    %79 = arith.mulf %78, %68 : vector<16x16xf32>
    %80 = arith.addf %58, %79 : vector<16x16xf32>
    %c51 = arith.constant 51 : index
    %81 = memref.load %arg2[%c51] : memref<144xf32, #tpu.memory_space<smem>>
    %82 = vector.broadcast %81 : f32 to vector<16x16xf32>
    %83 = arith.mulf %82, %68 : vector<16x16xf32>
    %84 = arith.addf %62, %83 : vector<16x16xf32>
    %85 = arith.mulf %68, %0 : vector<16x16xf32>
    %86 = arith.addf %72, %85 : vector<16x16xf32>
    %87 = vector.extract_strided_slice %67 {offsets = [0, 1], sizes = [16, 16], strides = [1, 1]} : vector<16x18xf32> to vector<16x16xf32>
    %c64 = arith.constant 64 : index
    %88 = memref.load %arg2[%c64] : memref<144xf32, #tpu.memory_space<smem>>
    %89 = vector.broadcast %88 : f32 to vector<16x16xf32>
    %90 = arith.mulf %89, %87 : vector<16x16xf32>
    %91 = arith.addf %86, %90 : vector<16x16xf32>
    %c65 = arith.constant 65 : index
    %92 = memref.load %arg2[%c65] : memref<144xf32, #tpu.memory_space<smem>>
    %93 = vector.broadcast %92 : f32 to vector<16x16xf32>
    %94 = arith.mulf %93, %87 : vector<16x16xf32>
    %95 = arith.addf %76, %94 : vector<16x16xf32>
    %c66 = arith.constant 66 : index
    %96 = memref.load %arg2[%c66] : memref<144xf32, #tpu.memory_space<smem>>
    %97 = vector.broadcast %96 : f32 to vector<16x16xf32>
    %98 = arith.mulf %97, %87 : vector<16x16xf32>
    %99 = arith.addf %80, %98 : vector<16x16xf32>
    %c67 = arith.constant 67 : index
    %100 = memref.load %arg2[%c67] : memref<144xf32, #tpu.memory_space<smem>>
    %101 = vector.broadcast %100 : f32 to vector<16x16xf32>
    %102 = arith.mulf %101, %87 : vector<16x16xf32>
    %103 = arith.addf %84, %102 : vector<16x16xf32>
    %104 = arith.mulf %87, %0 : vector<16x16xf32>
    %105 = arith.addf %91, %104 : vector<16x16xf32>
    %106 = vector.extract_strided_slice %67 {offsets = [0, 2], sizes = [16, 16], strides = [1, 1]} : vector<16x18xf32> to vector<16x16xf32>
    %c80 = arith.constant 80 : index
    %107 = memref.load %arg2[%c80] : memref<144xf32, #tpu.memory_space<smem>>
    %108 = vector.broadcast %107 : f32 to vector<16x16xf32>
    %109 = arith.mulf %108, %106 : vector<16x16xf32>
    %110 = arith.addf %105, %109 : vector<16x16xf32>
    %c81 = arith.constant 81 : index
    %111 = memref.load %arg2[%c81] : memref<144xf32, #tpu.memory_space<smem>>
    %112 = vector.broadcast %111 : f32 to vector<16x16xf32>
    %113 = arith.mulf %112, %106 : vector<16x16xf32>
    %114 = arith.addf %95, %113 : vector<16x16xf32>
    %c82 = arith.constant 82 : index
    %115 = memref.load %arg2[%c82] : memref<144xf32, #tpu.memory_space<smem>>
    %116 = vector.broadcast %115 : f32 to vector<16x16xf32>
    %117 = arith.mulf %116, %106 : vector<16x16xf32>
    %118 = arith.addf %99, %117 : vector<16x16xf32>
    %c83 = arith.constant 83 : index
    %119 = memref.load %arg2[%c83] : memref<144xf32, #tpu.memory_space<smem>>
    %120 = vector.broadcast %119 : f32 to vector<16x16xf32>
    %121 = arith.mulf %120, %106 : vector<16x16xf32>
    %122 = arith.addf %103, %121 : vector<16x16xf32>
    %123 = arith.mulf %106, %0 : vector<16x16xf32>
    %124 = arith.addf %110, %123 : vector<16x16xf32>
    %c0_13 = arith.constant 0 : index
    %c0_14 = arith.constant 0 : index
    %c2_15 = arith.constant 2 : index
    %c0_16 = arith.constant 0 : index
    %125 = vector.load %arg1[%c0_13, %c0_14, %c2_15, %c0_16] : memref<1x4x18x18xbf16, #tpu.memory_space<vmem>>, vector<1x1x16x18xbf16>
    %126 = vector.shape_cast %125 : vector<1x1x16x18xbf16> to vector<16x18xbf16>
    %127 = arith.extf %126 : vector<16x18xbf16> to vector<16x18xf32>
    %128 = vector.extract_strided_slice %127 {offsets = [0, 0], sizes = [16, 16], strides = [1, 1]} : vector<16x18xf32> to vector<16x16xf32>
    %c96 = arith.constant 96 : index
    %129 = memref.load %arg2[%c96] : memref<144xf32, #tpu.memory_space<smem>>
    %130 = vector.broadcast %129 : f32 to vector<16x16xf32>
    %131 = arith.mulf %130, %128 : vector<16x16xf32>
    %132 = arith.addf %124, %131 : vector<16x16xf32>
    %c97 = arith.constant 97 : index
    %133 = memref.load %arg2[%c97] : memref<144xf32, #tpu.memory_space<smem>>
    %134 = vector.broadcast %133 : f32 to vector<16x16xf32>
    %135 = arith.mulf %134, %128 : vector<16x16xf32>
    %136 = arith.addf %114, %135 : vector<16x16xf32>
    %c98 = arith.constant 98 : index
    %137 = memref.load %arg2[%c98] : memref<144xf32, #tpu.memory_space<smem>>
    %138 = vector.broadcast %137 : f32 to vector<16x16xf32>
    %139 = arith.mulf %138, %128 : vector<16x16xf32>
    %140 = arith.addf %118, %139 : vector<16x16xf32>
    %c99 = arith.constant 99 : index
    %141 = memref.load %arg2[%c99] : memref<144xf32, #tpu.memory_space<smem>>
    %142 = vector.broadcast %141 : f32 to vector<16x16xf32>
    %143 = arith.mulf %142, %128 : vector<16x16xf32>
    %144 = arith.addf %122, %143 : vector<16x16xf32>
    %145 = arith.mulf %128, %0 : vector<16x16xf32>
    %146 = arith.addf %132, %145 : vector<16x16xf32>
    %147 = vector.extract_strided_slice %127 {offsets = [0, 1], sizes = [16, 16], strides = [1, 1]} : vector<16x18xf32> to vector<16x16xf32>
    %c112 = arith.constant 112 : index
    %148 = memref.load %arg2[%c112] : memref<144xf32, #tpu.memory_space<smem>>
    %149 = vector.broadcast %148 : f32 to vector<16x16xf32>
    %150 = arith.mulf %149, %147 : vector<16x16xf32>
    %151 = arith.addf %146, %150 : vector<16x16xf32>
    %c113 = arith.constant 113 : index
    %152 = memref.load %arg2[%c113] : memref<144xf32, #tpu.memory_space<smem>>
    %153 = vector.broadcast %152 : f32 to vector<16x16xf32>
    %154 = arith.mulf %153, %147 : vector<16x16xf32>
    %155 = arith.addf %136, %154 : vector<16x16xf32>
    %c114 = arith.constant 114 : index
    %156 = memref.load %arg2[%c114] : memref<144xf32, #tpu.memory_space<smem>>
    %157 = vector.broadcast %156 : f32 to vector<16x16xf32>
    %158 = arith.mulf %157, %147 : vector<16x16xf32>
    %159 = arith.addf %140, %158 : vector<16x16xf32>
    %c115 = arith.constant 115 : index
    %160 = memref.load %arg2[%c115] : memref<144xf32, #tpu.memory_space<smem>>
    %161 = vector.broadcast %160 : f32 to vector<16x16xf32>
    %162 = arith.mulf %161, %147 : vector<16x16xf32>
    %163 = arith.addf %144, %162 : vector<16x16xf32>
    %164 = arith.mulf %147, %0 : vector<16x16xf32>
    %165 = arith.addf %151, %164 : vector<16x16xf32>
    %166 = vector.extract_strided_slice %127 {offsets = [0, 2], sizes = [16, 16], strides = [1, 1]} : vector<16x18xf32> to vector<16x16xf32>
    %c128 = arith.constant 128 : index
    %167 = memref.load %arg2[%c128] : memref<144xf32, #tpu.memory_space<smem>>
    %168 = vector.broadcast %167 : f32 to vector<16x16xf32>
    %169 = arith.mulf %168, %166 : vector<16x16xf32>
    %170 = arith.addf %165, %169 : vector<16x16xf32>
    %c129 = arith.constant 129 : index
    %171 = memref.load %arg2[%c129] : memref<144xf32, #tpu.memory_space<smem>>
    %172 = vector.broadcast %171 : f32 to vector<16x16xf32>
    %173 = arith.mulf %172, %166 : vector<16x16xf32>
    %174 = arith.addf %155, %173 : vector<16x16xf32>
    %c130 = arith.constant 130 : index
    %175 = memref.load %arg2[%c130] : memref<144xf32, #tpu.memory_space<smem>>
    %176 = vector.broadcast %175 : f32 to vector<16x16xf32>
    %177 = arith.mulf %176, %166 : vector<16x16xf32>
    %178 = arith.addf %159, %177 : vector<16x16xf32>
    %c131 = arith.constant 131 : index
    %179 = memref.load %arg2[%c131] : memref<144xf32, #tpu.memory_space<smem>>
    %180 = vector.broadcast %179 : f32 to vector<16x16xf32>
    %181 = arith.mulf %180, %166 : vector<16x16xf32>
    %182 = arith.addf %163, %181 : vector<16x16xf32>
    %183 = arith.mulf %166, %0 : vector<16x16xf32>
    %184 = arith.addf %170, %183 : vector<16x16xf32>
    %c0_17 = arith.constant 0 : index
    %c1_18 = arith.constant 1 : index
    %c0_19 = arith.constant 0 : index
    %c0_20 = arith.constant 0 : index
    %185 = vector.load %arg1[%c0_17, %c1_18, %c0_19, %c0_20] : memref<1x4x18x18xbf16, #tpu.memory_space<vmem>>, vector<1x1x16x18xbf16>
    %186 = vector.shape_cast %185 : vector<1x1x16x18xbf16> to vector<16x18xbf16>
    %187 = arith.extf %186 : vector<16x18xbf16> to vector<16x18xf32>
    %188 = vector.extract_strided_slice %187 {offsets = [0, 0], sizes = [16, 16], strides = [1, 1]} : vector<16x18xf32> to vector<16x16xf32>
    %c4 = arith.constant 4 : index
    %189 = memref.load %arg2[%c4] : memref<144xf32, #tpu.memory_space<smem>>
    %190 = vector.broadcast %189 : f32 to vector<16x16xf32>
    %191 = arith.mulf %190, %188 : vector<16x16xf32>
    %192 = arith.addf %184, %191 : vector<16x16xf32>
    %c5 = arith.constant 5 : index
    %193 = memref.load %arg2[%c5] : memref<144xf32, #tpu.memory_space<smem>>
    %194 = vector.broadcast %193 : f32 to vector<16x16xf32>
    %195 = arith.mulf %194, %188 : vector<16x16xf32>
    %196 = arith.addf %174, %195 : vector<16x16xf32>
    %c6 = arith.constant 6 : index
    %197 = memref.load %arg2[%c6] : memref<144xf32, #tpu.memory_space<smem>>
    %198 = vector.broadcast %197 : f32 to vector<16x16xf32>
    %199 = arith.mulf %198, %188 : vector<16x16xf32>
    %200 = arith.addf %178, %199 : vector<16x16xf32>
    %c7 = arith.constant 7 : index
    %201 = memref.load %arg2[%c7] : memref<144xf32, #tpu.memory_space<smem>>
    %202 = vector.broadcast %201 : f32 to vector<16x16xf32>
    %203 = arith.mulf %202, %188 : vector<16x16xf32>
    %204 = arith.addf %182, %203 : vector<16x16xf32>
    %205 = arith.mulf %188, %0 : vector<16x16xf32>
    %206 = arith.addf %196, %205 : vector<16x16xf32>
    %207 = vector.extract_strided_slice %187 {offsets = [0, 1], sizes = [16, 16], strides = [1, 1]} : vector<16x18xf32> to vector<16x16xf32>
    %c20 = arith.constant 20 : index
    %208 = memref.load %arg2[%c20] : memref<144xf32, #tpu.memory_space<smem>>
    %209 = vector.broadcast %208 : f32 to vector<16x16xf32>
    %210 = arith.mulf %209, %207 : vector<16x16xf32>
    %211 = arith.addf %192, %210 : vector<16x16xf32>
    %c21 = arith.constant 21 : index
    %212 = memref.load %arg2[%c21] : memref<144xf32, #tpu.memory_space<smem>>
    %213 = vector.broadcast %212 : f32 to vector<16x16xf32>
    %214 = arith.mulf %213, %207 : vector<16x16xf32>
    %215 = arith.addf %206, %214 : vector<16x16xf32>
    %c22 = arith.constant 22 : index
    %216 = memref.load %arg2[%c22] : memref<144xf32, #tpu.memory_space<smem>>
    %217 = vector.broadcast %216 : f32 to vector<16x16xf32>
    %218 = arith.mulf %217, %207 : vector<16x16xf32>
    %219 = arith.addf %200, %218 : vector<16x16xf32>
    %c23 = arith.constant 23 : index
    %220 = memref.load %arg2[%c23] : memref<144xf32, #tpu.memory_space<smem>>
    %221 = vector.broadcast %220 : f32 to vector<16x16xf32>
    %222 = arith.mulf %221, %207 : vector<16x16xf32>
    %223 = arith.addf %204, %222 : vector<16x16xf32>
    %224 = arith.mulf %207, %0 : vector<16x16xf32>
    %225 = arith.addf %215, %224 : vector<16x16xf32>
    %226 = vector.extract_strided_slice %187 {offsets = [0, 2], sizes = [16, 16], strides = [1, 1]} : vector<16x18xf32> to vector<16x16xf32>
    %c36 = arith.constant 36 : index
    %227 = memref.load %arg2[%c36] : memref<144xf32, #tpu.memory_space<smem>>
    %228 = vector.broadcast %227 : f32 to vector<16x16xf32>
    %229 = arith.mulf %228, %226 : vector<16x16xf32>
    %230 = arith.addf %211, %229 : vector<16x16xf32>
    %c37 = arith.constant 37 : index
    %231 = memref.load %arg2[%c37] : memref<144xf32, #tpu.memory_space<smem>>
    %232 = vector.broadcast %231 : f32 to vector<16x16xf32>
    %233 = arith.mulf %232, %226 : vector<16x16xf32>
    %234 = arith.addf %225, %233 : vector<16x16xf32>
    %c38 = arith.constant 38 : index
    %235 = memref.load %arg2[%c38] : memref<144xf32, #tpu.memory_space<smem>>
    %236 = vector.broadcast %235 : f32 to vector<16x16xf32>
    %237 = arith.mulf %236, %226 : vector<16x16xf32>
    %238 = arith.addf %219, %237 : vector<16x16xf32>
    %c39 = arith.constant 39 : index
    %239 = memref.load %arg2[%c39] : memref<144xf32, #tpu.memory_space<smem>>
    %240 = vector.broadcast %239 : f32 to vector<16x16xf32>
    %241 = arith.mulf %240, %226 : vector<16x16xf32>
    %242 = arith.addf %223, %241 : vector<16x16xf32>
    %243 = arith.mulf %226, %0 : vector<16x16xf32>
    %244 = arith.addf %234, %243 : vector<16x16xf32>
    %c0_21 = arith.constant 0 : index
    %c1_22 = arith.constant 1 : index
    %c1_23 = arith.constant 1 : index
    %c0_24 = arith.constant 0 : index
    %245 = vector.load %arg1[%c0_21, %c1_22, %c1_23, %c0_24] : memref<1x4x18x18xbf16, #tpu.memory_space<vmem>>, vector<1x1x16x18xbf16>
    %246 = vector.shape_cast %245 : vector<1x1x16x18xbf16> to vector<16x18xbf16>
    %247 = arith.extf %246 : vector<16x18xbf16> to vector<16x18xf32>
    %248 = vector.extract_strided_slice %247 {offsets = [0, 0], sizes = [16, 16], strides = [1, 1]} : vector<16x18xf32> to vector<16x16xf32>
    %c52 = arith.constant 52 : index
    %249 = memref.load %arg2[%c52] : memref<144xf32, #tpu.memory_space<smem>>
    %250 = vector.broadcast %249 : f32 to vector<16x16xf32>
    %251 = arith.mulf %250, %248 : vector<16x16xf32>
    %252 = arith.addf %230, %251 : vector<16x16xf32>
    %c53 = arith.constant 53 : index
    %253 = memref.load %arg2[%c53] : memref<144xf32, #tpu.memory_space<smem>>
    %254 = vector.broadcast %253 : f32 to vector<16x16xf32>
    %255 = arith.mulf %254, %248 : vector<16x16xf32>
    %256 = arith.addf %244, %255 : vector<16x16xf32>
    %c54 = arith.constant 54 : index
    %257 = memref.load %arg2[%c54] : memref<144xf32, #tpu.memory_space<smem>>
    %258 = vector.broadcast %257 : f32 to vector<16x16xf32>
    %259 = arith.mulf %258, %248 : vector<16x16xf32>
    %260 = arith.addf %238, %259 : vector<16x16xf32>
    %c55 = arith.constant 55 : index
    %261 = memref.load %arg2[%c55] : memref<144xf32, #tpu.memory_space<smem>>
    %262 = vector.broadcast %261 : f32 to vector<16x16xf32>
    %263 = arith.mulf %262, %248 : vector<16x16xf32>
    %264 = arith.addf %242, %263 : vector<16x16xf32>
    %265 = arith.mulf %248, %0 : vector<16x16xf32>
    %266 = arith.addf %256, %265 : vector<16x16xf32>
    %267 = vector.extract_strided_slice %247 {offsets = [0, 1], sizes = [16, 16], strides = [1, 1]} : vector<16x18xf32> to vector<16x16xf32>
    %c68 = arith.constant 68 : index
    %268 = memref.load %arg2[%c68] : memref<144xf32, #tpu.memory_space<smem>>
    %269 = vector.broadcast %268 : f32 to vector<16x16xf32>
    %270 = arith.mulf %269, %267 : vector<16x16xf32>
    %271 = arith.addf %252, %270 : vector<16x16xf32>
    %c69 = arith.constant 69 : index
    %272 = memref.load %arg2[%c69] : memref<144xf32, #tpu.memory_space<smem>>
    %273 = vector.broadcast %272 : f32 to vector<16x16xf32>
    %274 = arith.mulf %273, %267 : vector<16x16xf32>
    %275 = arith.addf %266, %274 : vector<16x16xf32>
    %c70 = arith.constant 70 : index
    %276 = memref.load %arg2[%c70] : memref<144xf32, #tpu.memory_space<smem>>
    %277 = vector.broadcast %276 : f32 to vector<16x16xf32>
    %278 = arith.mulf %277, %267 : vector<16x16xf32>
    %279 = arith.addf %260, %278 : vector<16x16xf32>
    %c71 = arith.constant 71 : index
    %280 = memref.load %arg2[%c71] : memref<144xf32, #tpu.memory_space<smem>>
    %281 = vector.broadcast %280 : f32 to vector<16x16xf32>
    %282 = arith.mulf %281, %267 : vector<16x16xf32>
    %283 = arith.addf %264, %282 : vector<16x16xf32>
    %284 = arith.mulf %267, %0 : vector<16x16xf32>
    %285 = arith.addf %275, %284 : vector<16x16xf32>
    %286 = vector.extract_strided_slice %247 {offsets = [0, 2], sizes = [16, 16], strides = [1, 1]} : vector<16x18xf32> to vector<16x16xf32>
    %c84 = arith.constant 84 : index
    %287 = memref.load %arg2[%c84] : memref<144xf32, #tpu.memory_space<smem>>
    %288 = vector.broadcast %287 : f32 to vector<16x16xf32>
    %289 = arith.mulf %288, %286 : vector<16x16xf32>
    %290 = arith.addf %271, %289 : vector<16x16xf32>
    %c85 = arith.constant 85 : index
    %291 = memref.load %arg2[%c85] : memref<144xf32, #tpu.memory_space<smem>>
    %292 = vector.broadcast %291 : f32 to vector<16x16xf32>
    %293 = arith.mulf %292, %286 : vector<16x16xf32>
    %294 = arith.addf %285, %293 : vector<16x16xf32>
    %c86 = arith.constant 86 : index
    %295 = memref.load %arg2[%c86] : memref<144xf32, #tpu.memory_space<smem>>
    %296 = vector.broadcast %295 : f32 to vector<16x16xf32>
    %297 = arith.mulf %296, %286 : vector<16x16xf32>
    %298 = arith.addf %279, %297 : vector<16x16xf32>
    %c87 = arith.constant 87 : index
    %299 = memref.load %arg2[%c87] : memref<144xf32, #tpu.memory_space<smem>>
    %300 = vector.broadcast %299 : f32 to vector<16x16xf32>
    %301 = arith.mulf %300, %286 : vector<16x16xf32>
    %302 = arith.addf %283, %301 : vector<16x16xf32>
    %303 = arith.mulf %286, %0 : vector<16x16xf32>
    %304 = arith.addf %294, %303 : vector<16x16xf32>
    %c0_25 = arith.constant 0 : index
    %c1_26 = arith.constant 1 : index
    %c2_27 = arith.constant 2 : index
    %c0_28 = arith.constant 0 : index
    %305 = vector.load %arg1[%c0_25, %c1_26, %c2_27, %c0_28] : memref<1x4x18x18xbf16, #tpu.memory_space<vmem>>, vector<1x1x16x18xbf16>
    %306 = vector.shape_cast %305 : vector<1x1x16x18xbf16> to vector<16x18xbf16>
    %307 = arith.extf %306 : vector<16x18xbf16> to vector<16x18xf32>
    %308 = vector.extract_strided_slice %307 {offsets = [0, 0], sizes = [16, 16], strides = [1, 1]} : vector<16x18xf32> to vector<16x16xf32>
    %c100 = arith.constant 100 : index
    %309 = memref.load %arg2[%c100] : memref<144xf32, #tpu.memory_space<smem>>
    %310 = vector.broadcast %309 : f32 to vector<16x16xf32>
    %311 = arith.mulf %310, %308 : vector<16x16xf32>
    %312 = arith.addf %290, %311 : vector<16x16xf32>
    %c101 = arith.constant 101 : index
    %313 = memref.load %arg2[%c101] : memref<144xf32, #tpu.memory_space<smem>>
    %314 = vector.broadcast %313 : f32 to vector<16x16xf32>
    %315 = arith.mulf %314, %308 : vector<16x16xf32>
    %316 = arith.addf %304, %315 : vector<16x16xf32>
    %c102 = arith.constant 102 : index
    %317 = memref.load %arg2[%c102] : memref<144xf32, #tpu.memory_space<smem>>
    %318 = vector.broadcast %317 : f32 to vector<16x16xf32>
    %319 = arith.mulf %318, %308 : vector<16x16xf32>
    %320 = arith.addf %298, %319 : vector<16x16xf32>
    %c103 = arith.constant 103 : index
    %321 = memref.load %arg2[%c103] : memref<144xf32, #tpu.memory_space<smem>>
    %322 = vector.broadcast %321 : f32 to vector<16x16xf32>
    %323 = arith.mulf %322, %308 : vector<16x16xf32>
    %324 = arith.addf %302, %323 : vector<16x16xf32>
    %325 = arith.mulf %308, %0 : vector<16x16xf32>
    %326 = arith.addf %316, %325 : vector<16x16xf32>
    %327 = vector.extract_strided_slice %307 {offsets = [0, 1], sizes = [16, 16], strides = [1, 1]} : vector<16x18xf32> to vector<16x16xf32>
    %c116 = arith.constant 116 : index
    %328 = memref.load %arg2[%c116] : memref<144xf32, #tpu.memory_space<smem>>
    %329 = vector.broadcast %328 : f32 to vector<16x16xf32>
    %330 = arith.mulf %329, %327 : vector<16x16xf32>
    %331 = arith.addf %312, %330 : vector<16x16xf32>
    %c117 = arith.constant 117 : index
    %332 = memref.load %arg2[%c117] : memref<144xf32, #tpu.memory_space<smem>>
    %333 = vector.broadcast %332 : f32 to vector<16x16xf32>
    %334 = arith.mulf %333, %327 : vector<16x16xf32>
    %335 = arith.addf %326, %334 : vector<16x16xf32>
    %c118 = arith.constant 118 : index
    %336 = memref.load %arg2[%c118] : memref<144xf32, #tpu.memory_space<smem>>
    %337 = vector.broadcast %336 : f32 to vector<16x16xf32>
    %338 = arith.mulf %337, %327 : vector<16x16xf32>
    %339 = arith.addf %320, %338 : vector<16x16xf32>
    %c119 = arith.constant 119 : index
    %340 = memref.load %arg2[%c119] : memref<144xf32, #tpu.memory_space<smem>>
    %341 = vector.broadcast %340 : f32 to vector<16x16xf32>
    %342 = arith.mulf %341, %327 : vector<16x16xf32>
    %343 = arith.addf %324, %342 : vector<16x16xf32>
    %344 = arith.mulf %327, %0 : vector<16x16xf32>
    %345 = arith.addf %335, %344 : vector<16x16xf32>
    %346 = vector.extract_strided_slice %307 {offsets = [0, 2], sizes = [16, 16], strides = [1, 1]} : vector<16x18xf32> to vector<16x16xf32>
    %c132 = arith.constant 132 : index
    %347 = memref.load %arg2[%c132] : memref<144xf32, #tpu.memory_space<smem>>
    %348 = vector.broadcast %347 : f32 to vector<16x16xf32>
    %349 = arith.mulf %348, %346 : vector<16x16xf32>
    %350 = arith.addf %331, %349 : vector<16x16xf32>
    %c133 = arith.constant 133 : index
    %351 = memref.load %arg2[%c133] : memref<144xf32, #tpu.memory_space<smem>>
    %352 = vector.broadcast %351 : f32 to vector<16x16xf32>
    %353 = arith.mulf %352, %346 : vector<16x16xf32>
    %354 = arith.addf %345, %353 : vector<16x16xf32>
    %c134 = arith.constant 134 : index
    %355 = memref.load %arg2[%c134] : memref<144xf32, #tpu.memory_space<smem>>
    %356 = vector.broadcast %355 : f32 to vector<16x16xf32>
    %357 = arith.mulf %356, %346 : vector<16x16xf32>
    %358 = arith.addf %339, %357 : vector<16x16xf32>
    %c135 = arith.constant 135 : index
    %359 = memref.load %arg2[%c135] : memref<144xf32, #tpu.memory_space<smem>>
    %360 = vector.broadcast %359 : f32 to vector<16x16xf32>
    %361 = arith.mulf %360, %346 : vector<16x16xf32>
    %362 = arith.addf %343, %361 : vector<16x16xf32>
    %363 = arith.mulf %346, %0 : vector<16x16xf32>
    %364 = arith.addf %354, %363 : vector<16x16xf32>
    %c0_29 = arith.constant 0 : index
    %c2_30 = arith.constant 2 : index
    %c0_31 = arith.constant 0 : index
    %c0_32 = arith.constant 0 : index
    %365 = vector.load %arg1[%c0_29, %c2_30, %c0_31, %c0_32] : memref<1x4x18x18xbf16, #tpu.memory_space<vmem>>, vector<1x1x16x18xbf16>
    %366 = vector.shape_cast %365 : vector<1x1x16x18xbf16> to vector<16x18xbf16>
    %367 = arith.extf %366 : vector<16x18xbf16> to vector<16x18xf32>
    %368 = vector.extract_strided_slice %367 {offsets = [0, 0], sizes = [16, 16], strides = [1, 1]} : vector<16x18xf32> to vector<16x16xf32>
    %c8 = arith.constant 8 : index
    %369 = memref.load %arg2[%c8] : memref<144xf32, #tpu.memory_space<smem>>
    %370 = vector.broadcast %369 : f32 to vector<16x16xf32>
    %371 = arith.mulf %370, %368 : vector<16x16xf32>
    %372 = arith.addf %350, %371 : vector<16x16xf32>
    %c9 = arith.constant 9 : index
    %373 = memref.load %arg2[%c9] : memref<144xf32, #tpu.memory_space<smem>>
    %374 = vector.broadcast %373 : f32 to vector<16x16xf32>
    %375 = arith.mulf %374, %368 : vector<16x16xf32>
    %376 = arith.addf %364, %375 : vector<16x16xf32>
    %c10 = arith.constant 10 : index
    %377 = memref.load %arg2[%c10] : memref<144xf32, #tpu.memory_space<smem>>
    %378 = vector.broadcast %377 : f32 to vector<16x16xf32>
    %379 = arith.mulf %378, %368 : vector<16x16xf32>
    %380 = arith.addf %358, %379 : vector<16x16xf32>
    %c11 = arith.constant 11 : index
    %381 = memref.load %arg2[%c11] : memref<144xf32, #tpu.memory_space<smem>>
    %382 = vector.broadcast %381 : f32 to vector<16x16xf32>
    %383 = arith.mulf %382, %368 : vector<16x16xf32>
    %384 = arith.addf %362, %383 : vector<16x16xf32>
    %385 = arith.mulf %368, %0 : vector<16x16xf32>
    %386 = arith.addf %380, %385 : vector<16x16xf32>
    %387 = vector.extract_strided_slice %367 {offsets = [0, 1], sizes = [16, 16], strides = [1, 1]} : vector<16x18xf32> to vector<16x16xf32>
    %c24 = arith.constant 24 : index
    %388 = memref.load %arg2[%c24] : memref<144xf32, #tpu.memory_space<smem>>
    %389 = vector.broadcast %388 : f32 to vector<16x16xf32>
    %390 = arith.mulf %389, %387 : vector<16x16xf32>
    %391 = arith.addf %372, %390 : vector<16x16xf32>
    %c25 = arith.constant 25 : index
    %392 = memref.load %arg2[%c25] : memref<144xf32, #tpu.memory_space<smem>>
    %393 = vector.broadcast %392 : f32 to vector<16x16xf32>
    %394 = arith.mulf %393, %387 : vector<16x16xf32>
    %395 = arith.addf %376, %394 : vector<16x16xf32>
    %c26 = arith.constant 26 : index
    %396 = memref.load %arg2[%c26] : memref<144xf32, #tpu.memory_space<smem>>
    %397 = vector.broadcast %396 : f32 to vector<16x16xf32>
    %398 = arith.mulf %397, %387 : vector<16x16xf32>
    %399 = arith.addf %386, %398 : vector<16x16xf32>
    %c27 = arith.constant 27 : index
    %400 = memref.load %arg2[%c27] : memref<144xf32, #tpu.memory_space<smem>>
    %401 = vector.broadcast %400 : f32 to vector<16x16xf32>
    %402 = arith.mulf %401, %387 : vector<16x16xf32>
    %403 = arith.addf %384, %402 : vector<16x16xf32>
    %404 = arith.mulf %387, %0 : vector<16x16xf32>
    %405 = arith.addf %399, %404 : vector<16x16xf32>
    %406 = vector.extract_strided_slice %367 {offsets = [0, 2], sizes = [16, 16], strides = [1, 1]} : vector<16x18xf32> to vector<16x16xf32>
    %c40 = arith.constant 40 : index
    %407 = memref.load %arg2[%c40] : memref<144xf32, #tpu.memory_space<smem>>
    %408 = vector.broadcast %407 : f32 to vector<16x16xf32>
    %409 = arith.mulf %408, %406 : vector<16x16xf32>
    %410 = arith.addf %391, %409 : vector<16x16xf32>
    %c41 = arith.constant 41 : index
    %411 = memref.load %arg2[%c41] : memref<144xf32, #tpu.memory_space<smem>>
    %412 = vector.broadcast %411 : f32 to vector<16x16xf32>
    %413 = arith.mulf %412, %406 : vector<16x16xf32>
    %414 = arith.addf %395, %413 : vector<16x16xf32>
    %c42 = arith.constant 42 : index
    %415 = memref.load %arg2[%c42] : memref<144xf32, #tpu.memory_space<smem>>
    %416 = vector.broadcast %415 : f32 to vector<16x16xf32>
    %417 = arith.mulf %416, %406 : vector<16x16xf32>
    %418 = arith.addf %405, %417 : vector<16x16xf32>
    %c43 = arith.constant 43 : index
    %419 = memref.load %arg2[%c43] : memref<144xf32, #tpu.memory_space<smem>>
    %420 = vector.broadcast %419 : f32 to vector<16x16xf32>
    %421 = arith.mulf %420, %406 : vector<16x16xf32>
    %422 = arith.addf %403, %421 : vector<16x16xf32>
    %423 = arith.mulf %406, %0 : vector<16x16xf32>
    %424 = arith.addf %418, %423 : vector<16x16xf32>
    %c0_33 = arith.constant 0 : index
    %c2_34 = arith.constant 2 : index
    %c1_35 = arith.constant 1 : index
    %c0_36 = arith.constant 0 : index
    %425 = vector.load %arg1[%c0_33, %c2_34, %c1_35, %c0_36] : memref<1x4x18x18xbf16, #tpu.memory_space<vmem>>, vector<1x1x16x18xbf16>
    %426 = vector.shape_cast %425 : vector<1x1x16x18xbf16> to vector<16x18xbf16>
    %427 = arith.extf %426 : vector<16x18xbf16> to vector<16x18xf32>
    %428 = vector.extract_strided_slice %427 {offsets = [0, 0], sizes = [16, 16], strides = [1, 1]} : vector<16x18xf32> to vector<16x16xf32>
    %c56 = arith.constant 56 : index
    %429 = memref.load %arg2[%c56] : memref<144xf32, #tpu.memory_space<smem>>
    %430 = vector.broadcast %429 : f32 to vector<16x16xf32>
    %431 = arith.mulf %430, %428 : vector<16x16xf32>
    %432 = arith.addf %410, %431 : vector<16x16xf32>
    %c57 = arith.constant 57 : index
    %433 = memref.load %arg2[%c57] : memref<144xf32, #tpu.memory_space<smem>>
    %434 = vector.broadcast %433 : f32 to vector<16x16xf32>
    %435 = arith.mulf %434, %428 : vector<16x16xf32>
    %436 = arith.addf %414, %435 : vector<16x16xf32>
    %c58 = arith.constant 58 : index
    %437 = memref.load %arg2[%c58] : memref<144xf32, #tpu.memory_space<smem>>
    %438 = vector.broadcast %437 : f32 to vector<16x16xf32>
    %439 = arith.mulf %438, %428 : vector<16x16xf32>
    %440 = arith.addf %424, %439 : vector<16x16xf32>
    %c59 = arith.constant 59 : index
    %441 = memref.load %arg2[%c59] : memref<144xf32, #tpu.memory_space<smem>>
    %442 = vector.broadcast %441 : f32 to vector<16x16xf32>
    %443 = arith.mulf %442, %428 : vector<16x16xf32>
    %444 = arith.addf %422, %443 : vector<16x16xf32>
    %445 = arith.mulf %428, %0 : vector<16x16xf32>
    %446 = arith.addf %440, %445 : vector<16x16xf32>
    %447 = vector.extract_strided_slice %427 {offsets = [0, 1], sizes = [16, 16], strides = [1, 1]} : vector<16x18xf32> to vector<16x16xf32>
    %c72 = arith.constant 72 : index
    %448 = memref.load %arg2[%c72] : memref<144xf32, #tpu.memory_space<smem>>
    %449 = vector.broadcast %448 : f32 to vector<16x16xf32>
    %450 = arith.mulf %449, %447 : vector<16x16xf32>
    %451 = arith.addf %432, %450 : vector<16x16xf32>
    %c73 = arith.constant 73 : index
    %452 = memref.load %arg2[%c73] : memref<144xf32, #tpu.memory_space<smem>>
    %453 = vector.broadcast %452 : f32 to vector<16x16xf32>
    %454 = arith.mulf %453, %447 : vector<16x16xf32>
    %455 = arith.addf %436, %454 : vector<16x16xf32>
    %c74 = arith.constant 74 : index
    %456 = memref.load %arg2[%c74] : memref<144xf32, #tpu.memory_space<smem>>
    %457 = vector.broadcast %456 : f32 to vector<16x16xf32>
    %458 = arith.mulf %457, %447 : vector<16x16xf32>
    %459 = arith.addf %446, %458 : vector<16x16xf32>
    %c75 = arith.constant 75 : index
    %460 = memref.load %arg2[%c75] : memref<144xf32, #tpu.memory_space<smem>>
    %461 = vector.broadcast %460 : f32 to vector<16x16xf32>
    %462 = arith.mulf %461, %447 : vector<16x16xf32>
    %463 = arith.addf %444, %462 : vector<16x16xf32>
    %464 = arith.mulf %447, %0 : vector<16x16xf32>
    %465 = arith.addf %459, %464 : vector<16x16xf32>
    %466 = vector.extract_strided_slice %427 {offsets = [0, 2], sizes = [16, 16], strides = [1, 1]} : vector<16x18xf32> to vector<16x16xf32>
    %c88 = arith.constant 88 : index
    %467 = memref.load %arg2[%c88] : memref<144xf32, #tpu.memory_space<smem>>
    %468 = vector.broadcast %467 : f32 to vector<16x16xf32>
    %469 = arith.mulf %468, %466 : vector<16x16xf32>
    %470 = arith.addf %451, %469 : vector<16x16xf32>
    %c89 = arith.constant 89 : index
    %471 = memref.load %arg2[%c89] : memref<144xf32, #tpu.memory_space<smem>>
    %472 = vector.broadcast %471 : f32 to vector<16x16xf32>
    %473 = arith.mulf %472, %466 : vector<16x16xf32>
    %474 = arith.addf %455, %473 : vector<16x16xf32>
    %c90 = arith.constant 90 : index
    %475 = memref.load %arg2[%c90] : memref<144xf32, #tpu.memory_space<smem>>
    %476 = vector.broadcast %475 : f32 to vector<16x16xf32>
    %477 = arith.mulf %476, %466 : vector<16x16xf32>
    %478 = arith.addf %465, %477 : vector<16x16xf32>
    %c91 = arith.constant 91 : index
    %479 = memref.load %arg2[%c91] : memref<144xf32, #tpu.memory_space<smem>>
    %480 = vector.broadcast %479 : f32 to vector<16x16xf32>
    %481 = arith.mulf %480, %466 : vector<16x16xf32>
    %482 = arith.addf %463, %481 : vector<16x16xf32>
    %483 = arith.mulf %466, %0 : vector<16x16xf32>
    %484 = arith.addf %478, %483 : vector<16x16xf32>
    %c0_37 = arith.constant 0 : index
    %c2_38 = arith.constant 2 : index
    %c2_39 = arith.constant 2 : index
    %c0_40 = arith.constant 0 : index
    %485 = vector.load %arg1[%c0_37, %c2_38, %c2_39, %c0_40] : memref<1x4x18x18xbf16, #tpu.memory_space<vmem>>, vector<1x1x16x18xbf16>
    %486 = vector.shape_cast %485 : vector<1x1x16x18xbf16> to vector<16x18xbf16>
    %487 = arith.extf %486 : vector<16x18xbf16> to vector<16x18xf32>
    %488 = vector.extract_strided_slice %487 {offsets = [0, 0], sizes = [16, 16], strides = [1, 1]} : vector<16x18xf32> to vector<16x16xf32>
    %c104 = arith.constant 104 : index
    %489 = memref.load %arg2[%c104] : memref<144xf32, #tpu.memory_space<smem>>
    %490 = vector.broadcast %489 : f32 to vector<16x16xf32>
    %491 = arith.mulf %490, %488 : vector<16x16xf32>
    %492 = arith.addf %470, %491 : vector<16x16xf32>
    %c105 = arith.constant 105 : index
    %493 = memref.load %arg2[%c105] : memref<144xf32, #tpu.memory_space<smem>>
    %494 = vector.broadcast %493 : f32 to vector<16x16xf32>
    %495 = arith.mulf %494, %488 : vector<16x16xf32>
    %496 = arith.addf %474, %495 : vector<16x16xf32>
    %c106 = arith.constant 106 : index
    %497 = memref.load %arg2[%c106] : memref<144xf32, #tpu.memory_space<smem>>
    %498 = vector.broadcast %497 : f32 to vector<16x16xf32>
    %499 = arith.mulf %498, %488 : vector<16x16xf32>
    %500 = arith.addf %484, %499 : vector<16x16xf32>
    %c107 = arith.constant 107 : index
    %501 = memref.load %arg2[%c107] : memref<144xf32, #tpu.memory_space<smem>>
    %502 = vector.broadcast %501 : f32 to vector<16x16xf32>
    %503 = arith.mulf %502, %488 : vector<16x16xf32>
    %504 = arith.addf %482, %503 : vector<16x16xf32>
    %505 = arith.mulf %488, %0 : vector<16x16xf32>
    %506 = arith.addf %500, %505 : vector<16x16xf32>
    %507 = vector.extract_strided_slice %487 {offsets = [0, 1], sizes = [16, 16], strides = [1, 1]} : vector<16x18xf32> to vector<16x16xf32>
    %c120 = arith.constant 120 : index
    %508 = memref.load %arg2[%c120] : memref<144xf32, #tpu.memory_space<smem>>
    %509 = vector.broadcast %508 : f32 to vector<16x16xf32>
    %510 = arith.mulf %509, %507 : vector<16x16xf32>
    %511 = arith.addf %492, %510 : vector<16x16xf32>
    %c121 = arith.constant 121 : index
    %512 = memref.load %arg2[%c121] : memref<144xf32, #tpu.memory_space<smem>>
    %513 = vector.broadcast %512 : f32 to vector<16x16xf32>
    %514 = arith.mulf %513, %507 : vector<16x16xf32>
    %515 = arith.addf %496, %514 : vector<16x16xf32>
    %c122 = arith.constant 122 : index
    %516 = memref.load %arg2[%c122] : memref<144xf32, #tpu.memory_space<smem>>
    %517 = vector.broadcast %516 : f32 to vector<16x16xf32>
    %518 = arith.mulf %517, %507 : vector<16x16xf32>
    %519 = arith.addf %506, %518 : vector<16x16xf32>
    %c123 = arith.constant 123 : index
    %520 = memref.load %arg2[%c123] : memref<144xf32, #tpu.memory_space<smem>>
    %521 = vector.broadcast %520 : f32 to vector<16x16xf32>
    %522 = arith.mulf %521, %507 : vector<16x16xf32>
    %523 = arith.addf %504, %522 : vector<16x16xf32>
    %524 = arith.mulf %507, %0 : vector<16x16xf32>
    %525 = arith.addf %519, %524 : vector<16x16xf32>
    %526 = vector.extract_strided_slice %487 {offsets = [0, 2], sizes = [16, 16], strides = [1, 1]} : vector<16x18xf32> to vector<16x16xf32>
    %c136 = arith.constant 136 : index
    %527 = memref.load %arg2[%c136] : memref<144xf32, #tpu.memory_space<smem>>
    %528 = vector.broadcast %527 : f32 to vector<16x16xf32>
    %529 = arith.mulf %528, %526 : vector<16x16xf32>
    %530 = arith.addf %511, %529 : vector<16x16xf32>
    %c137 = arith.constant 137 : index
    %531 = memref.load %arg2[%c137] : memref<144xf32, #tpu.memory_space<smem>>
    %532 = vector.broadcast %531 : f32 to vector<16x16xf32>
    %533 = arith.mulf %532, %526 : vector<16x16xf32>
    %534 = arith.addf %515, %533 : vector<16x16xf32>
    %c138 = arith.constant 138 : index
    %535 = memref.load %arg2[%c138] : memref<144xf32, #tpu.memory_space<smem>>
    %536 = vector.broadcast %535 : f32 to vector<16x16xf32>
    %537 = arith.mulf %536, %526 : vector<16x16xf32>
    %538 = arith.addf %525, %537 : vector<16x16xf32>
    %c139 = arith.constant 139 : index
    %539 = memref.load %arg2[%c139] : memref<144xf32, #tpu.memory_space<smem>>
    %540 = vector.broadcast %539 : f32 to vector<16x16xf32>
    %541 = arith.mulf %540, %526 : vector<16x16xf32>
    %542 = arith.addf %523, %541 : vector<16x16xf32>
    %543 = arith.mulf %526, %0 : vector<16x16xf32>
    %544 = arith.addf %538, %543 : vector<16x16xf32>
    %c0_41 = arith.constant 0 : index
    %c3_42 = arith.constant 3 : index
    %c0_43 = arith.constant 0 : index
    %c0_44 = arith.constant 0 : index
    %545 = vector.load %arg1[%c0_41, %c3_42, %c0_43, %c0_44] : memref<1x4x18x18xbf16, #tpu.memory_space<vmem>>, vector<1x1x16x18xbf16>
    %546 = vector.shape_cast %545 : vector<1x1x16x18xbf16> to vector<16x18xbf16>
    %547 = arith.extf %546 : vector<16x18xbf16> to vector<16x18xf32>
    %548 = vector.extract_strided_slice %547 {offsets = [0, 0], sizes = [16, 16], strides = [1, 1]} : vector<16x18xf32> to vector<16x16xf32>
    %c12 = arith.constant 12 : index
    %549 = memref.load %arg2[%c12] : memref<144xf32, #tpu.memory_space<smem>>
    %550 = vector.broadcast %549 : f32 to vector<16x16xf32>
    %551 = arith.mulf %550, %548 : vector<16x16xf32>
    %552 = arith.addf %530, %551 : vector<16x16xf32>
    %c13 = arith.constant 13 : index
    %553 = memref.load %arg2[%c13] : memref<144xf32, #tpu.memory_space<smem>>
    %554 = vector.broadcast %553 : f32 to vector<16x16xf32>
    %555 = arith.mulf %554, %548 : vector<16x16xf32>
    %556 = arith.addf %534, %555 : vector<16x16xf32>
    %c14 = arith.constant 14 : index
    %557 = memref.load %arg2[%c14] : memref<144xf32, #tpu.memory_space<smem>>
    %558 = vector.broadcast %557 : f32 to vector<16x16xf32>
    %559 = arith.mulf %558, %548 : vector<16x16xf32>
    %560 = arith.addf %544, %559 : vector<16x16xf32>
    %c15 = arith.constant 15 : index
    %561 = memref.load %arg2[%c15] : memref<144xf32, #tpu.memory_space<smem>>
    %562 = vector.broadcast %561 : f32 to vector<16x16xf32>
    %563 = arith.mulf %562, %548 : vector<16x16xf32>
    %564 = arith.addf %542, %563 : vector<16x16xf32>
    %565 = arith.mulf %548, %0 : vector<16x16xf32>
    %566 = arith.addf %564, %565 : vector<16x16xf32>
    %567 = vector.extract_strided_slice %547 {offsets = [0, 1], sizes = [16, 16], strides = [1, 1]} : vector<16x18xf32> to vector<16x16xf32>
    %c28 = arith.constant 28 : index
    %568 = memref.load %arg2[%c28] : memref<144xf32, #tpu.memory_space<smem>>
    %569 = vector.broadcast %568 : f32 to vector<16x16xf32>
    %570 = arith.mulf %569, %567 : vector<16x16xf32>
    %571 = arith.addf %552, %570 : vector<16x16xf32>
    %c29 = arith.constant 29 : index
    %572 = memref.load %arg2[%c29] : memref<144xf32, #tpu.memory_space<smem>>
    %573 = vector.broadcast %572 : f32 to vector<16x16xf32>
    %574 = arith.mulf %573, %567 : vector<16x16xf32>
    %575 = arith.addf %556, %574 : vector<16x16xf32>
    %c30 = arith.constant 30 : index
    %576 = memref.load %arg2[%c30] : memref<144xf32, #tpu.memory_space<smem>>
    %577 = vector.broadcast %576 : f32 to vector<16x16xf32>
    %578 = arith.mulf %577, %567 : vector<16x16xf32>
    %579 = arith.addf %560, %578 : vector<16x16xf32>
    %c31 = arith.constant 31 : index
    %580 = memref.load %arg2[%c31] : memref<144xf32, #tpu.memory_space<smem>>
    %581 = vector.broadcast %580 : f32 to vector<16x16xf32>
    %582 = arith.mulf %581, %567 : vector<16x16xf32>
    %583 = arith.addf %566, %582 : vector<16x16xf32>
    %584 = arith.mulf %567, %0 : vector<16x16xf32>
    %585 = arith.addf %583, %584 : vector<16x16xf32>
    %586 = vector.extract_strided_slice %547 {offsets = [0, 2], sizes = [16, 16], strides = [1, 1]} : vector<16x18xf32> to vector<16x16xf32>
    %c44 = arith.constant 44 : index
    %587 = memref.load %arg2[%c44] : memref<144xf32, #tpu.memory_space<smem>>
    %588 = vector.broadcast %587 : f32 to vector<16x16xf32>
    %589 = arith.mulf %588, %586 : vector<16x16xf32>
    %590 = arith.addf %571, %589 : vector<16x16xf32>
    %c45 = arith.constant 45 : index
    %591 = memref.load %arg2[%c45] : memref<144xf32, #tpu.memory_space<smem>>
    %592 = vector.broadcast %591 : f32 to vector<16x16xf32>
    %593 = arith.mulf %592, %586 : vector<16x16xf32>
    %594 = arith.addf %575, %593 : vector<16x16xf32>
    %c46 = arith.constant 46 : index
    %595 = memref.load %arg2[%c46] : memref<144xf32, #tpu.memory_space<smem>>
    %596 = vector.broadcast %595 : f32 to vector<16x16xf32>
    %597 = arith.mulf %596, %586 : vector<16x16xf32>
    %598 = arith.addf %579, %597 : vector<16x16xf32>
    %c47 = arith.constant 47 : index
    %599 = memref.load %arg2[%c47] : memref<144xf32, #tpu.memory_space<smem>>
    %600 = vector.broadcast %599 : f32 to vector<16x16xf32>
    %601 = arith.mulf %600, %586 : vector<16x16xf32>
    %602 = arith.addf %585, %601 : vector<16x16xf32>
    %603 = arith.mulf %586, %0 : vector<16x16xf32>
    %604 = arith.addf %602, %603 : vector<16x16xf32>
    %c0_45 = arith.constant 0 : index
    %c3_46 = arith.constant 3 : index
    %c1_47 = arith.constant 1 : index
    %c0_48 = arith.constant 0 : index
    %605 = vector.load %arg1[%c0_45, %c3_46, %c1_47, %c0_48] : memref<1x4x18x18xbf16, #tpu.memory_space<vmem>>, vector<1x1x16x18xbf16>
    %606 = vector.shape_cast %605 : vector<1x1x16x18xbf16> to vector<16x18xbf16>
    %607 = arith.extf %606 : vector<16x18xbf16> to vector<16x18xf32>
    %608 = vector.extract_strided_slice %607 {offsets = [0, 0], sizes = [16, 16], strides = [1, 1]} : vector<16x18xf32> to vector<16x16xf32>
    %c60 = arith.constant 60 : index
    %609 = memref.load %arg2[%c60] : memref<144xf32, #tpu.memory_space<smem>>
    %610 = vector.broadcast %609 : f32 to vector<16x16xf32>
    %611 = arith.mulf %610, %608 : vector<16x16xf32>
    %612 = arith.addf %590, %611 : vector<16x16xf32>
    %c61 = arith.constant 61 : index
    %613 = memref.load %arg2[%c61] : memref<144xf32, #tpu.memory_space<smem>>
    %614 = vector.broadcast %613 : f32 to vector<16x16xf32>
    %615 = arith.mulf %614, %608 : vector<16x16xf32>
    %616 = arith.addf %594, %615 : vector<16x16xf32>
    %c62 = arith.constant 62 : index
    %617 = memref.load %arg2[%c62] : memref<144xf32, #tpu.memory_space<smem>>
    %618 = vector.broadcast %617 : f32 to vector<16x16xf32>
    %619 = arith.mulf %618, %608 : vector<16x16xf32>
    %620 = arith.addf %598, %619 : vector<16x16xf32>
    %c63 = arith.constant 63 : index
    %621 = memref.load %arg2[%c63] : memref<144xf32, #tpu.memory_space<smem>>
    %622 = vector.broadcast %621 : f32 to vector<16x16xf32>
    %623 = arith.mulf %622, %608 : vector<16x16xf32>
    %624 = arith.addf %604, %623 : vector<16x16xf32>
    %625 = arith.mulf %608, %0 : vector<16x16xf32>
    %626 = arith.addf %624, %625 : vector<16x16xf32>
    %627 = vector.extract_strided_slice %607 {offsets = [0, 1], sizes = [16, 16], strides = [1, 1]} : vector<16x18xf32> to vector<16x16xf32>
    %c76 = arith.constant 76 : index
    %628 = memref.load %arg2[%c76] : memref<144xf32, #tpu.memory_space<smem>>
    %629 = vector.broadcast %628 : f32 to vector<16x16xf32>
    %630 = arith.mulf %629, %627 : vector<16x16xf32>
    %631 = arith.addf %612, %630 : vector<16x16xf32>
    %c77 = arith.constant 77 : index
    %632 = memref.load %arg2[%c77] : memref<144xf32, #tpu.memory_space<smem>>
    %633 = vector.broadcast %632 : f32 to vector<16x16xf32>
    %634 = arith.mulf %633, %627 : vector<16x16xf32>
    %635 = arith.addf %616, %634 : vector<16x16xf32>
    %c78 = arith.constant 78 : index
    %636 = memref.load %arg2[%c78] : memref<144xf32, #tpu.memory_space<smem>>
    %637 = vector.broadcast %636 : f32 to vector<16x16xf32>
    %638 = arith.mulf %637, %627 : vector<16x16xf32>
    %639 = arith.addf %620, %638 : vector<16x16xf32>
    %c79 = arith.constant 79 : index
    %640 = memref.load %arg2[%c79] : memref<144xf32, #tpu.memory_space<smem>>
    %641 = vector.broadcast %640 : f32 to vector<16x16xf32>
    %642 = arith.mulf %641, %627 : vector<16x16xf32>
    %643 = arith.addf %626, %642 : vector<16x16xf32>
    %644 = arith.mulf %627, %0 : vector<16x16xf32>
    %645 = arith.addf %643, %644 : vector<16x16xf32>
    %646 = vector.extract_strided_slice %607 {offsets = [0, 2], sizes = [16, 16], strides = [1, 1]} : vector<16x18xf32> to vector<16x16xf32>
    %c92 = arith.constant 92 : index
    %647 = memref.load %arg2[%c92] : memref<144xf32, #tpu.memory_space<smem>>
    %648 = vector.broadcast %647 : f32 to vector<16x16xf32>
    %649 = arith.mulf %648, %646 : vector<16x16xf32>
    %650 = arith.addf %631, %649 : vector<16x16xf32>
    %c93 = arith.constant 93 : index
    %651 = memref.load %arg2[%c93] : memref<144xf32, #tpu.memory_space<smem>>
    %652 = vector.broadcast %651 : f32 to vector<16x16xf32>
    %653 = arith.mulf %652, %646 : vector<16x16xf32>
    %654 = arith.addf %635, %653 : vector<16x16xf32>
    %c94 = arith.constant 94 : index
    %655 = memref.load %arg2[%c94] : memref<144xf32, #tpu.memory_space<smem>>
    %656 = vector.broadcast %655 : f32 to vector<16x16xf32>
    %657 = arith.mulf %656, %646 : vector<16x16xf32>
    %658 = arith.addf %639, %657 : vector<16x16xf32>
    %c95 = arith.constant 95 : index
    %659 = memref.load %arg2[%c95] : memref<144xf32, #tpu.memory_space<smem>>
    %660 = vector.broadcast %659 : f32 to vector<16x16xf32>
    %661 = arith.mulf %660, %646 : vector<16x16xf32>
    %662 = arith.addf %645, %661 : vector<16x16xf32>
    %663 = arith.mulf %646, %0 : vector<16x16xf32>
    %664 = arith.addf %662, %663 : vector<16x16xf32>
    %c0_49 = arith.constant 0 : index
    %c3_50 = arith.constant 3 : index
    %c2_51 = arith.constant 2 : index
    %c0_52 = arith.constant 0 : index
    %665 = vector.load %arg1[%c0_49, %c3_50, %c2_51, %c0_52] : memref<1x4x18x18xbf16, #tpu.memory_space<vmem>>, vector<1x1x16x18xbf16>
    %666 = vector.shape_cast %665 : vector<1x1x16x18xbf16> to vector<16x18xbf16>
    %667 = arith.extf %666 : vector<16x18xbf16> to vector<16x18xf32>
    %668 = vector.extract_strided_slice %667 {offsets = [0, 0], sizes = [16, 16], strides = [1, 1]} : vector<16x18xf32> to vector<16x16xf32>
    %c108 = arith.constant 108 : index
    %669 = memref.load %arg2[%c108] : memref<144xf32, #tpu.memory_space<smem>>
    %670 = vector.broadcast %669 : f32 to vector<16x16xf32>
    %671 = arith.mulf %670, %668 : vector<16x16xf32>
    %672 = arith.addf %650, %671 : vector<16x16xf32>
    %c109 = arith.constant 109 : index
    %673 = memref.load %arg2[%c109] : memref<144xf32, #tpu.memory_space<smem>>
    %674 = vector.broadcast %673 : f32 to vector<16x16xf32>
    %675 = arith.mulf %674, %668 : vector<16x16xf32>
    %676 = arith.addf %654, %675 : vector<16x16xf32>
    %c110 = arith.constant 110 : index
    %677 = memref.load %arg2[%c110] : memref<144xf32, #tpu.memory_space<smem>>
    %678 = vector.broadcast %677 : f32 to vector<16x16xf32>
    %679 = arith.mulf %678, %668 : vector<16x16xf32>
    %680 = arith.addf %658, %679 : vector<16x16xf32>
    %c111 = arith.constant 111 : index
    %681 = memref.load %arg2[%c111] : memref<144xf32, #tpu.memory_space<smem>>
    %682 = vector.broadcast %681 : f32 to vector<16x16xf32>
    %683 = arith.mulf %682, %668 : vector<16x16xf32>
    %684 = arith.addf %664, %683 : vector<16x16xf32>
    %685 = arith.mulf %668, %0 : vector<16x16xf32>
    %686 = arith.addf %684, %685 : vector<16x16xf32>
    %687 = vector.extract_strided_slice %667 {offsets = [0, 1], sizes = [16, 16], strides = [1, 1]} : vector<16x18xf32> to vector<16x16xf32>
    %c124 = arith.constant 124 : index
    %688 = memref.load %arg2[%c124] : memref<144xf32, #tpu.memory_space<smem>>
    %689 = vector.broadcast %688 : f32 to vector<16x16xf32>
    %690 = arith.mulf %689, %687 : vector<16x16xf32>
    %691 = arith.addf %672, %690 : vector<16x16xf32>
    %c125 = arith.constant 125 : index
    %692 = memref.load %arg2[%c125] : memref<144xf32, #tpu.memory_space<smem>>
    %693 = vector.broadcast %692 : f32 to vector<16x16xf32>
    %694 = arith.mulf %693, %687 : vector<16x16xf32>
    %695 = arith.addf %676, %694 : vector<16x16xf32>
    %c126 = arith.constant 126 : index
    %696 = memref.load %arg2[%c126] : memref<144xf32, #tpu.memory_space<smem>>
    %697 = vector.broadcast %696 : f32 to vector<16x16xf32>
    %698 = arith.mulf %697, %687 : vector<16x16xf32>
    %699 = arith.addf %680, %698 : vector<16x16xf32>
    %c127 = arith.constant 127 : index
    %700 = memref.load %arg2[%c127] : memref<144xf32, #tpu.memory_space<smem>>
    %701 = vector.broadcast %700 : f32 to vector<16x16xf32>
    %702 = arith.mulf %701, %687 : vector<16x16xf32>
    %703 = arith.addf %686, %702 : vector<16x16xf32>
    %704 = arith.mulf %687, %0 : vector<16x16xf32>
    %705 = arith.addf %703, %704 : vector<16x16xf32>
    %706 = vector.extract_strided_slice %667 {offsets = [0, 2], sizes = [16, 16], strides = [1, 1]} : vector<16x18xf32> to vector<16x16xf32>
    %c140 = arith.constant 140 : index
    %707 = memref.load %arg2[%c140] : memref<144xf32, #tpu.memory_space<smem>>
    %708 = vector.broadcast %707 : f32 to vector<16x16xf32>
    %709 = arith.mulf %708, %706 : vector<16x16xf32>
    %710 = arith.addf %691, %709 : vector<16x16xf32>
    %c141 = arith.constant 141 : index
    %711 = memref.load %arg2[%c141] : memref<144xf32, #tpu.memory_space<smem>>
    %712 = vector.broadcast %711 : f32 to vector<16x16xf32>
    %713 = arith.mulf %712, %706 : vector<16x16xf32>
    %714 = arith.addf %695, %713 : vector<16x16xf32>
    %c142 = arith.constant 142 : index
    %715 = memref.load %arg2[%c142] : memref<144xf32, #tpu.memory_space<smem>>
    %716 = vector.broadcast %715 : f32 to vector<16x16xf32>
    %717 = arith.mulf %716, %706 : vector<16x16xf32>
    %718 = arith.addf %699, %717 : vector<16x16xf32>
    %c143 = arith.constant 143 : index
    %719 = memref.load %arg2[%c143] : memref<144xf32, #tpu.memory_space<smem>>
    %720 = vector.broadcast %719 : f32 to vector<16x16xf32>
    %721 = arith.mulf %720, %706 : vector<16x16xf32>
    %722 = arith.addf %705, %721 : vector<16x16xf32>
    %723 = arith.mulf %706, %0 : vector<16x16xf32>
    %724 = arith.addf %722, %723 : vector<16x16xf32>
    %c0_53 = arith.constant 0 : index
    %c0_54 = arith.constant 0 : index
    %c0_55 = arith.constant 0 : index
    %c0_56 = arith.constant 0 : index
    %725 = vector.load %arg4[%c0_53, %c0_54, %c0_55, %c0_56] : memref<1x4x16x16xf32, #tpu.memory_space<vmem>>, vector<1x1x16x16xf32>
    %726 = vector.shape_cast %725 : vector<1x1x16x16xf32> to vector<16x16xf32>
    %727 = vector.shape_cast %710 : vector<16x16xf32> to vector<1x1x16x16xf32>
    tpu.vector_store %arg4[%c0_53, %c0_54, %c0_55, %c0_56], %727 {strides = array<i32>} : memref<1x4x16x16xf32, #tpu.memory_space<vmem>>, vector<1x1x16x16xf32>,
    %c0_57 = arith.constant 0 : index
    %c1_58 = arith.constant 1 : index
    %c0_59 = arith.constant 0 : index
    %c0_60 = arith.constant 0 : index
    %728 = vector.load %arg4[%c0_57, %c1_58, %c0_59, %c0_60] : memref<1x4x16x16xf32, #tpu.memory_space<vmem>>, vector<1x1x16x16xf32>
    %729 = vector.shape_cast %728 : vector<1x1x16x16xf32> to vector<16x16xf32>
    %730 = vector.shape_cast %714 : vector<16x16xf32> to vector<1x1x16x16xf32>
    tpu.vector_store %arg4[%c0_57, %c1_58, %c0_59, %c0_60], %730 {strides = array<i32>} : memref<1x4x16x16xf32, #tpu.memory_space<vmem>>, vector<1x1x16x16xf32>,
    %c0_61 = arith.constant 0 : index
    %c2_62 = arith.constant 2 : index
    %c0_63 = arith.constant 0 : index
    %c0_64 = arith.constant 0 : index
    %731 = vector.load %arg4[%c0_61, %c2_62, %c0_63, %c0_64] : memref<1x4x16x16xf32, #tpu.memory_space<vmem>>, vector<1x1x16x16xf32>
    %732 = vector.shape_cast %731 : vector<1x1x16x16xf32> to vector<16x16xf32>
    %733 = vector.shape_cast %718 : vector<16x16xf32> to vector<1x1x16x16xf32>
    tpu.vector_store %arg4[%c0_61, %c2_62, %c0_63, %c0_64], %733 {strides = array<i32>} : memref<1x4x16x16xf32, #tpu.memory_space<vmem>>, vector<1x1x16x16xf32>,
    %c0_65 = arith.constant 0 : index
    %c3_66 = arith.constant 3 : index
    %c0_67 = arith.constant 0 : index
    %c0_68 = arith.constant 0 : index
    %734 = vector.load %arg4[%c0_65, %c3_66, %c0_67, %c0_68] : memref<1x4x16x16xf32, #tpu.memory_space<vmem>>, vector<1x1x16x16xf32>
    %735 = vector.shape_cast %734 : vector<1x1x16x16xf32> to vector<16x16xf32>
    %736 = vector.shape_cast %724 : vector<16x16xf32> to vector<1x1x16x16xf32>
    tpu.vector_store %arg4[%c0_65, %c3_66, %c0_67, %c0_68], %736 {strides = array<i32>} : memref<1x4x16x16xf32, #tpu.memory_space<vmem>>, vector<1x1x16x16xf32>,
    return
  }
  func.func @transform_0(%arg0: i32) -> (i32, i32, i32, i32) {
    %c0_i32 = arith.constant 0 : i32
    %c0_i32_0 = arith.constant 0 : i32
    %c0_i32_1 = arith.constant 0 : i32
    %c0_i32_2 = arith.constant 0 : i32
    return %arg0, %c0_i32, %c0_i32_0, %c0_i32_1 : i32, i32, i32, i32
  }
  func.func @transform_1(%arg0: i32) -> i32 {
    %c0_i32 = arith.constant 0 : i32
    %c0_i32_0 = arith.constant 0 : i32
    return %c0_i32 : i32
  }
  func.func @transform_2(%arg0: i32) -> (i32, i32) {
    %c0_i32 = arith.constant 0 : i32
    %c0_i32_0 = arith.constant 0 : i32
    %c0_i32_1 = arith.constant 0 : i32
    return %c0_i32, %c0_i32_0 : i32, i32
  }
  func.func @transform_3(%arg0: i32) -> (i32, i32, i32, i32) {
    %c0_i32 = arith.constant 0 : i32
    %c0_i32_0 = arith.constant 0 : i32
    %c0_i32_1 = arith.constant 0 : i32
    %c0_i32_2 = arith.constant 0 : i32
    return %arg0, %c0_i32, %c0_i32_0, %c0_i32_1 : i32, i32, i32, i32
  }
}

</mosaic_0001>

<llo_original>
// kernel: tpu_custom_call.1
$region0: #{tpu_custom_call.1}
  #allocation0 [shape = 'u32[]', space=smem, size = 0x4, offset = 0x4, fixed_abs, tag = 'smem constant byte address 0x4 - core index']
  #allocation1 [shape = 'u32[144,128]{1,0:T(1,128)}', space=vmem, size = 0x12000, scoped, tag = 'internal scratch']
  %s0 = inlined_call_operand.vmem [shape: bf16[2,4,18,18], index: 0, kind: input, shape index: {}]
  %s1 = inlined_call_operand.vmem [shape: f32[144], index: 1, kind: input, shape index: {}]
  %s2 = inlined_call_operand.vmem [shape: f32[16,16], index: 2, kind: input, shape index: {}]
  %s3 = inlined_call_operand.hbm [shape: f32[2,4,16,16], index: 3, kind: output, shape index: {}]
  %s4 = sld [smem:[#allocation0]]
  $region49: #{tpu_custom_call.1} parent=0
    _
  %s6 = ssub.s32 1, %s4
  %s7 = scalar_select 0, %s6, %s4
  $region1: #{tpu_custom_call.1} parent=0
    #allocation2 [shape = 'u8[1024]{0}', space=smem, size = 0x400, scoped, tag = 'input window, operand 1, single buffered']
    #allocation3 [shape = 's32[2]{0}', space=sflag, size = 0x8, scoped, tag = 'scoped memory for tpu_custom_call.1']
    #allocation4 [shape = 's32[2]{0}', space=sflag, size = 0x8, scoped, tag = 'scoped memory for tpu_custom_call.1']
    #allocation5 [shape = 'u8[65536]{0}', space=vmem, size = 0x10000, scoped, tag = 'output window, operand 0']
    %8 = vsyncpa [#allocation4], 0
    %9 = vsyncpa [#allocation3], 0
    %s10 = scalar_lea.sflag [#allocation3], 1
    %11 = vsyncpa %s10, 0
    loop: start=0, step=1, limit=4
    $region2: #{tpu_custom_call.1} parent=1 // loop_pre_header
      _
    $region3: #{tpu_custom_call.1} parent=1 // loop_header
      %s13 = sphi 0, %s17
      %p14 = scmp.ge.s32.totalorder %s13, 4
      %s23 = sphi 0, %s25
      %s26 = sphi 0, %s23
      %s27 = sphi 0, %s26
      %s43 = sphi 0, %s27
      %s47 = sphi 0, %s47
      %s49 = sphi 0, %s47
      %s50 = sphi 0, %s49
      %s64 = sphi 0, %s50
      %s68 = sphi 0, %s68
      %s70 = sphi 0, %s68
      %s71 = sphi 0, %s70
      %s85 = sphi 0, %s71
      %s91 = sphi 0, %s93
      %s94 = sphi 0, %s91
      %s95 = sphi 0, %s94
      %s111 = sphi 0, %s95
    $region4: #{tpu_custom_call.1} parent=1 // loop_header_branch
      %16 = sbr.rel (%p14) target = $region8
    $region5: #{tpu_custom_call.1} parent=1 // loop_body
      %s18 = ssub.s32 %s13, 1
      %s19 = ssub.s32 %s13, 2
      %s20 = sadd.s32 %s13, 1
      %s21 = ssub.s32 %s13, %s20
      %p22 = scmp.eq.s32.totalorder %s21, 0
      %s24 = sadd.s32 %s23, 1
      %s25 = scalar_select %p22, %s23, %s24
      %p28 = pneg %p22
      %p29 = scmp.eq.s32.totalorder %s13, 1
      %p30 = por %p28, %p29
      %p31 = scmp.ne.s32.totalorder %s23, %s26
      %p32 = scmp.eq.s32.totalorder %s13, 0
      %p33 = por %p31, %p32
      %p34 = scmp.ne.s32.totalorder %s23, %s26
      %p35 = scmp.eq.s32.totalorder %s18, 1
      %p36 = por %p34, %p35
      %p37 = scmp.ne.s32.totalorder %s26, %s27
      %p38 = scmp.eq.s32.totalorder %s18, 0
      %p39 = por %p37, %p38
      %p40 = scmp.ne.s32.totalorder %s26, %s27
      %p41 = scmp.eq.s32.totalorder %s19, 1
      %p42 = por %p40, %p41
      %p44 = scmp.ne.s32.totalorder %s27, %s43
      %p45 = scmp.eq.s32.totalorder %s19, 0
      %p46 = por %p44, %p45
      %s48 = sadd.s32 %s47, 1
      %p51 = scmp.eq.s32.totalorder %s13, 1
      %p52 = scmp.ne.s32.totalorder %s47, %s49
      %p53 = scmp.eq.s32.totalorder %s13, 0
      %p54 = por %p52, %p53
      %p55 = scmp.ne.s32.totalorder %s47, %s49
      %p56 = scmp.eq.s32.totalorder %s18, 1
      %p57 = por %p55, %p56
      %p58 = scmp.ne.s32.totalorder %s49, %s50
      %p59 = scmp.eq.s32.totalorder %s18, 0
      %p60 = por %p58, %p59
      %p61 = scmp.ne.s32.totalorder %s49, %s50
      %p62 = scmp.eq.s32.totalorder %s19, 1
      %p63 = por %p61, %p62
      %p65 = scmp.ne.s32.totalorder %s50, %s64
      %p66 = scmp.eq.s32.totalorder %s19, 0
      %p67 = por %p65, %p66
      %s69 = sadd.s32 %s68, 1
      %p72 = scmp.eq.s32.totalorder %s13, 1
      %p73 = scmp.ne.s32.totalorder %s68, %s70
      %p74 = scmp.eq.s32.totalorder %s13, 0
      %p75 = por %p73, %p74
      %p76 = scmp.ne.s32.totalorder %s68, %s70
      %p77 = scmp.eq.s32.totalorder %s18, 1
      %p78 = por %p76, %p77
      %p79 = scmp.ne.s32.totalorder %s70, %s71
      %p80 = scmp.eq.s32.totalorder %s18, 0
      %p81 = por %p79, %p80
      %p82 = scmp.ne.s32.totalorder %s70, %s71
      %p83 = scmp.eq.s32.totalorder %s19, 1
      %p84 = por %p82, %p83
      %p86 = scmp.ne.s32.totalorder %s71, %s85
      %p87 = scmp.eq.s32.totalorder %s19, 0
      %p88 = por %p86, %p87
      %s89 = ssub.s32 %s13, %s20
      %p90 = scmp.eq.s32.totalorder %s89, 0
      %s92 = sadd.s32 %s91, 1
      %s93 = scalar_select %p90, %s91, %s92
      %p96 = pneg %p90
      %p97 = scmp.eq.s32.totalorder %s13, 1
      %p98 = por %p96, %p97
      %p99 = scmp.ne.s32.totalorder %s91, %s94
      %p100 = scmp.eq.s32.totalorder %s13, 0
      %p101 = por %p99, %p100
      %p102 = scmp.ne.s32.totalorder %s91, %s94
      %p103 = scmp.eq.s32.totalorder %s18, 1
      %p104 = por %p102, %p103
      %p105 = scmp.ne.s32.totalorder %s94, %s95
      %p106 = scmp.eq.s32.totalorder %s18, 0
      %p107 = por %p105, %p106
      %p108 = scmp.ne.s32.totalorder %s94, %s95
      %p109 = scmp.eq.s32.totalorder %s19, 1
      %p110 = por %p108, %p109
      %p112 = scmp.ne.s32.totalorder %s95, %s111
      %p113 = scmp.eq.s32.totalorder %s19, 0
      %p114 = por %p112, %p113
      %p115 = scmp.le.s32.totalorder 1, %s13
      %p116 = scmp.lt.s32.totalorder %s13, 3
      %p117 = pnand %p115, %p116
      %p118 = pneg %p117
      // Predicated region
      $region9: #{tpu_custom_call.1} parent=5 // pred_check
        _
      $region10: #{tpu_custom_call.1} parent=5 // pred_check_branch
        %120 = sbr.rel (%p117) target = $region12
      $region11: #{tpu_custom_call.1} parent=5 // pred_region
        %s121 = ssub.s32 %s13, 1
        // Predicated region
        $region13: #{tpu_custom_call.1} parent=11 // pred_check
          %p122 = pneg %p60
        $region14: #{tpu_custom_call.1} parent=11 // pred_check_branch
          %124 = sbr.rel (%p122) target = $region16
        $region15: #{tpu_custom_call.1} parent=11 // pred_region
          %s126 = ssub.s32 32, 32
          %127 = vsyncadd [#allocation4], %s126
          %s129 = sshll.u32 %s1, 4
          %s130 = int_to_ptr.vmem [resolvable:$true] %s129
          %132 = dma.vmem_to_smem %s130, 32, [#allocation2], [#allocation4]
        $region16: #{tpu_custom_call.1} parent=11 // pred_fallthru
          _
        // Predicated region
        $region17: #{tpu_custom_call.1} parent=11 // pred_check
          %p133 = pneg %p81
        $region18: #{tpu_custom_call.1} parent=11 // pred_check_branch
          %135 = sbr.rel (%p133) target = $region20
        $region19: #{tpu_custom_call.1} parent=11 // pred_region
          _
        $region20: #{tpu_custom_call.1} parent=11 // pred_fallthru
          _
      $region12: #{tpu_custom_call.1} parent=5 // pred_fallthru
        _
      %p136 = scmp.lt.s32.totalorder %s13, 2
      // Predicated region
      $region21: #{tpu_custom_call.1} parent=5 // pred_check
        %p137 = pneg %p136
      $region22: #{tpu_custom_call.1} parent=5 // pred_check_branch
        %139 = sbr.rel (%p137) target = $region24
      $region23: #{tpu_custom_call.1} parent=5 // pred_region
        // Predicated region
        $region25: #{tpu_custom_call.1} parent=23 // pred_check
          %p140 = pneg %p33
        $region26: #{tpu_custom_call.1} parent=23 // pred_check_branch
          %142 = sbr.rel (%p140) target = $region28
        $region27: #{tpu_custom_call.1} parent=23 // pred_region
          %p143 = scmp.lt.s32.totalorder %s13, 1
          %s144 = scalar_select %p143, %s13, 1
          %s145 = smul.addr %s144, 12
          %s146 = smul.addr %s145, 4
          %s147 = scalar_lea.vmem %s0, %s146
        $region28: #{tpu_custom_call.1} parent=23 // pred_fallthru
          _
      $region24: #{tpu_custom_call.1} parent=5 // pred_fallthru
        _
      %p148 = scmp.le.s32.totalorder 1, %s13
      %p149 = scmp.lt.s32.totalorder %s13, 3
      %p150 = pnand %p148, %p149
      %p151 = pneg %p150
      // Predicated region
      $region29: #{tpu_custom_call.1} parent=5 // pred_check
        _
      $region30: #{tpu_custom_call.1} parent=5 // pred_check_branch
        %153 = sbr.rel (%p150) target = $region32
      $region31: #{tpu_custom_call.1} parent=5 // pred_region
        %s154 = ssub.s32 %s13, 1
        // Predicated region
        $region33: #{tpu_custom_call.1} parent=31 // pred_check
          %p155 = pneg %p60
        $region34: #{tpu_custom_call.1} parent=31 // pred_check_branch
          %157 = sbr.rel (%p155) target = $region36
        $region35: #{tpu_custom_call.1} parent=31 // pred_region
          %158 = dma.done [#allocation4], 32
        $region36: #{tpu_custom_call.1} parent=31 // pred_fallthru
          _
        %159 = sfence
        %p160 = scmp.lt.s32.totalorder %s18, 1
        %s161 = scalar_select %p160, %s18, 1
        %s162 = smul.addr %s161, 12
        %s163 = smul.addr %s162, 4
        %s164 = scalar_lea.vmem %s0, %s163
        %p165 = pneg %p39
        %p166 = pneg %p36
        %p167 = pneg %p60
        %p168 = pneg %p57
        %p169 = pneg %p81
        %p170 = pneg %p78
        %p171 = pneg %p107
        %p172 = pneg %p104
        %s173 = sand.u32 %s94, 1
        %s174 = scalar_lea.sflag [#allocation3], %s173
        %s175 = sand.u32 %s94, 1
        %s176 = smul.addr %s175, 64
        %s177 = scalar_lea.vmem [#allocation5], %s176
        %p178 = scmp.lt.s32.totalorder %s18, 1
        %s179 = scalar_select %p178, %s18, 1
        %s180 = smul.addr %s179, 12
        %s181 = smul.addr %s180, 4
        %s182 = scalar_lea.vmem %s0, %s181
        %v183 = vld [vmem:[%s2] sm:$0xff]
        %v184 = vld [vmem:[%s2 + $0x8] sm:$0xff]
        %v185 = vld [vmem:[%s182] sm:$0xf]
        %v186 = vld [vmem:[%s182 + $0x4] sm:$0xf]
        %v187 = vunpack.c.l.bf16 %v185
        %v188 = vunpack.c.l.bf16 %v186
        %s189 = sld [smem:[#allocation2]]
        %v190 = vstv %s189
        %v191 = vmul.f32 %v190, %v187
        %v192 = vmul.f32 %v190, %v188
        %v193 = vadd.f32 %v191, 0.0
        %v194 = vadd.f32 %v192, 0.0
        %s195 = sld [smem:[#allocation2 + $0x1]]
        %v196 = vstv %s195
        %v197 = vmul.f32 %v196, %v187
        %v198 = vmul.f32 %v196, %v188
        %v199 = vadd.f32 %v197, 0.0
        %v200 = vadd.f32 %v198, 0.0
        %s201 = sld [smem:[#allocation2 + $0x2]]
        %v202 = vstv %s201
        %v203 = vmul.f32 %v202, %v187
        %v204 = vmul.f32 %v202, %v188
        %v205 = vadd.f32 %v203, 0.0
        %v206 = vadd.f32 %v204, 0.0
        %s207 = sld [smem:[#allocation2 + $0x3]]
        %v208 = vstv %s207
        %v209 = vmul.f32 %v208, %v187
        %v210 = vmul.f32 %v208, %v188
        %v211 = vadd.f32 %v209, 0.0
        %v212 = vadd.f32 %v210, 0.0
        %v213 = vmul.f32 %v187, %v183
        %v214 = vmul.f32 %v188, %v184
        %v215 = vadd.f32 %v193, %v213
        %v216 = vadd.f32 %v194, %v214
        %s217 = sld [smem:[#allocation2 + $0x10]]
        %v218 = vstv %s217
        %v219 = vmul.f32 %v218, %v187
        %v220 = vmul.f32 %v218, %v188
        %223 = vrot.lane.b32.xlu0 %v219, 127
        %v224 = vpop.permute.xlu0 %223
        %225 = vrot.lane.b32.xlu0 %v220, 127
        %v226 = vpop.permute.xlu0 %225
        %v229 = vadd.f32 %v215, %v224
        %v230 = vadd.f32 %v216, %v226
        %s231 = sld [smem:[#allocation2 + $0x11]]
        %v232 = vstv %s231
        %v233 = vmul.f32 %v232, %v187
        %v234 = vmul.f32 %v232, %v188
        %237 = vrot.lane.b32.xlu0 %v233, 127
        %v238 = vpop.permute.xlu0 %237
        %239 = vrot.lane.b32.xlu0 %v234, 127
        %v240 = vpop.permute.xlu0 %239
        %v243 = vadd.f32 %v199, %v238
        %v244 = vadd.f32 %v200, %v240
        %s245 = sld [smem:[#allocation2 + $0x12]]
        %v246 = vstv %s245
        %v247 = vmul.f32 %v246, %v187
        %v248 = vmul.f32 %v246, %v188
        %251 = vrot.lane.b32.xlu0 %v247, 127
        %v252 = vpop.permute.xlu0 %251
        %253 = vrot.lane.b32.xlu0 %v248, 127
        %v254 = vpop.permute.xlu0 %253
        %v257 = vadd.f32 %v205, %v252
        %v258 = vadd.f32 %v206, %v254
        %s259 = sld [smem:[#allocation2 + $0x13]]
        %v260 = vstv %s259
        %v261 = vmul.f32 %v260, %v187
        %v262 = vmul.f32 %v260, %v188
        %265 = vrot.lane.b32.xlu0 %v261, 127
        %v266 = vpop.permute.xlu0 %265
        %267 = vrot.lane.b32.xlu0 %v262, 127
        %v268 = vpop.permute.xlu0 %267
        %v271 = vadd.f32 %v211, %v266
        %v272 = vadd.f32 %v212, %v268
        %275 = vrot.lane.b32.xlu0 %v183, 1
        %v276 = vpop.permute.xlu0 %275
        %277 = vrot.lane.b32.xlu0 %v184, 1
        %v278 = vpop.permute.xlu0 %277
        %v281 = vmul.f32 %v187, %v276
        %v282 = vmul.f32 %v188, %v278
        %285 = vrot.lane.b32.xlu0 %v281, 127
        %v286 = vpop.permute.xlu0 %285
        %287 = vrot.lane.b32.xlu0 %v282, 127
        %v288 = vpop.permute.xlu0 %287
        %v291 = vadd.f32 %v229, %v286
        %v292 = vadd.f32 %v230, %v288
        %s293 = sld [smem:[#allocation2 + $0x20]]
        %v294 = vstv %s293
        %v295 = vmul.f32 %v294, %v187
        %v296 = vmul.f32 %v294, %v188
        %299 = vrot.lane.b32.xlu0 %v295, 126
        %v300 = vpop.permute.xlu0 %299
        %301 = vrot.lane.b32.xlu0 %v296, 126
        %v302 = vpop.permute.xlu0 %301
        %v305 = vadd.f32 %v291, %v300
        %v306 = vadd.f32 %v292, %v302
        %s307 = sld [smem:[#allocation2 + $0x21]]
        %v308 = vstv %s307
        %v309 = vmul.f32 %v308, %v187
        %v310 = vmul.f32 %v308, %v188
        %313 = vrot.lane.b32.xlu0 %v309, 126
        %v314 = vpop.permute.xlu0 %313
        %315 = vrot.lane.b32.xlu0 %v310, 126
        %v316 = vpop.permute.xlu0 %315
        %v319 = vadd.f32 %v243, %v314
        %v320 = vadd.f32 %v244, %v316
        %s321 = sld [smem:[#allocation2 + $0x22]]
        %v322 = vstv %s321
        %v323 = vmul.f32 %v322, %v187
        %v324 = vmul.f32 %v322, %v188
        %327 = vrot.lane.b32.xlu0 %v323, 126
        %v328 = vpop.permute.xlu0 %327
        %329 = vrot.lane.b32.xlu0 %v324, 126
        %v330 = vpop.permute.xlu0 %329
        %v333 = vadd.f32 %v257, %v328
        %v334 = vadd.f32 %v258, %v330
        %s335 = sld [smem:[#allocation2 + $0x23]]
        %v336 = vstv %s335
        %v337 = vmul.f32 %v336, %v187
        %v338 = vmul.f32 %v336, %v188
        %341 = vrot.lane.b32.xlu0 %v337, 126
        %v342 = vpop.permute.xlu0 %341
        %343 = vrot.lane.b32.xlu0 %v338, 126
        %v344 = vpop.permute.xlu0 %343
        %v347 = vadd.f32 %v271, %v342
        %v348 = vadd.f32 %v272, %v344
        %349 = vrot.lane.b32.xlu0 %v183, 2
        %v350 = vpop.permute.xlu0 %349
        %351 = vrot.lane.b32.xlu0 %v184, 2
        %v352 = vpop.permute.xlu0 %351
        %v355 = vmul.f32 %v187, %v350
        %v356 = vmul.f32 %v188, %v352
        %359 = vrot.lane.b32.xlu0 %v355, 126
        %v360 = vpop.permute.xlu0 %359
        %361 = vrot.lane.b32.xlu0 %v356, 126
        %v362 = vpop.permute.xlu0 %361
        %v365 = vadd.f32 %v305, %v360
        %v366 = vadd.f32 %v306, %v362
        %v367 = vld [vmem:[%s182] sm:$0xf]
        %v368 = vld [vmem:[%s182 + $0x4] sm:$0xf]
        %v369 = vld [vmem:[%s182 + $0x8] sm:$0x1]
        %v370 = vunpack.c.l.bf16 %v367
        %v371 = vunpack.c.l.bf16 %v368
        %v372 = vunpack.c.l.bf16 %v369
        %s373 = sld [smem:[#allocation2 + $0x30]]
        %v374 = vstv %s373
        %v375 = vmul.f32 %v374, %v370
        %v376 = vmul.f32 %v374, %v371
        %v377 = vmul.f32 %v374, %v372
        %vm381 = vcmask 1046528
        %v382 = vrot.slane %v375, 1
        %v383 = vrot.slane %v376, 1
        %v384 = vsel %vm381, %v382, %v383
        %v385 = vrot.slane %v377, 1
        %v386 = vsel %vm381, %v383, %v385
        %v389 = vadd.f32 %v365, %v384
        %v390 = vadd.f32 %v366, %v386
        %s391 = sld [smem:[#allocation2 + $0x31]]
        %v392 = vstv %s391
        %v393 = vmul.f32 %v392, %v370
        %v394 = vmul.f32 %v392, %v371
        %v395 = vmul.f32 %v392, %v372
        %v399 = vrot.slane %v393, 1
        %v400 = vrot.slane %v394, 1
        %v401 = vsel %vm381, %v399, %v400
        %v402 = vrot.slane %v395, 1
        %v403 = vsel %vm381, %v400, %v402
        %v406 = vadd.f32 %v319, %v401
        %v407 = vadd.f32 %v320, %v403
        %s408 = sld [smem:[#allocation2 + $0x32]]
        %v409 = vstv %s408
        %v410 = vmul.f32 %v409, %v370
        %v411 = vmul.f32 %v409, %v371
        %v412 = vmul.f32 %v409, %v372
        %v416 = vrot.slane %v410, 1
        %v417 = vrot.slane %v411, 1
        %v418 = vsel %vm381, %v416, %v417
        %v419 = vrot.slane %v412, 1
        %v420 = vsel %vm381, %v417, %v419
        %v423 = vadd.f32 %v333, %v418
        %v424 = vadd.f32 %v334, %v420
        %s425 = sld [smem:[#allocation2 + $0x33]]
        %v426 = vstv %s425
        %v427 = vmul.f32 %v426, %v370
        %v428 = vmul.f32 %v426, %v371
        %v429 = vmul.f32 %v426, %v372
        %v433 = vrot.slane %v427, 1
        %v434 = vrot.slane %v428, 1
        %v435 = vsel %vm381, %v433, %v434
        %v436 = vrot.slane %v429, 1
        %v437 = vsel %vm381, %v434, %v436
        %v440 = vadd.f32 %v347, %v435
        %v441 = vadd.f32 %v348, %v437
        %vm442 = vcmask 1040384
        %v443 = vrot.slane %v183, 7
        %v444 = vrot.slane %v184, 7
        %v445 = vsel %vm442, %v443, %v444
        %v449 = vmul.f32 %v370, %v443
        %v450 = vmul.f32 %v371, %v445
        %v451 = vmul.f32 %v372, %v444
        %v455 = vrot.slane %v449, 1
        %v456 = vrot.slane %v450, 1
        %v457 = vsel %vm381, %v455, %v456
        %v458 = vrot.slane %v451, 1
        %v459 = vsel %vm381, %v456, %v458
        %v462 = vadd.f32 %v389, %v457
        %v463 = vadd.f32 %v390, %v459
        %s464 = sld [smem:[#allocation2 + $0x40]]
        %v465 = vstv %s464
        %v466 = vmul.f32 %v465, %v370
        %v467 = vmul.f32 %v465, %v371
        %v468 = vmul.f32 %v465, %v372
        %v472 = vrot.slane %v466, 1
        %v473 = vrot.slane %v467, 1
        %v474 = vsel %vm381, %v472, %v473
        %v475 = vrot.slane %v468, 1
        %v476 = vsel %vm381, %v473, %v475
        %477 = vrot.lane.b32.xlu0 %v474, 127
        %v478 = vpop.permute.xlu0 %477
        %479 = vrot.lane.b32.xlu0 %v476, 127
        %v480 = vpop.permute.xlu0 %479
        %v483 = vadd.f32 %v462, %v478
        %v484 = vadd.f32 %v463, %v480
        %s485 = sld [smem:[#allocation2 + $0x41]]
        %v486 = vstv %s485
        %v487 = vmul.f32 %v486, %v370
        %v488 = vmul.f32 %v486, %v371
        %v489 = vmul.f32 %v486, %v372
        %v493 = vrot.slane %v487, 1
        %v494 = vrot.slane %v488, 1
        %v495 = vsel %vm381, %v493, %v494
        %v496 = vrot.slane %v489, 1
        %v497 = vsel %vm381, %v494, %v496
        %498 = vrot.lane.b32.xlu0 %v495, 127
        %v499 = vpop.permute.xlu0 %498
        %500 = vrot.lane.b32.xlu0 %v497, 127
        %v501 = vpop.permute.xlu0 %500
        %v504 = vadd.f32 %v406, %v499
        %v505 = vadd.f32 %v407, %v501
        %s506 = sld [smem:[#allocation2 + $0x42]]
        %v507 = vstv %s506
        %v508 = vmul.f32 %v507, %v370
        %v509 = vmul.f32 %v507, %v371
        %v510 = vmul.f32 %v507, %v372
        %v514 = vrot.slane %v508, 1
        %v515 = vrot.slane %v509, 1
        %v516 = vsel %vm381, %v514, %v515
        %v517 = vrot.slane %v510, 1
        %v518 = vsel %vm381, %v515, %v517
        %519 = vrot.lane.b32.xlu0 %v516, 127
        %v520 = vpop.permute.xlu0 %519
        %521 = vrot.lane.b32.xlu0 %v518, 127
        %v522 = vpop.permute.xlu0 %521
        %v525 = vadd.f32 %v423, %v520
        %v526 = vadd.f32 %v424, %v522
        %s527 = sld [smem:[#allocation2 + $0x43]]
        %v528 = vstv %s527
        %v529 = vmul.f32 %v528, %v370
        %v530 = vmul.f32 %v528, %v371
        %v531 = vmul.f32 %v528, %v372
        %v535 = vrot.slane %v529, 1
        %v536 = vrot.slane %v530, 1
        %v537 = vsel %vm381, %v535, %v536
        %v538 = vrot.slane %v531, 1
        %v539 = vsel %vm381, %v536, %v538
        %540 = vrot.lane.b32.xlu0 %v537, 127
        %v541 = vpop.permute.xlu0 %540
        %542 = vrot.lane.b32.xlu0 %v539, 127
        %v543 = vpop.permute.xlu0 %542
        %v546 = vadd.f32 %v440, %v541
        %v547 = vadd.f32 %v441, %v543
        %548 = vrot.lane.b32.xlu0 %v443, 1
        %v549 = vpop.permute.xlu0 %548
        %550 = vrot.lane.b32.xlu0 %v445, 1
        %v551 = vpop.permute.xlu0 %550
        %552 = vrot.lane.b32.xlu0 %v444, 1
        %v553 = vpop.permute.xlu0 %552
        %v557 = vmul.f32 %v370, %v549
        %v558 = vmul.f32 %v371, %v551
        %v559 = vmul.f32 %v372, %v553
        %v563 = vrot.slane %v557, 1
        %v564 = vrot.slane %v558, 1
        %v565 = vsel %vm381, %v563, %v564
        %v566 = vrot.slane %v559, 1
        %v567 = vsel %vm381, %v564, %v566
        %568 = vrot.lane.b32.xlu0 %v565, 127
        %v569 = vpop.permute.xlu0 %568
        %570 = vrot.lane.b32.xlu0 %v567, 127
        %v571 = vpop.permute.xlu0 %570
        %v574 = vadd.f32 %v483, %v569
        %v575 = vadd.f32 %v484, %v571
        %s576 = sld [smem:[#allocation2 + $0x50]]
        %v577 = vstv %s576
        %v578 = vmul.f32 %v577, %v370
        %v579 = vmul.f32 %v577, %v371
        %v580 = vmul.f32 %v577, %v372
        %v584 = vrot.slane %v578, 1
        %v585 = vrot.slane %v579, 1
        %v586 = vsel %vm381, %v584, %v585
        %v587 = vrot.slane %v580, 1
        %v588 = vsel %vm381, %v585, %v587
        %589 = vrot.lane.b32.xlu0 %v586, 126
        %v590 = vpop.permute.xlu0 %589
        %591 = vrot.lane.b32.xlu0 %v588, 126
        %v592 = vpop.permute.xlu0 %591
        %v595 = vadd.f32 %v574, %v590
        %v596 = vadd.f32 %v575, %v592
        %s597 = sld [smem:[#allocation2 + $0x51]]
        %v598 = vstv %s597
        %v599 = vmul.f32 %v598, %v370
        %v600 = vmul.f32 %v598, %v371
        %v601 = vmul.f32 %v598, %v372
        %v605 = vrot.slane %v599, 1
        %v606 = vrot.slane %v600, 1
        %v607 = vsel %vm381, %v605, %v606
        %v608 = vrot.slane %v601, 1
        %v609 = vsel %vm381, %v606, %v608
        %610 = vrot.lane.b32.xlu0 %v607, 126
        %v611 = vpop.permute.xlu0 %610
        %612 = vrot.lane.b32.xlu0 %v609, 126
        %v613 = vpop.permute.xlu0 %612
        %v616 = vadd.f32 %v504, %v611
        %v617 = vadd.f32 %v505, %v613
        %s618 = sld [smem:[#allocation2 + $0x52]]
        %v619 = vstv %s618
        %v620 = vmul.f32 %v619, %v370
        %v621 = vmul.f32 %v619, %v371
        %v622 = vmul.f32 %v619, %v372
        %v626 = vrot.slane %v620, 1
        %v627 = vrot.slane %v621, 1
        %v628 = vsel %vm381, %v626, %v627
        %v629 = vrot.slane %v622, 1
        %v630 = vsel %vm381, %v627, %v629
        %631 = vrot.lane.b32.xlu0 %v628, 126
        %v632 = vpop.permute.xlu0 %631
        %633 = vrot.lane.b32.xlu0 %v630, 126
        %v634 = vpop.permute.xlu0 %633
        %v637 = vadd.f32 %v525, %v632
        %v638 = vadd.f32 %v526, %v634
        %s639 = sld [smem:[#allocation2 + $0x53]]
        %v640 = vstv %s639
        %v641 = vmul.f32 %v640, %v370
        %v642 = vmul.f32 %v640, %v371
        %v643 = vmul.f32 %v640, %v372
        %v647 = vrot.slane %v641, 1
        %v648 = vrot.slane %v642, 1
        %v649 = vsel %vm381, %v647, %v648
        %v650 = vrot.slane %v643, 1
        %v651 = vsel %vm381, %v648, %v650
        %652 = vrot.lane.b32.xlu0 %v649, 126
        %v653 = vpop.permute.xlu0 %652
        %654 = vrot.lane.b32.xlu0 %v651, 126
        %v655 = vpop.permute.xlu0 %654
        %v658 = vadd.f32 %v546, %v653
        %v659 = vadd.f32 %v547, %v655
        %660 = vrot.lane.b32.xlu0 %v443, 2
        %v661 = vpop.permute.xlu0 %660
        %662 = vrot.lane.b32.xlu0 %v445, 2
        %v663 = vpop.permute.xlu0 %662
        %664 = vrot.lane.b32.xlu0 %v444, 2
        %v665 = vpop.permute.xlu0 %664
        %v669 = vmul.f32 %v370, %v661
        %v670 = vmul.f32 %v371, %v663
        %v671 = vmul.f32 %v372, %v665
        %v675 = vrot.slane %v669, 1
        %v676 = vrot.slane %v670, 1
        %v677 = vsel %vm381, %v675, %v676
        %v678 = vrot.slane %v671, 1
        %v679 = vsel %vm381, %v676, %v678
        %680 = vrot.lane.b32.xlu0 %v677, 126
        %v681 = vpop.permute.xlu0 %680
        %682 = vrot.lane.b32.xlu0 %v679, 126
        %v683 = vpop.permute.xlu0 %682
        %v686 = vadd.f32 %v595, %v681
        %v687 = vadd.f32 %v596, %v683
        %v688 = vld [vmem:[%s182] sm:$0xe]
        %v689 = vunpack.c.l.bf16 %v688
        %s690 = sld [smem:[#allocation2 + $0x60]]
        %v691 = vstv %s690
        %v692 = vmul.f32 %v691, %v689
        %v693 = vmul.f32 %v691, %v371
        %v694 = vmul.f32 %v691, %v372
        %vm698 = vcmask 1045504
        %v699 = vrot.slane %v692, 2
        %v700 = vrot.slane %v693, 2
        %v701 = vsel %vm698, %v699, %v700
        %v702 = vrot.slane %v694, 2
        %v703 = vsel %vm698, %v700, %v702
        %v706 = vadd.f32 %v686, %v701
        %v707 = vadd.f32 %v687, %v703
        %s708 = sld [smem:[#allocation2 + $0x61]]
        %v709 = vstv %s708
        %v710 = vmul.f32 %v709, %v689
        %v711 = vmul.f32 %v709, %v371
        %v712 = vmul.f32 %v709, %v372
        %v716 = vrot.slane %v710, 2
        %v717 = vrot.slane %v711, 2
        %v718 = vsel %vm698, %v716, %v717
        %v719 = vrot.slane %v712, 2
        %v720 = vsel %vm698, %v717, %v719
        %v723 = vadd.f32 %v616, %v718
        %v724 = vadd.f32 %v617, %v720
        %s725 = sld [smem:[#allocation2 + $0x62]]
        %v726 = vstv %s725
        %v727 = vmul.f32 %v726, %v689
        %v728 = vmul.f32 %v726, %v371
        %v729 = vmul.f32 %v726, %v372
        %v733 = vrot.slane %v727, 2
        %v734 = vrot.slane %v728, 2
        %v735 = vsel %vm698, %v733, %v734
        %v736 = vrot.slane %v729, 2
        %v737 = vsel %vm698, %v734, %v736
        %v740 = vadd.f32 %v637, %v735
        %v741 = vadd.f32 %v638, %v737
        %s742 = sld [smem:[#allocation2 + $0x63]]
        %v743 = vstv %s742
        %v744 = vmul.f32 %v743, %v689
        %v745 = vmul.f32 %v743, %v371
        %v746 = vmul.f32 %v743, %v372
        %v750 = vrot.slane %v744, 2
        %v751 = vrot.slane %v745, 2
        %v752 = vsel %vm698, %v750, %v751
        %v753 = vrot.slane %v746, 2
        %v754 = vsel %vm698, %v751, %v753
        %v757 = vadd.f32 %v658, %v752
        %v758 = vadd.f32 %v659, %v754
        %vm759 = vcmask 1041408
        %v760 = vrot.slane %v183, 6
        %v761 = vrot.slane %v184, 6
        %v762 = vsel %vm759, %v760, %v761
        %v766 = vmul.f32 %v689, %v760
        %v767 = vmul.f32 %v371, %v762
        %v768 = vmul.f32 %v372, %v761
        %v772 = vrot.slane %v766, 2
        %v773 = vrot.slane %v767, 2
        %v774 = vsel %vm698, %v772, %v773
        %v775 = vrot.slane %v768, 2
        %v776 = vsel %vm698, %v773, %v775
        %v779 = vadd.f32 %v706, %v774
        %v780 = vadd.f32 %v707, %v776
        %s781 = sld [smem:[#allocation2 + $0x70]]
        %v782 = vstv %s781
        %v783 = vmul.f32 %v782, %v689
        %v784 = vmul.f32 %v782, %v371
        %v785 = vmul.f32 %v782, %v372
        %v789 = vrot.slane %v783, 2
        %v790 = vrot.slane %v784, 2
        %v791 = vsel %vm698, %v789, %v790
        %v792 = vrot.slane %v785, 2
        %v793 = vsel %vm698, %v790, %v792
        %794 = vrot.lane.b32.xlu0 %v791, 127
        %v795 = vpop.permute.xlu0 %794
        %796 = vrot.lane.b32.xlu0 %v793, 127
        %v797 = vpop.permute.xlu0 %796
        %v800 = vadd.f32 %v779, %v795
        %v801 = vadd.f32 %v780, %v797
        %s802 = sld [smem:[#allocation2 + $0x71]]
        %v803 = vstv %s802
        %v804 = vmul.f32 %v803, %v689
        %v805 = vmul.f32 %v803, %v371
        %v806 = vmul.f32 %v803, %v372
        %v810 = vrot.slane %v804, 2
        %v811 = vrot.slane %v805, 2
        %v812 = vsel %vm698, %v810, %v811
        %v813 = vrot.slane %v806, 2
        %v814 = vsel %vm698, %v811, %v813
        %815 = vrot.lane.b32.xlu0 %v812, 127
        %v816 = vpop.permute.xlu0 %815
        %817 = vrot.lane.b32.xlu0 %v814, 127
        %v818 = vpop.permute.xlu0 %817
        %v821 = vadd.f32 %v723, %v816
        %v822 = vadd.f32 %v724, %v818
        %s823 = sld [smem:[#allocation2 + $0x72]]
        %v824 = vstv %s823
        %v825 = vmul.f32 %v824, %v689
        %v826 = vmul.f32 %v824, %v371
        %v827 = vmul.f32 %v824, %v372
        %v831 = vrot.slane %v825, 2
        %v832 = vrot.slane %v826, 2
        %v833 = vsel %vm698, %v831, %v832
        %v834 = vrot.slane %v827, 2
        %v835 = vsel %vm698, %v832, %v834
        %836 = vrot.lane.b32.xlu0 %v833, 127
        %v837 = vpop.permute.xlu0 %836
        %838 = vrot.lane.b32.xlu0 %v835, 127
        %v839 = vpop.permute.xlu0 %838
        %v842 = vadd.f32 %v740, %v837
        %v843 = vadd.f32 %v741, %v839
        %s844 = sld [smem:[#allocation2 + $0x73]]
        %v845 = vstv %s844
        %v846 = vmul.f32 %v845, %v689
        %v847 = vmul.f32 %v845, %v371
        %v848 = vmul.f32 %v845, %v372
        %v852 = vrot.slane %v846, 2
        %v853 = vrot.slane %v847, 2
        %v854 = vsel %vm698, %v852, %v853
        %v855 = vrot.slane %v848, 2
        %v856 = vsel %vm698, %v853, %v855
        %857 = vrot.lane.b32.xlu0 %v854, 127
        %v858 = vpop.permute.xlu0 %857
        %859 = vrot.lane.b32.xlu0 %v856, 127
        %v860 = vpop.permute.xlu0 %859
        %v863 = vadd.f32 %v757, %v858
        %v864 = vadd.f32 %v758, %v860
        %865 = vrot.lane.b32.xlu0 %v760, 1
        %v866 = vpop.permute.xlu0 %865
        %867 = vrot.lane.b32.xlu0 %v762, 1
        %v868 = vpop.permute.xlu0 %867
        %869 = vrot.lane.b32.xlu0 %v761, 1
        %v870 = vpop.permute.xlu0 %869
        %v874 = vmul.f32 %v689, %v866
        %v875 = vmul.f32 %v371, %v868
        %v876 = vmul.f32 %v372, %v870
        %v880 = vrot.slane %v874, 2
        %v881 = vrot.slane %v875, 2
        %v882 = vsel %vm698, %v880, %v881
        %v883 = vrot.slane %v876, 2
        %v884 = vsel %vm698, %v881, %v883
        %885 = vrot.lane.b32.xlu0 %v882, 127
        %v886 = vpop.permute.xlu0 %885
        %887 = vrot.lane.b32.xlu0 %v884, 127
        %v888 = vpop.permute.xlu0 %887
        %v891 = vadd.f32 %v800, %v886
        %v892 = vadd.f32 %v801, %v888
        %s893 = sld [smem:[#allocation2 + $0x80]]
        %v894 = vstv %s893
        %v895 = vmul.f32 %v894, %v689
        %v896 = vmul.f32 %v894, %v371
        %v897 = vmul.f32 %v894, %v372
        %v901 = vrot.slane %v895, 2
        %v902 = vrot.slane %v896, 2
        %v903 = vsel %vm698, %v901, %v902
        %v904 = vrot.slane %v897, 2
        %v905 = vsel %vm698, %v902, %v904
        %906 = vrot.lane.b32.xlu0 %v903, 126
        %v907 = vpop.permute.xlu0 %906
        %908 = vrot.lane.b32.xlu0 %v905, 126
        %v909 = vpop.permute.xlu0 %908
        %v912 = vadd.f32 %v891, %v907
        %v913 = vadd.f32 %v892, %v909
        %s914 = sld [smem:[#allocation2 + $0x81]]
        %v915 = vstv %s914
        %v916 = vmul.f32 %v915, %v689
        %v917 = vmul.f32 %v915, %v371
        %v918 = vmul.f32 %v915, %v372
        %v922 = vrot.slane %v916, 2
        %v923 = vrot.slane %v917, 2
        %v924 = vsel %vm698, %v922, %v923
        %v925 = vrot.slane %v918, 2
        %v926 = vsel %vm698, %v923, %v925
        %927 = vrot.lane.b32.xlu0 %v924, 126
        %v928 = vpop.permute.xlu0 %927
        %929 = vrot.lane.b32.xlu0 %v926, 126
        %v930 = vpop.permute.xlu0 %929
        %v933 = vadd.f32 %v821, %v928
        %v934 = vadd.f32 %v822, %v930
        %s935 = sld [smem:[#allocation2 + $0x82]]
        %v936 = vstv %s935
        %v937 = vmul.f32 %v936, %v689
        %v938 = vmul.f32 %v936, %v371
        %v939 = vmul.f32 %v936, %v372
        %v943 = vrot.slane %v937, 2
        %v944 = vrot.slane %v938, 2
        %v945 = vsel %vm698, %v943, %v944
        %v946 = vrot.slane %v939, 2
        %v947 = vsel %vm698, %v944, %v946
        %948 = vrot.lane.b32.xlu0 %v945, 126
        %v949 = vpop.permute.xlu0 %948
        %950 = vrot.lane.b32.xlu0 %v947, 126
        %v951 = vpop.permute.xlu0 %950
        %v954 = vadd.f32 %v842, %v949
        %v955 = vadd.f32 %v843, %v951
        %s956 = sld [smem:[#allocation2 + $0x83]]
        %v957 = vstv %s956
        %v958 = vmul.f32 %v957, %v689
        %v959 = vmul.f32 %v957, %v371
        %v960 = vmul.f32 %v957, %v372
        %v964 = vrot.slane %v958, 2
        %v965 = vrot.slane %v959, 2
        %v966 = vsel %vm698, %v964, %v965
        %v967 = vrot.slane %v960, 2
        %v968 = vsel %vm698, %v965, %v967
        %969 = vrot.lane.b32.xlu0 %v966, 126
        %v970 = vpop.permute.xlu0 %969
        %971 = vrot.lane.b32.xlu0 %v968, 126
        %v972 = vpop.permute.xlu0 %971
        %v975 = vadd.f32 %v863, %v970
        %v976 = vadd.f32 %v864, %v972
        %977 = vrot.lane.b32.xlu0 %v760, 2
        %v978 = vpop.permute.xlu0 %977
        %979 = vrot.lane.b32.xlu0 %v762, 2
        %v980 = vpop.permute.xlu0 %979
        %981 = vrot.lane.b32.xlu0 %v761, 2
        %v982 = vpop.permute.xlu0 %981
        %v986 = vmul.f32 %v689, %v978
        %v987 = vmul.f32 %v371, %v980
        %v988 = vmul.f32 %v372, %v982
        %v992 = vrot.slane %v986, 2
        %v993 = vrot.slane %v987, 2
        %v994 = vsel %vm698, %v992, %v993
        %v995 = vrot.slane %v988, 2
        %v996 = vsel %vm698, %v993, %v995
        %997 = vrot.lane.b32.xlu0 %v994, 126
        %v998 = vpop.permute.xlu0 %997
        %999 = vrot.lane.b32.xlu0 %v996, 126
        %v1000 = vpop.permute.xlu0 %999
        %v1003 = vadd.f32 %v912, %v998
        %v1004 = vadd.f32 %v913, %v1000
        %s1005 = scalar_lea.vmem %s182, 12
        %v1006 = vld [vmem:[%s1005] sm:$0xf]
        %v1007 = vld [vmem:[%s1005 + $0x4] sm:$0xf]
        %v1008 = vunpack.c.l.bf16 %v1006
        %v1009 = vunpack.c.l.bf16 %v1007
        %s1010 = sld [smem:[#allocation2 + $0x4]]
        %v1011 = vstv %s1010
        %v1012 = vmul.f32 %v1011, %v1008
        %v1013 = vmul.f32 %v1011, %v1009
        %v1014 = vadd.f32 %v1003, %v1012
        %v1015 = vadd.f32 %v1004, %v1013
        %s1016 = sld [smem:[#allocation2 + $0x5]]
        %v1017 = vstv %s1016
        %v1018 = vmul.f32 %v1017, %v1008
        %v1019 = vmul.f32 %v1017, %v1009
        %v1020 = vadd.f32 %v933, %v1018
        %v1021 = vadd.f32 %v934, %v1019
        %s1022 = sld [smem:[#allocation2 + $0x6]]
        %v1023 = vstv %s1022
        %v1024 = vmul.f32 %v1023, %v1008
        %v1025 = vmul.f32 %v1023, %v1009
        %v1026 = vadd.f32 %v954, %v1024
        %v1027 = vadd.f32 %v955, %v1025
        %s1028 = sld [smem:[#allocation2 + $0x7]]
        %v1029 = vstv %s1028
        %v1030 = vmul.f32 %v1029, %v1008
        %v1031 = vmul.f32 %v1029, %v1009
        %v1032 = vadd.f32 %v975, %v1030
        %v1033 = vadd.f32 %v976, %v1031
        %v1034 = vmul.f32 %v1008, %v183
        %v1035 = vmul.f32 %v1009, %v184
        %v1036 = vadd.f32 %v1020, %v1034
        %v1037 = vadd.f32 %v1021, %v1035
        %s1038 = sld [smem:[#allocation2 + $0x14]]
        %v1039 = vstv %s1038
        %v1040 = vmul.f32 %v1039, %v1008
        %v1041 = vmul.f32 %v1039, %v1009
        %1044 = vrot.lane.b32.xlu0 %v1040, 127
        %v1045 = vpop.permute.xlu0 %1044
        %1046 = vrot.lane.b32.xlu0 %v1041, 127
        %v1047 = vpop.permute.xlu0 %1046
        %v1050 = vadd.f32 %v1014, %v1045
        %v1051 = vadd.f32 %v1015, %v1047
        %s1052 = sld [smem:[#allocation2 + $0x15]]
        %v1053 = vstv %s1052
        %v1054 = vmul.f32 %v1053, %v1008
        %v1055 = vmul.f32 %v1053, %v1009
        %1058 = vrot.lane.b32.xlu0 %v1054, 127
        %v1059 = vpop.permute.xlu0 %1058
        %1060 = vrot.lane.b32.xlu0 %v1055, 127
        %v1061 = vpop.permute.xlu0 %1060
        %v1064 = vadd.f32 %v1036, %v1059
        %v1065 = vadd.f32 %v1037, %v1061
        %s1066 = sld [smem:[#allocation2 + $0x16]]
        %v1067 = vstv %s1066
        %v1068 = vmul.f32 %v1067, %v1008
        %v1069 = vmul.f32 %v1067, %v1009
        %1072 = vrot.lane.b32.xlu0 %v1068, 127
        %v1073 = vpop.permute.xlu0 %1072
        %1074 = vrot.lane.b32.xlu0 %v1069, 127
        %v1075 = vpop.permute.xlu0 %1074
        %v1078 = vadd.f32 %v1026, %v1073
        %v1079 = vadd.f32 %v1027, %v1075
        %s1080 = sld [smem:[#allocation2 + $0x17]]
        %v1081 = vstv %s1080
        %v1082 = vmul.f32 %v1081, %v1008
        %v1083 = vmul.f32 %v1081, %v1009
        %1086 = vrot.lane.b32.xlu0 %v1082, 127
        %v1087 = vpop.permute.xlu0 %1086
        %1088 = vrot.lane.b32.xlu0 %v1083, 127
        %v1089 = vpop.permute.xlu0 %1088
        %v1092 = vadd.f32 %v1032, %v1087
        %v1093 = vadd.f32 %v1033, %v1089
        %v1094 = vmul.f32 %v1008, %v276
        %v1095 = vmul.f32 %v1009, %v278
        %1098 = vrot.lane.b32.xlu0 %v1094, 127
        %v1099 = vpop.permute.xlu0 %1098
        %1100 = vrot.lane.b32.xlu0 %v1095, 127
        %v1101 = vpop.permute.xlu0 %1100
        %v1104 = vadd.f32 %v1064, %v1099
        %v1105 = vadd.f32 %v1065, %v1101
        %s1106 = sld [smem:[#allocation2 + $0x24]]
        %v1107 = vstv %s1106
        %v1108 = vmul.f32 %v1107, %v1008
        %v1109 = vmul.f32 %v1107, %v1009
        %1112 = vrot.lane.b32.xlu0 %v1108, 126
        %v1113 = vpop.permute.xlu0 %1112
        %1114 = vrot.lane.b32.xlu0 %v1109, 126
        %v1115 = vpop.permute.xlu0 %1114
        %v1118 = vadd.f32 %v1050, %v1113
        %v1119 = vadd.f32 %v1051, %v1115
        %s1120 = sld [smem:[#allocation2 + $0x25]]
        %v1121 = vstv %s1120
        %v1122 = vmul.f32 %v1121, %v1008
        %v1123 = vmul.f32 %v1121, %v1009
        %1126 = vrot.lane.b32.xlu0 %v1122, 126
        %v1127 = vpop.permute.xlu0 %1126
        %1128 = vrot.lane.b32.xlu0 %v1123, 126
        %v1129 = vpop.permute.xlu0 %1128
        %v1132 = vadd.f32 %v1104, %v1127
        %v1133 = vadd.f32 %v1105, %v1129
        %s1134 = sld [smem:[#allocation2 + $0x26]]
        %v1135 = vstv %s1134
        %v1136 = vmul.f32 %v1135, %v1008
        %v1137 = vmul.f32 %v1135, %v1009
        %1140 = vrot.lane.b32.xlu0 %v1136, 126
        %v1141 = vpop.permute.xlu0 %1140
        %1142 = vrot.lane.b32.xlu0 %v1137, 126
        %v1143 = vpop.permute.xlu0 %1142
        %v1146 = vadd.f32 %v1078, %v1141
        %v1147 = vadd.f32 %v1079, %v1143
        %s1148 = sld [smem:[#allocation2 + $0x27]]
        %v1149 = vstv %s1148
        %v1150 = vmul.f32 %v1149, %v1008
        %v1151 = vmul.f32 %v1149, %v1009
        %1154 = vrot.lane.b32.xlu0 %v1150, 126
        %v1155 = vpop.permute.xlu0 %1154
        %1156 = vrot.lane.b32.xlu0 %v1151, 126
        %v1157 = vpop.permute.xlu0 %1156
        %v1160 = vadd.f32 %v1092, %v1155
        %v1161 = vadd.f32 %v1093, %v1157
        %v1162 = vmul.f32 %v1008, %v350
        %v1163 = vmul.f32 %v1009, %v352
        %1166 = vrot.lane.b32.xlu0 %v1162, 126
        %v1167 = vpop.permute.xlu0 %1166
        %1168 = vrot.lane.b32.xlu0 %v1163, 126
        %v1169 = vpop.permute.xlu0 %1168
        %v1172 = vadd.f32 %v1132, %v1167
        %v1173 = vadd.f32 %v1133, %v1169
        %v1174 = vld [vmem:[%s1005] sm:$0xf]
        %v1175 = vld [vmem:[%s1005 + $0x4] sm:$0xf]
        %v1176 = vld [vmem:[%s1005 + $0x8] sm:$0x1]
        %v1177 = vunpack.c.l.bf16 %v1174
        %v1178 = vunpack.c.l.bf16 %v1175
        %v1179 = vunpack.c.l.bf16 %v1176
        %s1180 = sld [smem:[#allocation2 + $0x34]]
        %v1181 = vstv %s1180
        %v1182 = vmul.f32 %v1181, %v1177
        %v1183 = vmul.f32 %v1181, %v1178
        %v1184 = vmul.f32 %v1181, %v1179
        %v1188 = vrot.slane %v1182, 1
        %v1189 = vrot.slane %v1183, 1
        %v1190 = vsel %vm381, %v1188, %v1189
        %v1191 = vrot.slane %v1184, 1
        %v1192 = vsel %vm381, %v1189, %v1191
        %v1195 = vadd.f32 %v1118, %v1190
        %v1196 = vadd.f32 %v1119, %v1192
        %s1197 = sld [smem:[#allocation2 + $0x35]]
        %v1198 = vstv %s1197
        %v1199 = vmul.f32 %v1198, %v1177
        %v1200 = vmul.f32 %v1198, %v1178
        %v1201 = vmul.f32 %v1198, %v1179
        %v1205 = vrot.slane %v1199, 1
        %v1206 = vrot.slane %v1200, 1
        %v1207 = vsel %vm381, %v1205, %v1206
        %v1208 = vrot.slane %v1201, 1
        %v1209 = vsel %vm381, %v1206, %v1208
        %v1212 = vadd.f32 %v1172, %v1207
        %v1213 = vadd.f32 %v1173, %v1209
        %s1214 = sld [smem:[#allocation2 + $0x36]]
        %v1215 = vstv %s1214
        %v1216 = vmul.f32 %v1215, %v1177
        %v1217 = vmul.f32 %v1215, %v1178
        %v1218 = vmul.f32 %v1215, %v1179
        %v1222 = vrot.slane %v1216, 1
        %v1223 = vrot.slane %v1217, 1
        %v1224 = vsel %vm381, %v1222, %v1223
        %v1225 = vrot.slane %v1218, 1
        %v1226 = vsel %vm381, %v1223, %v1225
        %v1229 = vadd.f32 %v1146, %v1224
        %v1230 = vadd.f32 %v1147, %v1226
        %s1231 = sld [smem:[#allocation2 + $0x37]]
        %v1232 = vstv %s1231
        %v1233 = vmul.f32 %v1232, %v1177
        %v1234 = vmul.f32 %v1232, %v1178
        %v1235 = vmul.f32 %v1232, %v1179
        %v1239 = vrot.slane %v1233, 1
        %v1240 = vrot.slane %v1234, 1
        %v1241 = vsel %vm381, %v1239, %v1240
        %v1242 = vrot.slane %v1235, 1
        %v1243 = vsel %vm381, %v1240, %v1242
        %v1246 = vadd.f32 %v1160, %v1241
        %v1247 = vadd.f32 %v1161, %v1243
        %v1248 = vmul.f32 %v1177, %v443
        %v1249 = vmul.f32 %v1178, %v445
        %v1250 = vmul.f32 %v1179, %v444
        %v1254 = vrot.slane %v1248, 1
        %v1255 = vrot.slane %v1249, 1
        %v1256 = vsel %vm381, %v1254, %v1255
        %v1257 = vrot.slane %v1250, 1
        %v1258 = vsel %vm381, %v1255, %v1257
        %v1261 = vadd.f32 %v1212, %v1256
        %v1262 = vadd.f32 %v1213, %v1258
        %s1263 = sld [smem:[#allocation2 + $0x44]]
        %v1264 = vstv %s1263
        %v1265 = vmul.f32 %v1264, %v1177
        %v1266 = vmul.f32 %v1264, %v1178
        %v1267 = vmul.f32 %v1264, %v1179
        %v1271 = vrot.slane %v1265, 1
        %v1272 = vrot.slane %v1266, 1
        %v1273 = vsel %vm381, %v1271, %v1272
        %v1274 = vrot.slane %v1267, 1
        %v1275 = vsel %vm381, %v1272, %v1274
        %1276 = vrot.lane.b32.xlu0 %v1273, 127
        %v1277 = vpop.permute.xlu0 %1276
        %1278 = vrot.lane.b32.xlu0 %v1275, 127
        %v1279 = vpop.permute.xlu0 %1278
        %v1282 = vadd.f32 %v1195, %v1277
        %v1283 = vadd.f32 %v1196, %v1279
        %s1284 = sld [smem:[#allocation2 + $0x45]]
        %v1285 = vstv %s1284
        %v1286 = vmul.f32 %v1285, %v1177
        %v1287 = vmul.f32 %v1285, %v1178
        %v1288 = vmul.f32 %v1285, %v1179
        %v1292 = vrot.slane %v1286, 1
        %v1293 = vrot.slane %v1287, 1
        %v1294 = vsel %vm381, %v1292, %v1293
        %v1295 = vrot.slane %v1288, 1
        %v1296 = vsel %vm381, %v1293, %v1295
        %1297 = vrot.lane.b32.xlu0 %v1294, 127
        %v1298 = vpop.permute.xlu0 %1297
        %1299 = vrot.lane.b32.xlu0 %v1296, 127
        %v1300 = vpop.permute.xlu0 %1299
        %v1303 = vadd.f32 %v1261, %v1298
        %v1304 = vadd.f32 %v1262, %v1300
        %s1305 = sld [smem:[#allocation2 + $0x46]]
        %v1306 = vstv %s1305
        %v1307 = vmul.f32 %v1306, %v1177
        %v1308 = vmul.f32 %v1306, %v1178
        %v1309 = vmul.f32 %v1306, %v1179
        %v1313 = vrot.slane %v1307, 1
        %v1314 = vrot.slane %v1308, 1
        %v1315 = vsel %vm381, %v1313, %v1314
        %v1316 = vrot.slane %v1309, 1
        %v1317 = vsel %vm381, %v1314, %v1316
        %1318 = vrot.lane.b32.xlu0 %v1315, 127
        %v1319 = vpop.permute.xlu0 %1318
        %1320 = vrot.lane.b32.xlu0 %v1317, 127
        %v1321 = vpop.permute.xlu0 %1320
        %v1324 = vadd.f32 %v1229, %v1319
        %v1325 = vadd.f32 %v1230, %v1321
        %s1326 = sld [smem:[#allocation2 + $0x47]]
        %v1327 = vstv %s1326
        %v1328 = vmul.f32 %v1327, %v1177
        %v1329 = vmul.f32 %v1327, %v1178
        %v1330 = vmul.f32 %v1327, %v1179
        %v1334 = vrot.slane %v1328, 1
        %v1335 = vrot.slane %v1329, 1
        %v1336 = vsel %vm381, %v1334, %v1335
        %v1337 = vrot.slane %v1330, 1
        %v1338 = vsel %vm381, %v1335, %v1337
        %1339 = vrot.lane.b32.xlu0 %v1336, 127
        %v1340 = vpop.permute.xlu0 %1339
        %1341 = vrot.lane.b32.xlu0 %v1338, 127
        %v1342 = vpop.permute.xlu0 %1341
        %v1345 = vadd.f32 %v1246, %v1340
        %v1346 = vadd.f32 %v1247, %v1342
        %v1347 = vmul.f32 %v1177, %v549
        %v1348 = vmul.f32 %v1178, %v551
        %v1349 = vmul.f32 %v1179, %v553
        %v1353 = vrot.slane %v1347, 1
        %v1354 = vrot.slane %v1348, 1
        %v1355 = vsel %vm381, %v1353, %v1354
        %v1356 = vrot.slane %v1349, 1
        %v1357 = vsel %vm381, %v1354, %v1356
        %1358 = vrot.lane.b32.xlu0 %v1355, 127
        %v1359 = vpop.permute.xlu0 %1358
        %1360 = vrot.lane.b32.xlu0 %v1357, 127
        %v1361 = vpop.permute.xlu0 %1360
        %v1364 = vadd.f32 %v1303, %v1359
        %v1365 = vadd.f32 %v1304, %v1361
        %s1366 = sld [smem:[#allocation2 + $0x54]]
        %v1367 = vstv %s1366
        %v1368 = vmul.f32 %v1367, %v1177
        %v1369 = vmul.f32 %v1367, %v1178
        %v1370 = vmul.f32 %v1367, %v1179
        %v1374 = vrot.slane %v1368, 1
        %v1375 = vrot.slane %v1369, 1
        %v1376 = vsel %vm381, %v1374, %v1375
        %v1377 = vrot.slane %v1370, 1
        %v1378 = vsel %vm381, %v1375, %v1377
        %1379 = vrot.lane.b32.xlu0 %v1376, 126
        %v1380 = vpop.permute.xlu0 %1379
        %1381 = vrot.lane.b32.xlu0 %v1378, 126
        %v1382 = vpop.permute.xlu0 %1381
        %v1385 = vadd.f32 %v1282, %v1380
        %v1386 = vadd.f32 %v1283, %v1382
        %s1387 = sld [smem:[#allocation2 + $0x55]]
        %v1388 = vstv %s1387
        %v1389 = vmul.f32 %v1388, %v1177
        %v1390 = vmul.f32 %v1388, %v1178
        %v1391 = vmul.f32 %v1388, %v1179
        %v1395 = vrot.slane %v1389, 1
        %v1396 = vrot.slane %v1390, 1
        %v1397 = vsel %vm381, %v1395, %v1396
        %v1398 = vrot.slane %v1391, 1
        %v1399 = vsel %vm381, %v1396, %v1398
        %1400 = vrot.lane.b32.xlu0 %v1397, 126
        %v1401 = vpop.permute.xlu0 %1400
        %1402 = vrot.lane.b32.xlu0 %v1399, 126
        %v1403 = vpop.permute.xlu0 %1402
        %v1406 = vadd.f32 %v1364, %v1401
        %v1407 = vadd.f32 %v1365, %v1403
        %s1408 = sld [smem:[#allocation2 + $0x56]]
        %v1409 = vstv %s1408
        %v1410 = vmul.f32 %v1409, %v1177
        %v1411 = vmul.f32 %v1409, %v1178
        %v1412 = vmul.f32 %v1409, %v1179
        %v1416 = vrot.slane %v1410, 1
        %v1417 = vrot.slane %v1411, 1
        %v1418 = vsel %vm381, %v1416, %v1417
        %v1419 = vrot.slane %v1412, 1
        %v1420 = vsel %vm381, %v1417, %v1419
        %1421 = vrot.lane.b32.xlu0 %v1418, 126
        %v1422 = vpop.permute.xlu0 %1421
        %1423 = vrot.lane.b32.xlu0 %v1420, 126
        %v1424 = vpop.permute.xlu0 %1423
        %v1427 = vadd.f32 %v1324, %v1422
        %v1428 = vadd.f32 %v1325, %v1424
        %s1429 = sld [smem:[#allocation2 + $0x57]]
        %v1430 = vstv %s1429
        %v1431 = vmul.f32 %v1430, %v1177
        %v1432 = vmul.f32 %v1430, %v1178
        %v1433 = vmul.f32 %v1430, %v1179
        %v1437 = vrot.slane %v1431, 1
        %v1438 = vrot.slane %v1432, 1
        %v1439 = vsel %vm381, %v1437, %v1438
        %v1440 = vrot.slane %v1433, 1
        %v1441 = vsel %vm381, %v1438, %v1440
        %1442 = vrot.lane.b32.xlu0 %v1439, 126
        %v1443 = vpop.permute.xlu0 %1442
        %1444 = vrot.lane.b32.xlu0 %v1441, 126
        %v1445 = vpop.permute.xlu0 %1444
        %v1448 = vadd.f32 %v1345, %v1443
        %v1449 = vadd.f32 %v1346, %v1445
        %v1450 = vmul.f32 %v1177, %v661
        %v1451 = vmul.f32 %v1178, %v663
        %v1452 = vmul.f32 %v1179, %v665
        %v1456 = vrot.slane %v1450, 1
        %v1457 = vrot.slane %v1451, 1
        %v1458 = vsel %vm381, %v1456, %v1457
        %v1459 = vrot.slane %v1452, 1
        %v1460 = vsel %vm381, %v1457, %v1459
        %1461 = vrot.lane.b32.xlu0 %v1458, 126
        %v1462 = vpop.permute.xlu0 %1461
        %1463 = vrot.lane.b32.xlu0 %v1460, 126
        %v1464 = vpop.permute.xlu0 %1463
        %v1467 = vadd.f32 %v1406, %v1462
        %v1468 = vadd.f32 %v1407, %v1464
        %v1469 = vld [vmem:[%s1005] sm:$0xe]
        %v1470 = vunpack.c.l.bf16 %v1469
        %s1471 = sld [smem:[#allocation2 + $0x64]]
        %v1472 = vstv %s1471
        %v1473 = vmul.f32 %v1472, %v1470
        %v1474 = vmul.f32 %v1472, %v1178
        %v1475 = vmul.f32 %v1472, %v1179
        %v1479 = vrot.slane %v1473, 2
        %v1480 = vrot.slane %v1474, 2
        %v1481 = vsel %vm698, %v1479, %v1480
        %v1482 = vrot.slane %v1475, 2
        %v1483 = vsel %vm698, %v1480, %v1482
        %v1486 = vadd.f32 %v1385, %v1481
        %v1487 = vadd.f32 %v1386, %v1483
        %s1488 = sld [smem:[#allocation2 + $0x65]]
        %v1489 = vstv %s1488
        %v1490 = vmul.f32 %v1489, %v1470
        %v1491 = vmul.f32 %v1489, %v1178
        %v1492 = vmul.f32 %v1489, %v1179
        %v1496 = vrot.slane %v1490, 2
        %v1497 = vrot.slane %v1491, 2
        %v1498 = vsel %vm698, %v1496, %v1497
        %v1499 = vrot.slane %v1492, 2
        %v1500 = vsel %vm698, %v1497, %v1499
        %v1503 = vadd.f32 %v1467, %v1498
        %v1504 = vadd.f32 %v1468, %v1500
        %s1505 = sld [smem:[#allocation2 + $0x66]]
        %v1506 = vstv %s1505
        %v1507 = vmul.f32 %v1506, %v1470
        %v1508 = vmul.f32 %v1506, %v1178
        %v1509 = vmul.f32 %v1506, %v1179
        %v1513 = vrot.slane %v1507, 2
        %v1514 = vrot.slane %v1508, 2
        %v1515 = vsel %vm698, %v1513, %v1514
        %v1516 = vrot.slane %v1509, 2
        %v1517 = vsel %vm698, %v1514, %v1516
        %v1520 = vadd.f32 %v1427, %v1515
        %v1521 = vadd.f32 %v1428, %v1517
        %s1522 = sld [smem:[#allocation2 + $0x67]]
        %v1523 = vstv %s1522
        %v1524 = vmul.f32 %v1523, %v1470
        %v1525 = vmul.f32 %v1523, %v1178
        %v1526 = vmul.f32 %v1523, %v1179
        %v1530 = vrot.slane %v1524, 2
        %v1531 = vrot.slane %v1525, 2
        %v1532 = vsel %vm698, %v1530, %v1531
        %v1533 = vrot.slane %v1526, 2
        %v1534 = vsel %vm698, %v1531, %v1533
        %v1537 = vadd.f32 %v1448, %v1532
        %v1538 = vadd.f32 %v1449, %v1534
        %v1539 = vmul.f32 %v1470, %v760
        %v1540 = vmul.f32 %v1178, %v762
        %v1541 = vmul.f32 %v1179, %v761
        %v1545 = vrot.slane %v1539, 2
        %v1546 = vrot.slane %v1540, 2
        %v1547 = vsel %vm698, %v1545, %v1546
        %v1548 = vrot.slane %v1541, 2
        %v1549 = vsel %vm698, %v1546, %v1548
        %v1552 = vadd.f32 %v1503, %v1547
        %v1553 = vadd.f32 %v1504, %v1549
        %s1554 = sld [smem:[#allocation2 + $0x74]]
        %v1555 = vstv %s1554
        %v1556 = vmul.f32 %v1555, %v1470
        %v1557 = vmul.f32 %v1555, %v1178
        %v1558 = vmul.f32 %v1555, %v1179
        %v1562 = vrot.slane %v1556, 2
        %v1563 = vrot.slane %v1557, 2
        %v1564 = vsel %vm698, %v1562, %v1563
        %v1565 = vrot.slane %v1558, 2
        %v1566 = vsel %vm698, %v1563, %v1565
        %1567 = vrot.lane.b32.xlu0 %v1564, 127
        %v1568 = vpop.permute.xlu0 %1567
        %1569 = vrot.lane.b32.xlu0 %v1566, 127
        %v1570 = vpop.permute.xlu0 %1569
        %v1573 = vadd.f32 %v1486, %v1568
        %v1574 = vadd.f32 %v1487, %v1570
        %s1575 = sld [smem:[#allocation2 + $0x75]]
        %v1576 = vstv %s1575
        %v1577 = vmul.f32 %v1576, %v1470
        %v1578 = vmul.f32 %v1576, %v1178
        %v1579 = vmul.f32 %v1576, %v1179
        %v1583 = vrot.slane %v1577, 2
        %v1584 = vrot.slane %v1578, 2
        %v1585 = vsel %vm698, %v1583, %v1584
        %v1586 = vrot.slane %v1579, 2
        %v1587 = vsel %vm698, %v1584, %v1586
        %1588 = vrot.lane.b32.xlu0 %v1585, 127
        %v1589 = vpop.permute.xlu0 %1588
        %1590 = vrot.lane.b32.xlu0 %v1587, 127
        %v1591 = vpop.permute.xlu0 %1590
        %v1594 = vadd.f32 %v1552, %v1589
        %v1595 = vadd.f32 %v1553, %v1591
        %s1596 = sld [smem:[#allocation2 + $0x76]]
        %v1597 = vstv %s1596
        %v1598 = vmul.f32 %v1597, %v1470
        %v1599 = vmul.f32 %v1597, %v1178
        %v1600 = vmul.f32 %v1597, %v1179
        %v1604 = vrot.slane %v1598, 2
        %v1605 = vrot.slane %v1599, 2
        %v1606 = vsel %vm698, %v1604, %v1605
        %v1607 = vrot.slane %v1600, 2
        %v1608 = vsel %vm698, %v1605, %v1607
        %1609 = vrot.lane.b32.xlu0 %v1606, 127
        %v1610 = vpop.permute.xlu0 %1609
        %1611 = vrot.lane.b32.xlu0 %v1608, 127
        %v1612 = vpop.permute.xlu0 %1611
        %v1615 = vadd.f32 %v1520, %v1610
        %v1616 = vadd.f32 %v1521, %v1612
        %s1617 = sld [smem:[#allocation2 + $0x77]]
        %v1618 = vstv %s1617
        %v1619 = vmul.f32 %v1618, %v1470
        %v1620 = vmul.f32 %v1618, %v1178
        %v1621 = vmul.f32 %v1618, %v1179
        %v1625 = vrot.slane %v1619, 2
        %v1626 = vrot.slane %v1620, 2
        %v1627 = vsel %vm698, %v1625, %v1626
        %v1628 = vrot.slane %v1621, 2
        %v1629 = vsel %vm698, %v1626, %v1628
        %1630 = vrot.lane.b32.xlu0 %v1627, 127
        %v1631 = vpop.permute.xlu0 %1630
        %1632 = vrot.lane.b32.xlu0 %v1629, 127
        %v1633 = vpop.permute.xlu0 %1632
        %v1636 = vadd.f32 %v1537, %v1631
        %v1637 = vadd.f32 %v1538, %v1633
        %v1638 = vmul.f32 %v1470, %v866
        %v1639 = vmul.f32 %v1178, %v868
        %v1640 = vmul.f32 %v1179, %v870
        %v1644 = vrot.slane %v1638, 2
        %v1645 = vrot.slane %v1639, 2
        %v1646 = vsel %vm698, %v1644, %v1645
        %v1647 = vrot.slane %v1640, 2
        %v1648 = vsel %vm698, %v1645, %v1647
        %1649 = vrot.lane.b32.xlu0 %v1646, 127
        %v1650 = vpop.permute.xlu0 %1649
        %1651 = vrot.lane.b32.xlu0 %v1648, 127
        %v1652 = vpop.permute.xlu0 %1651
        %v1655 = vadd.f32 %v1594, %v1650
        %v1656 = vadd.f32 %v1595, %v1652
        %s1657 = sld [smem:[#allocation2 + $0x84]]
        %v1658 = vstv %s1657
        %v1659 = vmul.f32 %v1658, %v1470
        %v1660 = vmul.f32 %v1658, %v1178
        %v1661 = vmul.f32 %v1658, %v1179
        %v1665 = vrot.slane %v1659, 2
        %v1666 = vrot.slane %v1660, 2
        %v1667 = vsel %vm698, %v1665, %v1666
        %v1668 = vrot.slane %v1661, 2
        %v1669 = vsel %vm698, %v1666, %v1668
        %1670 = vrot.lane.b32.xlu0 %v1667, 126
        %v1671 = vpop.permute.xlu0 %1670
        %1672 = vrot.lane.b32.xlu0 %v1669, 126
        %v1673 = vpop.permute.xlu0 %1672
        %v1676 = vadd.f32 %v1573, %v1671
        %v1677 = vadd.f32 %v1574, %v1673
        %s1678 = sld [smem:[#allocation2 + $0x85]]
        %v1679 = vstv %s1678
        %v1680 = vmul.f32 %v1679, %v1470
        %v1681 = vmul.f32 %v1679, %v1178
        %v1682 = vmul.f32 %v1679, %v1179
        %v1686 = vrot.slane %v1680, 2
        %v1687 = vrot.slane %v1681, 2
        %v1688 = vsel %vm698, %v1686, %v1687
        %v1689 = vrot.slane %v1682, 2
        %v1690 = vsel %vm698, %v1687, %v1689
        %1691 = vrot.lane.b32.xlu0 %v1688, 126
        %v1692 = vpop.permute.xlu0 %1691
        %1693 = vrot.lane.b32.xlu0 %v1690, 126
        %v1694 = vpop.permute.xlu0 %1693
        %v1697 = vadd.f32 %v1655, %v1692
        %v1698 = vadd.f32 %v1656, %v1694
        %s1699 = sld [smem:[#allocation2 + $0x86]]
        %v1700 = vstv %s1699
        %v1701 = vmul.f32 %v1700, %v1470
        %v1702 = vmul.f32 %v1700, %v1178
        %v1703 = vmul.f32 %v1700, %v1179
        %v1707 = vrot.slane %v1701, 2
        %v1708 = vrot.slane %v1702, 2
        %v1709 = vsel %vm698, %v1707, %v1708
        %v1710 = vrot.slane %v1703, 2
        %v1711 = vsel %vm698, %v1708, %v1710
        %1712 = vrot.lane.b32.xlu0 %v1709, 126
        %v1713 = vpop.permute.xlu0 %1712
        %1714 = vrot.lane.b32.xlu0 %v1711, 126
        %v1715 = vpop.permute.xlu0 %1714
        %v1718 = vadd.f32 %v1615, %v1713
        %v1719 = vadd.f32 %v1616, %v1715
        %s1720 = sld [smem:[#allocation2 + $0x87]]
        %v1721 = vstv %s1720
        %v1722 = vmul.f32 %v1721, %v1470
        %v1723 = vmul.f32 %v1721, %v1178
        %v1724 = vmul.f32 %v1721, %v1179
        %v1728 = vrot.slane %v1722, 2
        %v1729 = vrot.slane %v1723, 2
        %v1730 = vsel %vm698, %v1728, %v1729
        %v1731 = vrot.slane %v1724, 2
        %v1732 = vsel %vm698, %v1729, %v1731
        %1733 = vrot.lane.b32.xlu0 %v1730, 126
        %v1734 = vpop.permute.xlu0 %1733
        %1735 = vrot.lane.b32.xlu0 %v1732, 126
        %v1736 = vpop.permute.xlu0 %1735
        %v1739 = vadd.f32 %v1636, %v1734
        %v1740 = vadd.f32 %v1637, %v1736
        %v1741 = vmul.f32 %v1470, %v978
        %v1742 = vmul.f32 %v1178, %v980
        %v1743 = vmul.f32 %v1179, %v982
        %v1747 = vrot.slane %v1741, 2
        %v1748 = vrot.slane %v1742, 2
        %v1749 = vsel %vm698, %v1747, %v1748
        %v1750 = vrot.slane %v1743, 2
        %v1751 = vsel %vm698, %v1748, %v1750
        %1752 = vrot.lane.b32.xlu0 %v1749, 126
        %v1753 = vpop.permute.xlu0 %1752
        %1754 = vrot.lane.b32.xlu0 %v1751, 126
        %v1755 = vpop.permute.xlu0 %1754
        %v1758 = vadd.f32 %v1697, %v1753
        %v1759 = vadd.f32 %v1698, %v1755
        %s1760 = scalar_lea.vmem %s182, 24
        %v1761 = vld [vmem:[%s1760] sm:$0xf]
        %v1762 = vld [vmem:[%s1760 + $0x4] sm:$0xf]
        %v1763 = vunpack.c.l.bf16 %v1761
        %v1764 = vunpack.c.l.bf16 %v1762
        %s1765 = sld [smem:[#allocation2 + $0x8]]
        %v1766 = vstv %s1765
        %v1767 = vmul.f32 %v1766, %v1763
        %v1768 = vmul.f32 %v1766, %v1764
        %v1769 = vadd.f32 %v1676, %v1767
        %v1770 = vadd.f32 %v1677, %v1768
        %s1771 = sld [smem:[#allocation2 + $0x9]]
        %v1772 = vstv %s1771
        %v1773 = vmul.f32 %v1772, %v1763
        %v1774 = vmul.f32 %v1772, %v1764
        %v1775 = vadd.f32 %v1758, %v1773
        %v1776 = vadd.f32 %v1759, %v1774
        %s1777 = sld [smem:[#allocation2 + $0xa]]
        %v1778 = vstv %s1777
        %v1779 = vmul.f32 %v1778, %v1763
        %v1780 = vmul.f32 %v1778, %v1764
        %v1781 = vadd.f32 %v1718, %v1779
        %v1782 = vadd.f32 %v1719, %v1780
        %s1783 = sld [smem:[#allocation2 + $0xb]]
        %v1784 = vstv %s1783
        %v1785 = vmul.f32 %v1784, %v1763
        %v1786 = vmul.f32 %v1784, %v1764
        %v1787 = vadd.f32 %v1739, %v1785
        %v1788 = vadd.f32 %v1740, %v1786
        %v1789 = vmul.f32 %v1763, %v183
        %v1790 = vmul.f32 %v1764, %v184
        %v1791 = vadd.f32 %v1781, %v1789
        %v1792 = vadd.f32 %v1782, %v1790
        %s1793 = sld [smem:[#allocation2 + $0x18]]
        %v1794 = vstv %s1793
        %v1795 = vmul.f32 %v1794, %v1763
        %v1796 = vmul.f32 %v1794, %v1764
        %1799 = vrot.lane.b32.xlu0 %v1795, 127
        %v1800 = vpop.permute.xlu0 %1799
        %1801 = vrot.lane.b32.xlu0 %v1796, 127
        %v1802 = vpop.permute.xlu0 %1801
        %v1805 = vadd.f32 %v1769, %v1800
        %v1806 = vadd.f32 %v1770, %v1802
        %s1807 = sld [smem:[#allocation2 + $0x19]]
        %v1808 = vstv %s1807
        %v1809 = vmul.f32 %v1808, %v1763
        %v1810 = vmul.f32 %v1808, %v1764
        %1813 = vrot.lane.b32.xlu0 %v1809, 127
        %v1814 = vpop.permute.xlu0 %1813
        %1815 = vrot.lane.b32.xlu0 %v1810, 127
        %v1816 = vpop.permute.xlu0 %1815
        %v1819 = vadd.f32 %v1775, %v1814
        %v1820 = vadd.f32 %v1776, %v1816
        %s1821 = sld [smem:[#allocation2 + $0x1a]]
        %v1822 = vstv %s1821
        %v1823 = vmul.f32 %v1822, %v1763
        %v1824 = vmul.f32 %v1822, %v1764
        %1827 = vrot.lane.b32.xlu0 %v1823, 127
        %v1828 = vpop.permute.xlu0 %1827
        %1829 = vrot.lane.b32.xlu0 %v1824, 127
        %v1830 = vpop.permute.xlu0 %1829
        %v1833 = vadd.f32 %v1791, %v1828
        %v1834 = vadd.f32 %v1792, %v1830
        %s1835 = sld [smem:[#allocation2 + $0x1b]]
        %v1836 = vstv %s1835
        %v1837 = vmul.f32 %v1836, %v1763
        %v1838 = vmul.f32 %v1836, %v1764
        %1841 = vrot.lane.b32.xlu0 %v1837, 127
        %v1842 = vpop.permute.xlu0 %1841
        %1843 = vrot.lane.b32.xlu0 %v1838, 127
        %v1844 = vpop.permute.xlu0 %1843
        %v1847 = vadd.f32 %v1787, %v1842
        %v1848 = vadd.f32 %v1788, %v1844
        %v1849 = vmul.f32 %v1763, %v276
        %v1850 = vmul.f32 %v1764, %v278
        %1853 = vrot.lane.b32.xlu0 %v1849, 127
        %v1854 = vpop.permute.xlu0 %1853
        %1855 = vrot.lane.b32.xlu0 %v1850, 127
        %v1856 = vpop.permute.xlu0 %1855
        %v1859 = vadd.f32 %v1833, %v1854
        %v1860 = vadd.f32 %v1834, %v1856
        %s1861 = sld [smem:[#allocation2 + $0x28]]
        %v1862 = vstv %s1861
        %v1863 = vmul.f32 %v1862, %v1763
        %v1864 = vmul.f32 %v1862, %v1764
        %1867 = vrot.lane.b32.xlu0 %v1863, 126
        %v1868 = vpop.permute.xlu0 %1867
        %1869 = vrot.lane.b32.xlu0 %v1864, 126
        %v1870 = vpop.permute.xlu0 %1869
        %v1873 = vadd.f32 %v1805, %v1868
        %v1874 = vadd.f32 %v1806, %v1870
        %s1875 = sld [smem:[#allocation2 + $0x29]]
        %v1876 = vstv %s1875
        %v1877 = vmul.f32 %v1876, %v1763
        %v1878 = vmul.f32 %v1876, %v1764
        %1881 = vrot.lane.b32.xlu0 %v1877, 126
        %v1882 = vpop.permute.xlu0 %1881
        %1883 = vrot.lane.b32.xlu0 %v1878, 126
        %v1884 = vpop.permute.xlu0 %1883
        %v1887 = vadd.f32 %v1819, %v1882
        %v1888 = vadd.f32 %v1820, %v1884
        %s1889 = sld [smem:[#allocation2 + $0x2a]]
        %v1890 = vstv %s1889
        %v1891 = vmul.f32 %v1890, %v1763
        %v1892 = vmul.f32 %v1890, %v1764
        %1895 = vrot.lane.b32.xlu0 %v1891, 126
        %v1896 = vpop.permute.xlu0 %1895
        %1897 = vrot.lane.b32.xlu0 %v1892, 126
        %v1898 = vpop.permute.xlu0 %1897
        %v1901 = vadd.f32 %v1859, %v1896
        %v1902 = vadd.f32 %v1860, %v1898
        %s1903 = sld [smem:[#allocation2 + $0x2b]]
        %v1904 = vstv %s1903
        %v1905 = vmul.f32 %v1904, %v1763
        %v1906 = vmul.f32 %v1904, %v1764
        %1909 = vrot.lane.b32.xlu0 %v1905, 126
        %v1910 = vpop.permute.xlu0 %1909
        %1911 = vrot.lane.b32.xlu0 %v1906, 126
        %v1912 = vpop.permute.xlu0 %1911
        %v1915 = vadd.f32 %v1847, %v1910
        %v1916 = vadd.f32 %v1848, %v1912
        %v1917 = vmul.f32 %v1763, %v350
        %v1918 = vmul.f32 %v1764, %v352
        %1921 = vrot.lane.b32.xlu0 %v1917, 126
        %v1922 = vpop.permute.xlu0 %1921
        %1923 = vrot.lane.b32.xlu0 %v1918, 126
        %v1924 = vpop.permute.xlu0 %1923
        %v1927 = vadd.f32 %v1901, %v1922
        %v1928 = vadd.f32 %v1902, %v1924
        %v1929 = vld [vmem:[%s1760] sm:$0xf]
        %v1930 = vld [vmem:[%s1760 + $0x4] sm:$0xf]
        %v1931 = vld [vmem:[%s1760 + $0x8] sm:$0x1]
        %v1932 = vunpack.c.l.bf16 %v1929
        %v1933 = vunpack.c.l.bf16 %v1930
        %v1934 = vunpack.c.l.bf16 %v1931
        %s1935 = sld [smem:[#allocation2 + $0x38]]
        %v1936 = vstv %s1935
        %v1937 = vmul.f32 %v1936, %v1932
        %v1938 = vmul.f32 %v1936, %v1933
        %v1939 = vmul.f32 %v1936, %v1934
        %v1943 = vrot.slane %v1937, 1
        %v1944 = vrot.slane %v1938, 1
        %v1945 = vsel %vm381, %v1943, %v1944
        %v1946 = vrot.slane %v1939, 1
        %v1947 = vsel %vm381, %v1944, %v1946
        %v1950 = vadd.f32 %v1873, %v1945
        %v1951 = vadd.f32 %v1874, %v1947
        %s1952 = sld [smem:[#allocation2 + $0x39]]
        %v1953 = vstv %s1952
        %v1954 = vmul.f32 %v1953, %v1932
        %v1955 = vmul.f32 %v1953, %v1933
        %v1956 = vmul.f32 %v1953, %v1934
        %v1960 = vrot.slane %v1954, 1
        %v1961 = vrot.slane %v1955, 1
        %v1962 = vsel %vm381, %v1960, %v1961
        %v1963 = vrot.slane %v1956, 1
        %v1964 = vsel %vm381, %v1961, %v1963
        %v1967 = vadd.f32 %v1887, %v1962
        %v1968 = vadd.f32 %v1888, %v1964
        %s1969 = sld [smem:[#allocation2 + $0x3a]]
        %v1970 = vstv %s1969
        %v1971 = vmul.f32 %v1970, %v1932
        %v1972 = vmul.f32 %v1970, %v1933
        %v1973 = vmul.f32 %v1970, %v1934
        %v1977 = vrot.slane %v1971, 1
        %v1978 = vrot.slane %v1972, 1
        %v1979 = vsel %vm381, %v1977, %v1978
        %v1980 = vrot.slane %v1973, 1
        %v1981 = vsel %vm381, %v1978, %v1980
        %v1984 = vadd.f32 %v1927, %v1979
        %v1985 = vadd.f32 %v1928, %v1981
        %s1986 = sld [smem:[#allocation2 + $0x3b]]
        %v1987 = vstv %s1986
        %v1988 = vmul.f32 %v1987, %v1932
        %v1989 = vmul.f32 %v1987, %v1933
        %v1990 = vmul.f32 %v1987, %v1934
        %v1994 = vrot.slane %v1988, 1
        %v1995 = vrot.slane %v1989, 1
        %v1996 = vsel %vm381, %v1994, %v1995
        %v1997 = vrot.slane %v1990, 1
        %v1998 = vsel %vm381, %v1995, %v1997
        %v2001 = vadd.f32 %v1915, %v1996
        %v2002 = vadd.f32 %v1916, %v1998
        %v2003 = vmul.f32 %v1932, %v443
        %v2004 = vmul.f32 %v1933, %v445
        %v2005 = vmul.f32 %v1934, %v444
        %v2009 = vrot.slane %v2003, 1
        %v2010 = vrot.slane %v2004, 1
        %v2011 = vsel %vm381, %v2009, %v2010
        %v2012 = vrot.slane %v2005, 1
        %v2013 = vsel %vm381, %v2010, %v2012
        %v2016 = vadd.f32 %v1984, %v2011
        %v2017 = vadd.f32 %v1985, %v2013
        %s2018 = sld [smem:[#allocation2 + $0x48]]
        %v2019 = vstv %s2018
        %v2020 = vmul.f32 %v2019, %v1932
        %v2021 = vmul.f32 %v2019, %v1933
        %v2022 = vmul.f32 %v2019, %v1934
        %v2026 = vrot.slane %v2020, 1
        %v2027 = vrot.slane %v2021, 1
        %v2028 = vsel %vm381, %v2026, %v2027
        %v2029 = vrot.slane %v2022, 1
        %v2030 = vsel %vm381, %v2027, %v2029
        %2031 = vrot.lane.b32.xlu0 %v2028, 127
        %v2032 = vpop.permute.xlu0 %2031
        %2033 = vrot.lane.b32.xlu0 %v2030, 127
        %v2034 = vpop.permute.xlu0 %2033
        %v2037 = vadd.f32 %v1950, %v2032
        %v2038 = vadd.f32 %v1951, %v2034
        %s2039 = sld [smem:[#allocation2 + $0x49]]
        %v2040 = vstv %s2039
        %v2041 = vmul.f32 %v2040, %v1932
        %v2042 = vmul.f32 %v2040, %v1933
        %v2043 = vmul.f32 %v2040, %v1934
        %v2047 = vrot.slane %v2041, 1
        %v2048 = vrot.slane %v2042, 1
        %v2049 = vsel %vm381, %v2047, %v2048
        %v2050 = vrot.slane %v2043, 1
        %v2051 = vsel %vm381, %v2048, %v2050
        %2052 = vrot.lane.b32.xlu0 %v2049, 127
        %v2053 = vpop.permute.xlu0 %2052
        %2054 = vrot.lane.b32.xlu0 %v2051, 127
        %v2055 = vpop.permute.xlu0 %2054
        %v2058 = vadd.f32 %v1967, %v2053
        %v2059 = vadd.f32 %v1968, %v2055
        %s2060 = sld [smem:[#allocation2 + $0x4a]]
        %v2061 = vstv %s2060
        %v2062 = vmul.f32 %v2061, %v1932
        %v2063 = vmul.f32 %v2061, %v1933
        %v2064 = vmul.f32 %v2061, %v1934
        %v2068 = vrot.slane %v2062, 1
        %v2069 = vrot.slane %v2063, 1
        %v2070 = vsel %vm381, %v2068, %v2069
        %v2071 = vrot.slane %v2064, 1
        %v2072 = vsel %vm381, %v2069, %v2071
        %2073 = vrot.lane.b32.xlu0 %v2070, 127
        %v2074 = vpop.permute.xlu0 %2073
        %2075 = vrot.lane.b32.xlu0 %v2072, 127
        %v2076 = vpop.permute.xlu0 %2075
        %v2079 = vadd.f32 %v2016, %v2074
        %v2080 = vadd.f32 %v2017, %v2076
        %s2081 = sld [smem:[#allocation2 + $0x4b]]
        %v2082 = vstv %s2081
        %v2083 = vmul.f32 %v2082, %v1932
        %v2084 = vmul.f32 %v2082, %v1933
        %v2085 = vmul.f32 %v2082, %v1934
        %v2089 = vrot.slane %v2083, 1
        %v2090 = vrot.slane %v2084, 1
        %v2091 = vsel %vm381, %v2089, %v2090
        %v2092 = vrot.slane %v2085, 1
        %v2093 = vsel %vm381, %v2090, %v2092
        %2094 = vrot.lane.b32.xlu0 %v2091, 127
        %v2095 = vpop.permute.xlu0 %2094
        %2096 = vrot.lane.b32.xlu0 %v2093, 127
        %v2097 = vpop.permute.xlu0 %2096
        %v2100 = vadd.f32 %v2001, %v2095
        %v2101 = vadd.f32 %v2002, %v2097
        %v2102 = vmul.f32 %v1932, %v549
        %v2103 = vmul.f32 %v1933, %v551
        %v2104 = vmul.f32 %v1934, %v553
        %v2108 = vrot.slane %v2102, 1
        %v2109 = vrot.slane %v2103, 1
        %v2110 = vsel %vm381, %v2108, %v2109
        %v2111 = vrot.slane %v2104, 1
        %v2112 = vsel %vm381, %v2109, %v2111
        %2113 = vrot.lane.b32.xlu0 %v2110, 127
        %v2114 = vpop.permute.xlu0 %2113
        %2115 = vrot.lane.b32.xlu0 %v2112, 127
        %v2116 = vpop.permute.xlu0 %2115
        %v2119 = vadd.f32 %v2079, %v2114
        %v2120 = vadd.f32 %v2080, %v2116
        %s2121 = sld [smem:[#allocation2 + $0x58]]
        %v2122 = vstv %s2121
        %v2123 = vmul.f32 %v2122, %v1932
        %v2124 = vmul.f32 %v2122, %v1933
        %v2125 = vmul.f32 %v2122, %v1934
        %v2129 = vrot.slane %v2123, 1
        %v2130 = vrot.slane %v2124, 1
        %v2131 = vsel %vm381, %v2129, %v2130
        %v2132 = vrot.slane %v2125, 1
        %v2133 = vsel %vm381, %v2130, %v2132
        %2134 = vrot.lane.b32.xlu0 %v2131, 126
        %v2135 = vpop.permute.xlu0 %2134
        %2136 = vrot.lane.b32.xlu0 %v2133, 126
        %v2137 = vpop.permute.xlu0 %2136
        %v2140 = vadd.f32 %v2037, %v2135
        %v2141 = vadd.f32 %v2038, %v2137
        %s2142 = sld [smem:[#allocation2 + $0x59]]
        %v2143 = vstv %s2142
        %v2144 = vmul.f32 %v2143, %v1932
        %v2145 = vmul.f32 %v2143, %v1933
        %v2146 = vmul.f32 %v2143, %v1934
        %v2150 = vrot.slane %v2144, 1
        %v2151 = vrot.slane %v2145, 1
        %v2152 = vsel %vm381, %v2150, %v2151
        %v2153 = vrot.slane %v2146, 1
        %v2154 = vsel %vm381, %v2151, %v2153
        %2155 = vrot.lane.b32.xlu0 %v2152, 126
        %v2156 = vpop.permute.xlu0 %2155
        %2157 = vrot.lane.b32.xlu0 %v2154, 126
        %v2158 = vpop.permute.xlu0 %2157
        %v2161 = vadd.f32 %v2058, %v2156
        %v2162 = vadd.f32 %v2059, %v2158
        %s2163 = sld [smem:[#allocation2 + $0x5a]]
        %v2164 = vstv %s2163
        %v2165 = vmul.f32 %v2164, %v1932
        %v2166 = vmul.f32 %v2164, %v1933
        %v2167 = vmul.f32 %v2164, %v1934
        %v2171 = vrot.slane %v2165, 1
        %v2172 = vrot.slane %v2166, 1
        %v2173 = vsel %vm381, %v2171, %v2172
        %v2174 = vrot.slane %v2167, 1
        %v2175 = vsel %vm381, %v2172, %v2174
        %2176 = vrot.lane.b32.xlu0 %v2173, 126
        %v2177 = vpop.permute.xlu0 %2176
        %2178 = vrot.lane.b32.xlu0 %v2175, 126
        %v2179 = vpop.permute.xlu0 %2178
        %v2182 = vadd.f32 %v2119, %v2177
        %v2183 = vadd.f32 %v2120, %v2179
        %s2184 = sld [smem:[#allocation2 + $0x5b]]
        %v2185 = vstv %s2184
        %v2186 = vmul.f32 %v2185, %v1932
        %v2187 = vmul.f32 %v2185, %v1933
        %v2188 = vmul.f32 %v2185, %v1934
        %v2192 = vrot.slane %v2186, 1
        %v2193 = vrot.slane %v2187, 1
        %v2194 = vsel %vm381, %v2192, %v2193
        %v2195 = vrot.slane %v2188, 1
        %v2196 = vsel %vm381, %v2193, %v2195
        %2197 = vrot.lane.b32.xlu0 %v2194, 126
        %v2198 = vpop.permute.xlu0 %2197
        %2199 = vrot.lane.b32.xlu0 %v2196, 126
        %v2200 = vpop.permute.xlu0 %2199
        %v2203 = vadd.f32 %v2100, %v2198
        %v2204 = vadd.f32 %v2101, %v2200
        %v2205 = vmul.f32 %v1932, %v661
        %v2206 = vmul.f32 %v1933, %v663
        %v2207 = vmul.f32 %v1934, %v665
        %v2211 = vrot.slane %v2205, 1
        %v2212 = vrot.slane %v2206, 1
        %v2213 = vsel %vm381, %v2211, %v2212
        %v2214 = vrot.slane %v2207, 1
        %v2215 = vsel %vm381, %v2212, %v2214
        %2216 = vrot.lane.b32.xlu0 %v2213, 126
        %v2217 = vpop.permute.xlu0 %2216
        %2218 = vrot.lane.b32.xlu0 %v2215, 126
        %v2219 = vpop.permute.xlu0 %2218
        %v2222 = vadd.f32 %v2182, %v2217
        %v2223 = vadd.f32 %v2183, %v2219
        %v2224 = vld [vmem:[%s1760] sm:$0xe]
        %v2225 = vunpack.c.l.bf16 %v2224
        %s2226 = sld [smem:[#allocation2 + $0x68]]
        %v2227 = vstv %s2226
        %v2228 = vmul.f32 %v2227, %v2225
        %v2229 = vmul.f32 %v2227, %v1933
        %v2230 = vmul.f32 %v2227, %v1934
        %v2234 = vrot.slane %v2228, 2
        %v2235 = vrot.slane %v2229, 2
        %v2236 = vsel %vm698, %v2234, %v2235
        %v2237 = vrot.slane %v2230, 2
        %v2238 = vsel %vm698, %v2235, %v2237
        %v2241 = vadd.f32 %v2140, %v2236
        %v2242 = vadd.f32 %v2141, %v2238
        %s2243 = sld [smem:[#allocation2 + $0x69]]
        %v2244 = vstv %s2243
        %v2245 = vmul.f32 %v2244, %v2225
        %v2246 = vmul.f32 %v2244, %v1933
        %v2247 = vmul.f32 %v2244, %v1934
        %v2251 = vrot.slane %v2245, 2
        %v2252 = vrot.slane %v2246, 2
        %v2253 = vsel %vm698, %v2251, %v2252
        %v2254 = vrot.slane %v2247, 2
        %v2255 = vsel %vm698, %v2252, %v2254
        %v2258 = vadd.f32 %v2161, %v2253
        %v2259 = vadd.f32 %v2162, %v2255
        %s2260 = sld [smem:[#allocation2 + $0x6a]]
        %v2261 = vstv %s2260
        %v2262 = vmul.f32 %v2261, %v2225
        %v2263 = vmul.f32 %v2261, %v1933
        %v2264 = vmul.f32 %v2261, %v1934
        %v2268 = vrot.slane %v2262, 2
        %v2269 = vrot.slane %v2263, 2
        %v2270 = vsel %vm698, %v2268, %v2269
        %v2271 = vrot.slane %v2264, 2
        %v2272 = vsel %vm698, %v2269, %v2271
        %v2275 = vadd.f32 %v2222, %v2270
        %v2276 = vadd.f32 %v2223, %v2272
        %s2277 = sld [smem:[#allocation2 + $0x6b]]
        %v2278 = vstv %s2277
        %v2279 = vmul.f32 %v2278, %v2225
        %v2280 = vmul.f32 %v2278, %v1933
        %v2281 = vmul.f32 %v2278, %v1934
        %v2285 = vrot.slane %v2279, 2
        %v2286 = vrot.slane %v2280, 2
        %v2287 = vsel %vm698, %v2285, %v2286
        %v2288 = vrot.slane %v2281, 2
        %v2289 = vsel %vm698, %v2286, %v2288
        %v2292 = vadd.f32 %v2203, %v2287
        %v2293 = vadd.f32 %v2204, %v2289
        %v2294 = vmul.f32 %v2225, %v760
        %v2295 = vmul.f32 %v1933, %v762
        %v2296 = vmul.f32 %v1934, %v761
        %v2300 = vrot.slane %v2294, 2
        %v2301 = vrot.slane %v2295, 2
        %v2302 = vsel %vm698, %v2300, %v2301
        %v2303 = vrot.slane %v2296, 2
        %v2304 = vsel %vm698, %v2301, %v2303
        %v2307 = vadd.f32 %v2275, %v2302
        %v2308 = vadd.f32 %v2276, %v2304
        %s2309 = sld [smem:[#allocation2 + $0x78]]
        %v2310 = vstv %s2309
        %v2311 = vmul.f32 %v2310, %v2225
        %v2312 = vmul.f32 %v2310, %v1933
        %v2313 = vmul.f32 %v2310, %v1934
        %v2317 = vrot.slane %v2311, 2
        %v2318 = vrot.slane %v2312, 2
        %v2319 = vsel %vm698, %v2317, %v2318
        %v2320 = vrot.slane %v2313, 2
        %v2321 = vsel %vm698, %v2318, %v2320
        %2322 = vrot.lane.b32.xlu0 %v2319, 127
        %v2323 = vpop.permute.xlu0 %2322
        %2324 = vrot.lane.b32.xlu0 %v2321, 127
        %v2325 = vpop.permute.xlu0 %2324
        %v2328 = vadd.f32 %v2241, %v2323
        %v2329 = vadd.f32 %v2242, %v2325
        %s2330 = sld [smem:[#allocation2 + $0x79]]
        %v2331 = vstv %s2330
        %v2332 = vmul.f32 %v2331, %v2225
        %v2333 = vmul.f32 %v2331, %v1933
        %v2334 = vmul.f32 %v2331, %v1934
        %v2338 = vrot.slane %v2332, 2
        %v2339 = vrot.slane %v2333, 2
        %v2340 = vsel %vm698, %v2338, %v2339
        %v2341 = vrot.slane %v2334, 2
        %v2342 = vsel %vm698, %v2339, %v2341
        %2343 = vrot.lane.b32.xlu0 %v2340, 127
        %v2344 = vpop.permute.xlu0 %2343
        %2345 = vrot.lane.b32.xlu0 %v2342, 127
        %v2346 = vpop.permute.xlu0 %2345
        %v2349 = vadd.f32 %v2258, %v2344
        %v2350 = vadd.f32 %v2259, %v2346
        %s2351 = sld [smem:[#allocation2 + $0x7a]]
        %v2352 = vstv %s2351
        %v2353 = vmul.f32 %v2352, %v2225
        %v2354 = vmul.f32 %v2352, %v1933
        %v2355 = vmul.f32 %v2352, %v1934
        %v2359 = vrot.slane %v2353, 2
        %v2360 = vrot.slane %v2354, 2
        %v2361 = vsel %vm698, %v2359, %v2360
        %v2362 = vrot.slane %v2355, 2
        %v2363 = vsel %vm698, %v2360, %v2362
        %2364 = vrot.lane.b32.xlu0 %v2361, 127
        %v2365 = vpop.permute.xlu0 %2364
        %2366 = vrot.lane.b32.xlu0 %v2363, 127
        %v2367 = vpop.permute.xlu0 %2366
        %v2370 = vadd.f32 %v2307, %v2365
        %v2371 = vadd.f32 %v2308, %v2367
        %s2372 = sld [smem:[#allocation2 + $0x7b]]
        %v2373 = vstv %s2372
        %v2374 = vmul.f32 %v2373, %v2225
        %v2375 = vmul.f32 %v2373, %v1933
        %v2376 = vmul.f32 %v2373, %v1934
        %v2380 = vrot.slane %v2374, 2
        %v2381 = vrot.slane %v2375, 2
        %v2382 = vsel %vm698, %v2380, %v2381
        %v2383 = vrot.slane %v2376, 2
        %v2384 = vsel %vm698, %v2381, %v2383
        %2385 = vrot.lane.b32.xlu0 %v2382, 127
        %v2386 = vpop.permute.xlu0 %2385
        %2387 = vrot.lane.b32.xlu0 %v2384, 127
        %v2388 = vpop.permute.xlu0 %2387
        %v2391 = vadd.f32 %v2292, %v2386
        %v2392 = vadd.f32 %v2293, %v2388
        %v2393 = vmul.f32 %v2225, %v866
        %v2394 = vmul.f32 %v1933, %v868
        %v2395 = vmul.f32 %v1934, %v870
        %v2399 = vrot.slane %v2393, 2
        %v2400 = vrot.slane %v2394, 2
        %v2401 = vsel %vm698, %v2399, %v2400
        %v2402 = vrot.slane %v2395, 2
        %v2403 = vsel %vm698, %v2400, %v2402
        %2404 = vrot.lane.b32.xlu0 %v2401, 127
        %v2405 = vpop.permute.xlu0 %2404
        %2406 = vrot.lane.b32.xlu0 %v2403, 127
        %v2407 = vpop.permute.xlu0 %2406
        %v2410 = vadd.f32 %v2370, %v2405
        %v2411 = vadd.f32 %v2371, %v2407
        %s2412 = sld [smem:[#allocation2 + $0x88]]
        %v2413 = vstv %s2412
        %v2414 = vmul.f32 %v2413, %v2225
        %v2415 = vmul.f32 %v2413, %v1933
        %v2416 = vmul.f32 %v2413, %v1934
        %v2420 = vrot.slane %v2414, 2
        %v2421 = vrot.slane %v2415, 2
        %v2422 = vsel %vm698, %v2420, %v2421
        %v2423 = vrot.slane %v2416, 2
        %v2424 = vsel %vm698, %v2421, %v2423
        %2425 = vrot.lane.b32.xlu0 %v2422, 126
        %v2426 = vpop.permute.xlu0 %2425
        %2427 = vrot.lane.b32.xlu0 %v2424, 126
        %v2428 = vpop.permute.xlu0 %2427
        %v2431 = vadd.f32 %v2328, %v2426
        %v2432 = vadd.f32 %v2329, %v2428
        %s2433 = sld [smem:[#allocation2 + $0x89]]
        %v2434 = vstv %s2433
        %v2435 = vmul.f32 %v2434, %v2225
        %v2436 = vmul.f32 %v2434, %v1933
        %v2437 = vmul.f32 %v2434, %v1934
        %v2441 = vrot.slane %v2435, 2
        %v2442 = vrot.slane %v2436, 2
        %v2443 = vsel %vm698, %v2441, %v2442
        %v2444 = vrot.slane %v2437, 2
        %v2445 = vsel %vm698, %v2442, %v2444
        %2446 = vrot.lane.b32.xlu0 %v2443, 126
        %v2447 = vpop.permute.xlu0 %2446
        %2448 = vrot.lane.b32.xlu0 %v2445, 126
        %v2449 = vpop.permute.xlu0 %2448
        %v2452 = vadd.f32 %v2349, %v2447
        %v2453 = vadd.f32 %v2350, %v2449
        %s2454 = sld [smem:[#allocation2 + $0x8a]]
        %v2455 = vstv %s2454
        %v2456 = vmul.f32 %v2455, %v2225
        %v2457 = vmul.f32 %v2455, %v1933
        %v2458 = vmul.f32 %v2455, %v1934
        %v2462 = vrot.slane %v2456, 2
        %v2463 = vrot.slane %v2457, 2
        %v2464 = vsel %vm698, %v2462, %v2463
        %v2465 = vrot.slane %v2458, 2
        %v2466 = vsel %vm698, %v2463, %v2465
        %2467 = vrot.lane.b32.xlu0 %v2464, 126
        %v2468 = vpop.permute.xlu0 %2467
        %2469 = vrot.lane.b32.xlu0 %v2466, 126
        %v2470 = vpop.permute.xlu0 %2469
        %v2473 = vadd.f32 %v2410, %v2468
        %v2474 = vadd.f32 %v2411, %v2470
        %s2475 = sld [smem:[#allocation2 + $0x8b]]
        %v2476 = vstv %s2475
        %v2477 = vmul.f32 %v2476, %v2225
        %v2478 = vmul.f32 %v2476, %v1933
        %v2479 = vmul.f32 %v2476, %v1934
        %v2483 = vrot.slane %v2477, 2
        %v2484 = vrot.slane %v2478, 2
        %v2485 = vsel %vm698, %v2483, %v2484
        %v2486 = vrot.slane %v2479, 2
        %v2487 = vsel %vm698, %v2484, %v2486
        %2488 = vrot.lane.b32.xlu0 %v2485, 126
        %v2489 = vpop.permute.xlu0 %2488
        %2490 = vrot.lane.b32.xlu0 %v2487, 126
        %v2491 = vpop.permute.xlu0 %2490
        %v2494 = vadd.f32 %v2391, %v2489
        %v2495 = vadd.f32 %v2392, %v2491
        %v2496 = vmul.f32 %v2225, %v978
        %v2497 = vmul.f32 %v1933, %v980
        %v2498 = vmul.f32 %v1934, %v982
        %v2502 = vrot.slane %v2496, 2
        %v2503 = vrot.slane %v2497, 2
        %v2504 = vsel %vm698, %v2502, %v2503
        %v2505 = vrot.slane %v2498, 2
        %v2506 = vsel %vm698, %v2503, %v2505
        %2507 = vrot.lane.b32.xlu0 %v2504, 126
        %v2508 = vpop.permute.xlu0 %2507
        %2509 = vrot.lane.b32.xlu0 %v2506, 126
        %v2510 = vpop.permute.xlu0 %2509
        %v2513 = vadd.f32 %v2473, %v2508
        %v2514 = vadd.f32 %v2474, %v2510
        %s2515 = scalar_lea.vmem %s182, 36
        %v2516 = vld [vmem:[%s2515] sm:$0xf]
        %v2517 = vld [vmem:[%s2515 + $0x4] sm:$0xf]
        %v2518 = vunpack.c.l.bf16 %v2516
        %v2519 = vunpack.c.l.bf16 %v2517
        %s2520 = sld [smem:[#allocation2 + $0xc]]
        %v2521 = vstv %s2520
        %v2522 = vmul.f32 %v2521, %v2518
        %v2523 = vmul.f32 %v2521, %v2519
        %v2524 = vadd.f32 %v2431, %v2522
        %v2525 = vadd.f32 %v2432, %v2523
        %s2526 = sld [smem:[#allocation2 + $0xd]]
        %v2527 = vstv %s2526
        %v2528 = vmul.f32 %v2527, %v2518
        %v2529 = vmul.f32 %v2527, %v2519
        %v2530 = vadd.f32 %v2452, %v2528
        %v2531 = vadd.f32 %v2453, %v2529
        %s2532 = sld [smem:[#allocation2 + $0xe]]
        %v2533 = vstv %s2532
        %v2534 = vmul.f32 %v2533, %v2518
        %v2535 = vmul.f32 %v2533, %v2519
        %v2536 = vadd.f32 %v2513, %v2534
        %v2537 = vadd.f32 %v2514, %v2535
        %s2538 = sld [smem:[#allocation2 + $0xf]]
        %v2539 = vstv %s2538
        %v2540 = vmul.f32 %v2539, %v2518
        %v2541 = vmul.f32 %v2539, %v2519
        %v2542 = vadd.f32 %v2494, %v2540
        %v2543 = vadd.f32 %v2495, %v2541
        %v2544 = vmul.f32 %v2518, %v183
        %v2545 = vmul.f32 %v2519, %v184
        %v2546 = vadd.f32 %v2542, %v2544
        %v2547 = vadd.f32 %v2543, %v2545
        %s2548 = sld [smem:[#allocation2 + $0x1c]]
        %v2549 = vstv %s2548
        %v2550 = vmul.f32 %v2549, %v2518
        %v2551 = vmul.f32 %v2549, %v2519
        %2554 = vrot.lane.b32.xlu0 %v2550, 127
        %v2555 = vpop.permute.xlu0 %2554
        %2556 = vrot.lane.b32.xlu0 %v2551, 127
        %v2557 = vpop.permute.xlu0 %2556
        %v2560 = vadd.f32 %v2524, %v2555
        %v2561 = vadd.f32 %v2525, %v2557
        %s2562 = sld [smem:[#allocation2 + $0x1d]]
        %v2563 = vstv %s2562
        %v2564 = vmul.f32 %v2563, %v2518
        %v2565 = vmul.f32 %v2563, %v2519
        %2568 = vrot.lane.b32.xlu0 %v2564, 127
        %v2569 = vpop.permute.xlu0 %2568
        %2570 = vrot.lane.b32.xlu0 %v2565, 127
        %v2571 = vpop.permute.xlu0 %2570
        %v2574 = vadd.f32 %v2530, %v2569
        %v2575 = vadd.f32 %v2531, %v2571
        %s2576 = sld [smem:[#allocation2 + $0x1e]]
        %v2577 = vstv %s2576
        %v2578 = vmul.f32 %v2577, %v2518
        %v2579 = vmul.f32 %v2577, %v2519
        %2582 = vrot.lane.b32.xlu0 %v2578, 127
        %v2583 = vpop.permute.xlu0 %2582
        %2584 = vrot.lane.b32.xlu0 %v2579, 127
        %v2585 = vpop.permute.xlu0 %2584
        %v2588 = vadd.f32 %v2536, %v2583
        %v2589 = vadd.f32 %v2537, %v2585
        %s2590 = sld [smem:[#allocation2 + $0x1f]]
        %v2591 = vstv %s2590
        %v2592 = vmul.f32 %v2591, %v2518
        %v2593 = vmul.f32 %v2591, %v2519
        %2596 = vrot.lane.b32.xlu0 %v2592, 127
        %v2597 = vpop.permute.xlu0 %2596
        %2598 = vrot.lane.b32.xlu0 %v2593, 127
        %v2599 = vpop.permute.xlu0 %2598
        %v2602 = vadd.f32 %v2546, %v2597
        %v2603 = vadd.f32 %v2547, %v2599
        %v2604 = vmul.f32 %v2518, %v276
        %v2605 = vmul.f32 %v2519, %v278
        %2608 = vrot.lane.b32.xlu0 %v2604, 127
        %v2609 = vpop.permute.xlu0 %2608
        %2610 = vrot.lane.b32.xlu0 %v2605, 127
        %v2611 = vpop.permute.xlu0 %2610
        %v2614 = vadd.f32 %v2602, %v2609
        %v2615 = vadd.f32 %v2603, %v2611
        %s2616 = sld [smem:[#allocation2 + $0x2c]]
        %v2617 = vstv %s2616
        %v2618 = vmul.f32 %v2617, %v2518
        %v2619 = vmul.f32 %v2617, %v2519
        %2622 = vrot.lane.b32.xlu0 %v2618, 126
        %v2623 = vpop.permute.xlu0 %2622
        %2624 = vrot.lane.b32.xlu0 %v2619, 126
        %v2625 = vpop.permute.xlu0 %2624
        %v2628 = vadd.f32 %v2560, %v2623
        %v2629 = vadd.f32 %v2561, %v2625
        %s2630 = sld [smem:[#allocation2 + $0x2d]]
        %v2631 = vstv %s2630
        %v2632 = vmul.f32 %v2631, %v2518
        %v2633 = vmul.f32 %v2631, %v2519
        %2636 = vrot.lane.b32.xlu0 %v2632, 126
        %v2637 = vpop.permute.xlu0 %2636
        %2638 = vrot.lane.b32.xlu0 %v2633, 126
        %v2639 = vpop.permute.xlu0 %2638
        %v2642 = vadd.f32 %v2574, %v2637
        %v2643 = vadd.f32 %v2575, %v2639
        %s2644 = sld [smem:[#allocation2 + $0x2e]]
        %v2645 = vstv %s2644
        %v2646 = vmul.f32 %v2645, %v2518
        %v2647 = vmul.f32 %v2645, %v2519
        %2650 = vrot.lane.b32.xlu0 %v2646, 126
        %v2651 = vpop.permute.xlu0 %2650
        %2652 = vrot.lane.b32.xlu0 %v2647, 126
        %v2653 = vpop.permute.xlu0 %2652
        %v2656 = vadd.f32 %v2588, %v2651
        %v2657 = vadd.f32 %v2589, %v2653
        %s2658 = sld [smem:[#allocation2 + $0x2f]]
        %v2659 = vstv %s2658
        %v2660 = vmul.f32 %v2659, %v2518
        %v2661 = vmul.f32 %v2659, %v2519
        %2664 = vrot.lane.b32.xlu0 %v2660, 126
        %v2665 = vpop.permute.xlu0 %2664
        %2666 = vrot.lane.b32.xlu0 %v2661, 126
        %v2667 = vpop.permute.xlu0 %2666
        %v2670 = vadd.f32 %v2614, %v2665
        %v2671 = vadd.f32 %v2615, %v2667
        %v2672 = vmul.f32 %v2518, %v350
        %v2673 = vmul.f32 %v2519, %v352
        %2676 = vrot.lane.b32.xlu0 %v2672, 126
        %v2677 = vpop.permute.xlu0 %2676
        %2678 = vrot.lane.b32.xlu0 %v2673, 126
        %v2679 = vpop.permute.xlu0 %2678
        %v2682 = vadd.f32 %v2670, %v2677
        %v2683 = vadd.f32 %v2671, %v2679
        %v2684 = vld [vmem:[%s2515] sm:$0xf]
        %v2685 = vld [vmem:[%s2515 + $0x4] sm:$0xf]
        %v2686 = vld [vmem:[%s2515 + $0x8] sm:$0x1]
        %v2687 = vunpack.c.l.bf16 %v2684
        %v2688 = vunpack.c.l.bf16 %v2685
        %v2689 = vunpack.c.l.bf16 %v2686
        %s2690 = sld [smem:[#allocation2 + $0x3c]]
        %v2691 = vstv %s2690
        %v2692 = vmul.f32 %v2691, %v2687
        %v2693 = vmul.f32 %v2691, %v2688
        %v2694 = vmul.f32 %v2691, %v2689
        %v2698 = vrot.slane %v2692, 1
        %v2699 = vrot.slane %v2693, 1
        %v2700 = vsel %vm381, %v2698, %v2699
        %v2701 = vrot.slane %v2694, 1
        %v2702 = vsel %vm381, %v2699, %v2701
        %v2705 = vadd.f32 %v2628, %v2700
        %v2706 = vadd.f32 %v2629, %v2702
        %s2707 = sld [smem:[#allocation2 + $0x3d]]
        %v2708 = vstv %s2707
        %v2709 = vmul.f32 %v2708, %v2687
        %v2710 = vmul.f32 %v2708, %v2688
        %v2711 = vmul.f32 %v2708, %v2689
        %v2715 = vrot.slane %v2709, 1
        %v2716 = vrot.slane %v2710, 1
        %v2717 = vsel %vm381, %v2715, %v2716
        %v2718 = vrot.slane %v2711, 1
        %v2719 = vsel %vm381, %v2716, %v2718
        %v2722 = vadd.f32 %v2642, %v2717
        %v2723 = vadd.f32 %v2643, %v2719
        %s2724 = sld [smem:[#allocation2 + $0x3e]]
        %v2725 = vstv %s2724
        %v2726 = vmul.f32 %v2725, %v2687
        %v2727 = vmul.f32 %v2725, %v2688
        %v2728 = vmul.f32 %v2725, %v2689
        %v2732 = vrot.slane %v2726, 1
        %v2733 = vrot.slane %v2727, 1
        %v2734 = vsel %vm381, %v2732, %v2733
        %v2735 = vrot.slane %v2728, 1
        %v2736 = vsel %vm381, %v2733, %v2735
        %v2739 = vadd.f32 %v2656, %v2734
        %v2740 = vadd.f32 %v2657, %v2736
        %s2741 = sld [smem:[#allocation2 + $0x3f]]
        %v2742 = vstv %s2741
        %v2743 = vmul.f32 %v2742, %v2687
        %v2744 = vmul.f32 %v2742, %v2688
        %v2745 = vmul.f32 %v2742, %v2689
        %v2749 = vrot.slane %v2743, 1
        %v2750 = vrot.slane %v2744, 1
        %v2751 = vsel %vm381, %v2749, %v2750
        %v2752 = vrot.slane %v2745, 1
        %v2753 = vsel %vm381, %v2750, %v2752
        %v2756 = vadd.f32 %v2682, %v2751
        %v2757 = vadd.f32 %v2683, %v2753
        %v2758 = vmul.f32 %v2687, %v443
        %v2759 = vmul.f32 %v2688, %v445
        %v2760 = vmul.f32 %v2689, %v444
        %v2764 = vrot.slane %v2758, 1
        %v2765 = vrot.slane %v2759, 1
        %v2766 = vsel %vm381, %v2764, %v2765
        %v2767 = vrot.slane %v2760, 1
        %v2768 = vsel %vm381, %v2765, %v2767
        %v2771 = vadd.f32 %v2756, %v2766
        %v2772 = vadd.f32 %v2757, %v2768
        %s2773 = sld [smem:[#allocation2 + $0x4c]]
        %v2774 = vstv %s2773
        %v2775 = vmul.f32 %v2774, %v2687
        %v2776 = vmul.f32 %v2774, %v2688
        %v2777 = vmul.f32 %v2774, %v2689
        %v2781 = vrot.slane %v2775, 1
        %v2782 = vrot.slane %v2776, 1
        %v2783 = vsel %vm381, %v2781, %v2782
        %v2784 = vrot.slane %v2777, 1
        %v2785 = vsel %vm381, %v2782, %v2784
        %2786 = vrot.lane.b32.xlu0 %v2783, 127
        %v2787 = vpop.permute.xlu0 %2786
        %2788 = vrot.lane.b32.xlu0 %v2785, 127
        %v2789 = vpop.permute.xlu0 %2788
        %v2792 = vadd.f32 %v2705, %v2787
        %v2793 = vadd.f32 %v2706, %v2789
        %s2794 = sld [smem:[#allocation2 + $0x4d]]
        %v2795 = vstv %s2794
        %v2796 = vmul.f32 %v2795, %v2687
        %v2797 = vmul.f32 %v2795, %v2688
        %v2798 = vmul.f32 %v2795, %v2689
        %v2802 = vrot.slane %v2796, 1
        %v2803 = vrot.slane %v2797, 1
        %v2804 = vsel %vm381, %v2802, %v2803
        %v2805 = vrot.slane %v2798, 1
        %v2806 = vsel %vm381, %v2803, %v2805
        %2807 = vrot.lane.b32.xlu0 %v2804, 127
        %v2808 = vpop.permute.xlu0 %2807
        %2809 = vrot.lane.b32.xlu0 %v2806, 127
        %v2810 = vpop.permute.xlu0 %2809
        %v2813 = vadd.f32 %v2722, %v2808
        %v2814 = vadd.f32 %v2723, %v2810
        %s2815 = sld [smem:[#allocation2 + $0x4e]]
        %v2816 = vstv %s2815
        %v2817 = vmul.f32 %v2816, %v2687
        %v2818 = vmul.f32 %v2816, %v2688
        %v2819 = vmul.f32 %v2816, %v2689
        %v2823 = vrot.slane %v2817, 1
        %v2824 = vrot.slane %v2818, 1
        %v2825 = vsel %vm381, %v2823, %v2824
        %v2826 = vrot.slane %v2819, 1
        %v2827 = vsel %vm381, %v2824, %v2826
        %2828 = vrot.lane.b32.xlu0 %v2825, 127
        %v2829 = vpop.permute.xlu0 %2828
        %2830 = vrot.lane.b32.xlu0 %v2827, 127
        %v2831 = vpop.permute.xlu0 %2830
        %v2834 = vadd.f32 %v2739, %v2829
        %v2835 = vadd.f32 %v2740, %v2831
        %s2836 = sld [smem:[#allocation2 + $0x4f]]
        %v2837 = vstv %s2836
        %v2838 = vmul.f32 %v2837, %v2687
        %v2839 = vmul.f32 %v2837, %v2688
        %v2840 = vmul.f32 %v2837, %v2689
        %v2844 = vrot.slane %v2838, 1
        %v2845 = vrot.slane %v2839, 1
        %v2846 = vsel %vm381, %v2844, %v2845
        %v2847 = vrot.slane %v2840, 1
        %v2848 = vsel %vm381, %v2845, %v2847
        %2849 = vrot.lane.b32.xlu0 %v2846, 127
        %v2850 = vpop.permute.xlu0 %2849
        %2851 = vrot.lane.b32.xlu0 %v2848, 127
        %v2852 = vpop.permute.xlu0 %2851
        %v2855 = vadd.f32 %v2771, %v2850
        %v2856 = vadd.f32 %v2772, %v2852
        %v2857 = vmul.f32 %v2687, %v549
        %v2858 = vmul.f32 %v2688, %v551
        %v2859 = vmul.f32 %v2689, %v553
        %v2863 = vrot.slane %v2857, 1
        %v2864 = vrot.slane %v2858, 1
        %v2865 = vsel %vm381, %v2863, %v2864
        %v2866 = vrot.slane %v2859, 1
        %v2867 = vsel %vm381, %v2864, %v2866
        %2868 = vrot.lane.b32.xlu0 %v2865, 127
        %v2869 = vpop.permute.xlu0 %2868
        %2870 = vrot.lane.b32.xlu0 %v2867, 127
        %v2871 = vpop.permute.xlu0 %2870
        %v2874 = vadd.f32 %v2855, %v2869
        %v2875 = vadd.f32 %v2856, %v2871
        %s2876 = sld [smem:[#allocation2 + $0x5c]]
        %v2877 = vstv %s2876
        %v2878 = vmul.f32 %v2877, %v2687
        %v2879 = vmul.f32 %v2877, %v2688
        %v2880 = vmul.f32 %v2877, %v2689
        %v2884 = vrot.slane %v2878, 1
        %v2885 = vrot.slane %v2879, 1
        %v2886 = vsel %vm381, %v2884, %v2885
        %v2887 = vrot.slane %v2880, 1
        %v2888 = vsel %vm381, %v2885, %v2887
        %2889 = vrot.lane.b32.xlu0 %v2886, 126
        %v2890 = vpop.permute.xlu0 %2889
        %2891 = vrot.lane.b32.xlu0 %v2888, 126
        %v2892 = vpop.permute.xlu0 %2891
        %v2895 = vadd.f32 %v2792, %v2890
        %v2896 = vadd.f32 %v2793, %v2892
        %s2897 = sld [smem:[#allocation2 + $0x5d]]
        %v2898 = vstv %s2897
        %v2899 = vmul.f32 %v2898, %v2687
        %v2900 = vmul.f32 %v2898, %v2688
        %v2901 = vmul.f32 %v2898, %v2689
        %v2905 = vrot.slane %v2899, 1
        %v2906 = vrot.slane %v2900, 1
        %v2907 = vsel %vm381, %v2905, %v2906
        %v2908 = vrot.slane %v2901, 1
        %v2909 = vsel %vm381, %v2906, %v2908
        %2910 = vrot.lane.b32.xlu0 %v2907, 126
        %v2911 = vpop.permute.xlu0 %2910
        %2912 = vrot.lane.b32.xlu0 %v2909, 126
        %v2913 = vpop.permute.xlu0 %2912
        %v2916 = vadd.f32 %v2813, %v2911
        %v2917 = vadd.f32 %v2814, %v2913
        %s2918 = sld [smem:[#allocation2 + $0x5e]]
        %v2919 = vstv %s2918
        %v2920 = vmul.f32 %v2919, %v2687
        %v2921 = vmul.f32 %v2919, %v2688
        %v2922 = vmul.f32 %v2919, %v2689
        %v2926 = vrot.slane %v2920, 1
        %v2927 = vrot.slane %v2921, 1
        %v2928 = vsel %vm381, %v2926, %v2927
        %v2929 = vrot.slane %v2922, 1
        %v2930 = vsel %vm381, %v2927, %v2929
        %2931 = vrot.lane.b32.xlu0 %v2928, 126
        %v2932 = vpop.permute.xlu0 %2931
        %2933 = vrot.lane.b32.xlu0 %v2930, 126
        %v2934 = vpop.permute.xlu0 %2933
        %v2937 = vadd.f32 %v2834, %v2932
        %v2938 = vadd.f32 %v2835, %v2934
        %s2939 = sld [smem:[#allocation2 + $0x5f]]
        %v2940 = vstv %s2939
        %v2941 = vmul.f32 %v2940, %v2687
        %v2942 = vmul.f32 %v2940, %v2688
        %v2943 = vmul.f32 %v2940, %v2689
        %v2947 = vrot.slane %v2941, 1
        %v2948 = vrot.slane %v2942, 1
        %v2949 = vsel %vm381, %v2947, %v2948
        %v2950 = vrot.slane %v2943, 1
        %v2951 = vsel %vm381, %v2948, %v2950
        %2952 = vrot.lane.b32.xlu0 %v2949, 126
        %v2953 = vpop.permute.xlu0 %2952
        %2954 = vrot.lane.b32.xlu0 %v2951, 126
        %v2955 = vpop.permute.xlu0 %2954
        %v2958 = vadd.f32 %v2874, %v2953
        %v2959 = vadd.f32 %v2875, %v2955
        %v2960 = vmul.f32 %v2687, %v661
        %v2961 = vmul.f32 %v2688, %v663
        %v2962 = vmul.f32 %v2689, %v665
        %v2966 = vrot.slane %v2960, 1
        %v2967 = vrot.slane %v2961, 1
        %v2968 = vsel %vm381, %v2966, %v2967
        %v2969 = vrot.slane %v2962, 1
        %v2970 = vsel %vm381, %v2967, %v2969
        %2971 = vrot.lane.b32.xlu0 %v2968, 126
        %v2972 = vpop.permute.xlu0 %2971
        %2973 = vrot.lane.b32.xlu0 %v2970, 126
        %v2974 = vpop.permute.xlu0 %2973
        %v2977 = vadd.f32 %v2958, %v2972
        %v2978 = vadd.f32 %v2959, %v2974
        %v2979 = vld [vmem:[%s2515] sm:$0xe]
        %v2980 = vunpack.c.l.bf16 %v2979
        %s2981 = sld [smem:[#allocation2 + $0x6c]]
        %v2982 = vstv %s2981
        %v2983 = vmul.f32 %v2982, %v2980
        %v2984 = vmul.f32 %v2982, %v2688
        %v2985 = vmul.f32 %v2982, %v2689
        %v2989 = vrot.slane %v2983, 2
        %v2990 = vrot.slane %v2984, 2
        %v2991 = vsel %vm698, %v2989, %v2990
        %v2992 = vrot.slane %v2985, 2
        %v2993 = vsel %vm698, %v2990, %v2992
        %v2996 = vadd.f32 %v2895, %v2991
        %v2997 = vadd.f32 %v2896, %v2993
        %s2998 = sld [smem:[#allocation2 + $0x6d]]
        %v2999 = vstv %s2998
        %v3000 = vmul.f32 %v2999, %v2980
        %v3001 = vmul.f32 %v2999, %v2688
        %v3002 = vmul.f32 %v2999, %v2689
        %v3006 = vrot.slane %v3000, 2
        %v3007 = vrot.slane %v3001, 2
        %v3008 = vsel %vm698, %v3006, %v3007
        %v3009 = vrot.slane %v3002, 2
        %v3010 = vsel %vm698, %v3007, %v3009
        %v3013 = vadd.f32 %v2916, %v3008
        %v3014 = vadd.f32 %v2917, %v3010
        %s3015 = sld [smem:[#allocation2 + $0x6e]]
        %v3016 = vstv %s3015
        %v3017 = vmul.f32 %v3016, %v2980
        %v3018 = vmul.f32 %v3016, %v2688
        %v3019 = vmul.f32 %v3016, %v2689
        %v3023 = vrot.slane %v3017, 2
        %v3024 = vrot.slane %v3018, 2
        %v3025 = vsel %vm698, %v3023, %v3024
        %v3026 = vrot.slane %v3019, 2
        %v3027 = vsel %vm698, %v3024, %v3026
        %v3030 = vadd.f32 %v2937, %v3025
        %v3031 = vadd.f32 %v2938, %v3027
        %s3032 = sld [smem:[#allocation2 + $0x6f]]
        %v3033 = vstv %s3032
        %v3034 = vmul.f32 %v3033, %v2980
        %v3035 = vmul.f32 %v3033, %v2688
        %v3036 = vmul.f32 %v3033, %v2689
        %v3040 = vrot.slane %v3034, 2
        %v3041 = vrot.slane %v3035, 2
        %v3042 = vsel %vm698, %v3040, %v3041
        %v3043 = vrot.slane %v3036, 2
        %v3044 = vsel %vm698, %v3041, %v3043
        %v3047 = vadd.f32 %v2977, %v3042
        %v3048 = vadd.f32 %v2978, %v3044
        %v3049 = vmul.f32 %v2980, %v760
        %v3050 = vmul.f32 %v2688, %v762
        %v3051 = vmul.f32 %v2689, %v761
        %v3055 = vrot.slane %v3049, 2
        %v3056 = vrot.slane %v3050, 2
        %v3057 = vsel %vm698, %v3055, %v3056
        %v3058 = vrot.slane %v3051, 2
        %v3059 = vsel %vm698, %v3056, %v3058
        %v3062 = vadd.f32 %v3047, %v3057
        %v3063 = vadd.f32 %v3048, %v3059
        %s3064 = sld [smem:[#allocation2 + $0x7c]]
        %v3065 = vstv %s3064
        %v3066 = vmul.f32 %v3065, %v2980
        %v3067 = vmul.f32 %v3065, %v2688
        %v3068 = vmul.f32 %v3065, %v2689
        %v3072 = vrot.slane %v3066, 2
        %v3073 = vrot.slane %v3067, 2
        %v3074 = vsel %vm698, %v3072, %v3073
        %v3075 = vrot.slane %v3068, 2
        %v3076 = vsel %vm698, %v3073, %v3075
        %3077 = vrot.lane.b32.xlu0 %v3074, 127
        %v3078 = vpop.permute.xlu0 %3077
        %3079 = vrot.lane.b32.xlu0 %v3076, 127
        %v3080 = vpop.permute.xlu0 %3079
        %v3083 = vadd.f32 %v2996, %v3078
        %v3084 = vadd.f32 %v2997, %v3080
        %s3085 = sld [smem:[#allocation2 + $0x7d]]
        %v3086 = vstv %s3085
        %v3087 = vmul.f32 %v3086, %v2980
        %v3088 = vmul.f32 %v3086, %v2688
        %v3089 = vmul.f32 %v3086, %v2689
        %v3093 = vrot.slane %v3087, 2
        %v3094 = vrot.slane %v3088, 2
        %v3095 = vsel %vm698, %v3093, %v3094
        %v3096 = vrot.slane %v3089, 2
        %v3097 = vsel %vm698, %v3094, %v3096
        %3098 = vrot.lane.b32.xlu0 %v3095, 127
        %v3099 = vpop.permute.xlu0 %3098
        %3100 = vrot.lane.b32.xlu0 %v3097, 127
        %v3101 = vpop.permute.xlu0 %3100
        %v3104 = vadd.f32 %v3013, %v3099
        %v3105 = vadd.f32 %v3014, %v3101
        %s3106 = sld [smem:[#allocation2 + $0x7e]]
        %v3107 = vstv %s3106
        %v3108 = vmul.f32 %v3107, %v2980
        %v3109 = vmul.f32 %v3107, %v2688
        %v3110 = vmul.f32 %v3107, %v2689
        %v3114 = vrot.slane %v3108, 2
        %v3115 = vrot.slane %v3109, 2
        %v3116 = vsel %vm698, %v3114, %v3115
        %v3117 = vrot.slane %v3110, 2
        %v3118 = vsel %vm698, %v3115, %v3117
        %3119 = vrot.lane.b32.xlu0 %v3116, 127
        %v3120 = vpop.permute.xlu0 %3119
        %3121 = vrot.lane.b32.xlu0 %v3118, 127
        %v3122 = vpop.permute.xlu0 %3121
        %v3125 = vadd.f32 %v3030, %v3120
        %v3126 = vadd.f32 %v3031, %v3122
        %s3127 = sld [smem:[#allocation2 + $0x7f]]
        %v3128 = vstv %s3127
        %v3129 = vmul.f32 %v3128, %v2980
        %v3130 = vmul.f32 %v3128, %v2688
        %v3131 = vmul.f32 %v3128, %v2689
        %v3135 = vrot.slane %v3129, 2
        %v3136 = vrot.slane %v3130, 2
        %v3137 = vsel %vm698, %v3135, %v3136
        %v3138 = vrot.slane %v3131, 2
        %v3139 = vsel %vm698, %v3136, %v3138
        %3140 = vrot.lane.b32.xlu0 %v3137, 127
        %v3141 = vpop.permute.xlu0 %3140
        %3142 = vrot.lane.b32.xlu0 %v3139, 127
        %v3143 = vpop.permute.xlu0 %3142
        %v3146 = vadd.f32 %v3062, %v3141
        %v3147 = vadd.f32 %v3063, %v3143
        %v3148 = vmul.f32 %v2980, %v866
        %v3149 = vmul.f32 %v2688, %v868
        %v3150 = vmul.f32 %v2689, %v870
        %v3154 = vrot.slane %v3148, 2
        %v3155 = vrot.slane %v3149, 2
        %v3156 = vsel %vm698, %v3154, %v3155
        %v3157 = vrot.slane %v3150, 2
        %v3158 = vsel %vm698, %v3155, %v3157
        %3159 = vrot.lane.b32.xlu0 %v3156, 127
        %v3160 = vpop.permute.xlu0 %3159
        %3161 = vrot.lane.b32.xlu0 %v3158, 127
        %v3162 = vpop.permute.xlu0 %3161
        %v3165 = vadd.f32 %v3146, %v3160
        %v3166 = vadd.f32 %v3147, %v3162
        %s3167 = sld [smem:[#allocation2 + $0x8c]]
        %v3168 = vstv %s3167
        %v3169 = vmul.f32 %v3168, %v2980
        %v3170 = vmul.f32 %v3168, %v2688
        %v3171 = vmul.f32 %v3168, %v2689
        %v3175 = vrot.slane %v3169, 2
        %v3176 = vrot.slane %v3170, 2
        %v3177 = vsel %vm698, %v3175, %v3176
        %v3178 = vrot.slane %v3171, 2
        %v3179 = vsel %vm698, %v3176, %v3178
        %3180 = vrot.lane.b32.xlu0 %v3177, 126
        %v3181 = vpop.permute.xlu0 %3180
        %3182 = vrot.lane.b32.xlu0 %v3179, 126
        %v3183 = vpop.permute.xlu0 %3182
        %v3186 = vadd.f32 %v3083, %v3181
        %v3187 = vadd.f32 %v3084, %v3183
        %s3188 = sld [smem:[#allocation2 + $0x8d]]
        %v3189 = vstv %s3188
        %v3190 = vmul.f32 %v3189, %v2980
        %v3191 = vmul.f32 %v3189, %v2688
        %v3192 = vmul.f32 %v3189, %v2689
        %v3196 = vrot.slane %v3190, 2
        %v3197 = vrot.slane %v3191, 2
        %v3198 = vsel %vm698, %v3196, %v3197
        %v3199 = vrot.slane %v3192, 2
        %v3200 = vsel %vm698, %v3197, %v3199
        %3201 = vrot.lane.b32.xlu0 %v3198, 126
        %v3202 = vpop.permute.xlu0 %3201
        %3203 = vrot.lane.b32.xlu0 %v3200, 126
        %v3204 = vpop.permute.xlu0 %3203
        %v3207 = vadd.f32 %v3104, %v3202
        %v3208 = vadd.f32 %v3105, %v3204
        %s3209 = sld [smem:[#allocation2 + $0x8e]]
        %v3210 = vstv %s3209
        %v3211 = vmul.f32 %v3210, %v2980
        %v3212 = vmul.f32 %v3210, %v2688
        %v3213 = vmul.f32 %v3210, %v2689
        %v3217 = vrot.slane %v3211, 2
        %v3218 = vrot.slane %v3212, 2
        %v3219 = vsel %vm698, %v3217, %v3218
        %v3220 = vrot.slane %v3213, 2
        %v3221 = vsel %vm698, %v3218, %v3220
        %3222 = vrot.lane.b32.xlu0 %v3219, 126
        %v3223 = vpop.permute.xlu0 %3222
        %3224 = vrot.lane.b32.xlu0 %v3221, 126
        %v3225 = vpop.permute.xlu0 %3224
        %v3228 = vadd.f32 %v3125, %v3223
        %v3229 = vadd.f32 %v3126, %v3225
        %s3230 = sld [smem:[#allocation2 + $0x8f]]
        %v3231 = vstv %s3230
        %v3232 = vmul.f32 %v3231, %v2980
        %v3233 = vmul.f32 %v3231, %v2688
        %v3234 = vmul.f32 %v3231, %v2689
        %v3238 = vrot.slane %v3232, 2
        %v3239 = vrot.slane %v3233, 2
        %v3240 = vsel %vm698, %v3238, %v3239
        %v3241 = vrot.slane %v3234, 2
        %v3242 = vsel %vm698, %v3239, %v3241
        %3243 = vrot.lane.b32.xlu0 %v3240, 126
        %v3244 = vpop.permute.xlu0 %3243
        %3245 = vrot.lane.b32.xlu0 %v3242, 126
        %v3246 = vpop.permute.xlu0 %3245
        %v3249 = vadd.f32 %v3165, %v3244
        %v3250 = vadd.f32 %v3166, %v3246
        %v3251 = vmul.f32 %v2980, %v978
        %v3252 = vmul.f32 %v2688, %v980
        %v3253 = vmul.f32 %v2689, %v982
        %v3257 = vrot.slane %v3251, 2
        %v3258 = vrot.slane %v3252, 2
        %v3259 = vsel %vm698, %v3257, %v3258
        %v3260 = vrot.slane %v3253, 2
        %v3261 = vsel %vm698, %v3258, %v3260
        %3262 = vrot.lane.b32.xlu0 %v3259, 126
        %v3263 = vpop.permute.xlu0 %3262
        %3264 = vrot.lane.b32.xlu0 %v3261, 126
        %v3265 = vpop.permute.xlu0 %3264
        %v3268 = vadd.f32 %v3249, %v3263
        %v3269 = vadd.f32 %v3250, %v3265
        %vm3270 = vcmask 130048
        %3271 = vst.msk [vmem:[%s177] sm:$0xff] %vm3270, %v3186
        %3272 = vst.msk [vmem:[%s177 + $0x8] sm:$0xff] %vm3270, %v3187
        %s3273 = scalar_lea.vmem %s177, 16 [#allocation5]
        %3274 = vst.msk [vmem:[%s3273] sm:$0xff] %vm3270, %v3207
        %3275 = vst.msk [vmem:[%s3273 + $0x8] sm:$0xff] %vm3270, %v3208
        %s3276 = scalar_lea.vmem %s177, 32 [#allocation5]
        %3277 = vst.msk [vmem:[%s3276] sm:$0xff] %vm3270, %v3228
        %3278 = vst.msk [vmem:[%s3276 + $0x8] sm:$0xff] %vm3270, %v3229
        %s3279 = scalar_lea.vmem %s177, 48 [#allocation5]
        %3280 = vst.msk [vmem:[%s3279] sm:$0xff] %vm3270, %v3268
        %3281 = vst.msk [vmem:[%s3279 + $0x8] sm:$0xff] %vm3270, %v3269
        %s3282 = sand.u32 %s94, 1
        %s3283 = scalar_lea.sflag [#allocation3], %s3282
        %s3284 = sand.u32 %s94, 1
        %s3285 = smul.addr %s3284, 64
        %s3286 = scalar_lea.vmem [#allocation5], %s3285
        // Predicated region
        $region37: #{tpu_custom_call.1} parent=31 // pred_check
          %p3287 = pneg %p104
        $region38: #{tpu_custom_call.1} parent=31 // pred_check_branch
          %3289 = sbr.rel (%p3287) target = $region40
        $region39: #{tpu_custom_call.1} parent=31 // pred_region
          %s3291 = ssub.s32 1024, 1024
          %3292 = vsyncadd %s3283, %s3291
          %s3293 = smul.addr %s18, 8
          %s3294 = smul.addr %s3293, 128
          %s3295 = scalar_lea.hbm %s3, %s3294
          %s3296 = sshll.u32 %s3286, 4
          %s3297 = int_to_ptr.vmem [resolvable:$true] %s3296
          %3302 = dma.vmem_to_hbm [thread:$0]  %s3297, 1024, %s3295, %s3283, 128, 128, 8
        $region40: #{tpu_custom_call.1} parent=31 // pred_fallthru
          _
      $region32: #{tpu_custom_call.1} parent=5 // pred_fallthru
        _
      %p3303 = scmp.le.s32.totalorder 2, %s13
      // Predicated region
      $region41: #{tpu_custom_call.1} parent=5 // pred_check
        %p3304 = pneg %p3303
      $region42: #{tpu_custom_call.1} parent=5 // pred_check_branch
        %3306 = sbr.rel (%p3304) target = $region44
      $region43: #{tpu_custom_call.1} parent=5 // pred_region
        %s3307 = ssub.s32 %s13, 2
        // Predicated region
        $region45: #{tpu_custom_call.1} parent=43 // pred_check
          %p3308 = pneg %p110
        $region46: #{tpu_custom_call.1} parent=43 // pred_check_branch
          %3310 = sbr.rel (%p3308) target = $region48
        $region47: #{tpu_custom_call.1} parent=43 // pred_region
          %s3311 = sand.u32 %s95, 1
          %s3312 = scalar_lea.sflag [#allocation3], %s3311
          %s3313 = sand.u32 %s95, 1
          %s3314 = smul.addr %s3313, 64
          %s3315 = scalar_lea.vmem [#allocation5], %s3314
          %3316 = dma.done %s3312, 1024
        $region48: #{tpu_custom_call.1} parent=43 // pred_fallthru
          _
      $region44: #{tpu_custom_call.1} parent=5 // pred_fallthru
        _
    $region6: #{tpu_custom_call.1} parent=1 // loop_footer
      %s17 = sadd.s32 1, %s13
    $region7: #{tpu_custom_call.1} parent=1 // loop_footer_branch
      %12 = sbr.rel target = $region3
    $region8: #{tpu_custom_call.1} parent=1 // loop_exit
      _
    %3317 = vsyncpa [#allocation3], 1
    %s3318 = scalar_lea.sflag [#allocation3], 1
    %3319 = vsyncpa %s3318, 1
    %3320 = vsyncpa [#allocation4], 1
    %s3321 = scalar_lea.sflag [#allocation4], 1
    %3322 = vsyncpa %s3321, 1

</llo_original>
